<compile_context>
chip_gen: v6e
topology: v6e:2x2x1
jax: 0.10.0
libtpu: 0.0.40
codegen_flags: <defaults>
</compile_context>

<pallas_src>
import math
import functools

import jax
import jax.numpy as jnp
from jax.experimental import pallas as pl
from jax.experimental.pallas import tpu as pltpu

SQRT2 = math.sqrt(2.0)


# ----------------------------------------------------------------------------
# Fused residual-block kernel: one grid step == one batch element.
# ----------------------------------------------------------------------------
def _resblock_kernel(*refs, H, W, cin, cout, has_skip):
    if has_skip:
        (x_ref, s_ref, wmod_ref, bmod_ref, w1_ref, b1_ref,
         w2_ref, b2_ref, wskip_ref, o_ref, h1_ref) = refs
    else:
        (x_ref, s_ref, wmod_ref, bmod_ref, w1_ref, b1_ref,
         w2_ref, b2_ref, o_ref, h1_ref) = refs
        wskip_ref = None

    # --- style modulation linears for BOTH convs in one small matmul --------
    s = s_ref[0]                                                  # (1, S) bf16
    style = jnp.dot(s, wmod_ref[...],
                    preferred_element_type=jnp.float32) + bmod_ref[...]  # (1, cin+cout) f32
    st1 = style[:, :cin]
    st1 = st1 * jax.lax.rsqrt(jnp.mean(st1 * st1, axis=-1, keepdims=True) + 1e-8)
    st2 = style[:, cin:]
    st2 = st2 * jax.lax.rsqrt(jnp.mean(st2 * st2, axis=-1, keepdims=True) + 1e-8)

    # --- conv1: 3x3 modulated conv as 9 shifted-window matmuls (all in VMEM) -
    x_pad = x_ref[0]                                              # (H+2, W+2, cin) bf16
    xm = (x_pad.astype(jnp.float32) * st1.reshape(1, 1, cin)).astype(jnp.bfloat16)
    acc = jnp.zeros((H * W, cout), jnp.float32)
    for t in range(9):
        dh, dw = divmod(t, 3)
        patch = xm[dh:dh + H, dw:dw + W, :].reshape(H * W, cin)
        acc = acc + jnp.dot(patch, w1_ref[t], preferred_element_type=jnp.float32)
    h1 = acc + b1_ref[...]
    h1 = jnp.where(h1 >= 0, h1, 0.2 * h1) * SQRT2                 # FusedLeakyReLU
    # TODO(synk): NoiseInjection is skipped; its gain is zero-initialized so it
    # is an exact no-op here (a trained non-zero gain would need pltpu.prng_*).

    # stash conv1 output with a zero padding ring for conv2 (stays in VMEM)
    h1_ref[...] = jnp.zeros_like(h1_ref)
    h1_ref[1:H + 1, 1:W + 1, :] = h1.reshape(H, W, cout)

    # --- conv2 ----------------------------------------------------------------
    hm = (h1_ref[...] * st2.reshape(1, 1, cout)).astype(jnp.bfloat16)
    acc = jnp.zeros((H * W, cout), jnp.float32)
    for t in range(9):
        dh, dw = divmod(t, 3)
        patch = hm[dh:dh + H, dw:dw + W, :].reshape(H * W, cout)
        acc = acc + jnp.dot(patch, w2_ref[t], preferred_element_type=jnp.float32)
    h2 = acc + b2_ref[...]
    h2 = jnp.where(h2 >= 0, h2, 0.2 * h2) * SQRT2

    # --- skip (1x1 EqualConv2d, no bias) + residual combine --------------------
    x_in = x_pad[1:H + 1, 1:W + 1, :].reshape(H * W, cin)         # original (un-modulated) x
    if has_skip:
        skip = jnp.dot(x_in, wskip_ref[...], preferred_element_type=jnp.float32)
    else:
        skip = x_in.astype(jnp.float32)                           # Identity (cin == cout)

    out = (skip + h2) * (1.0 / SQRT2)
    o_ref[...] = out.reshape(1, H, W, cout).astype(o_ref.dtype)


# ----------------------------------------------------------------------------
# Forward wrapper (PyTorch NCHW interface).
# ----------------------------------------------------------------------------
@jax.jit
def resnet_block_forward(prep, x_nchw, style):
    """ResolutionPreservingResnetBlock.forward(x, style). x:(B,Cin,H,W), style:(B,S)."""
    B, cin, H, W = x_nchw.shape
    S = style.shape[-1]
    cout = prep["w1"].shape[-1]
    has_skip = "wskip" in prep

    x = jnp.transpose(x_nchw, (0, 2, 3, 1)).astype(jnp.bfloat16)   # NHWC, bf16 operands
    x_pad = jnp.pad(x, ((0, 0), (1, 1), (1, 1), (0, 0)))
    s = style.astype(jnp.bfloat16)[:, None, :]                     # (B, 1, S)

    kernel = functools.partial(_resblock_kernel, H=H, W=W, cin=cin, cout=cout,
                               has_skip=has_skip)
    in_specs = [
        pl.BlockSpec((1, H + 2, W + 2, cin), lambda b: (b, 0, 0, 0)),
        pl.BlockSpec((1, 1, S), lambda b: (b, 0, 0)),
        pl.BlockSpec((S, cin + cout), lambda b: (0, 0)),
        pl.BlockSpec((1, cin + cout), lambda b: (0, 0)),
        pl.BlockSpec((9, cin, cout), lambda b: (0, 0, 0)),
        pl.BlockSpec((1, cout), lambda b: (0, 0)),
        pl.BlockSpec((9, cout, cout), lambda b: (0, 0, 0)),
        pl.BlockSpec((1, cout), lambda b: (0, 0)),
    ]
    args = [x_pad, s, prep["wmod"], prep["bmod"], prep["w1"], prep["b1"],
            prep["w2"], prep["b2"]]
    if has_skip:
        in_specs.append(pl.BlockSpec((cin, cout), lambda b: (0, 0)))
        args.append(prep["wskip"])

    out_nhwc = pl.pallas_call(
        kernel,
        out_shape=jax.ShapeDtypeStruct((B, H, W, cout), jnp.float32),
        grid_spec=pltpu.PrefetchScalarGridSpec(
            num_scalar_prefetch=0,
            grid=(B,),                                  # one image per grid step
            in_specs=in_specs,
            out_specs=pl.BlockSpec((1, H, W, cout), lambda b: (b, 0, 0, 0)),
            scratch_shapes=[pltpu.VMEM((H + 2, W + 2, cout), jnp.float32)],
        ),
        compiler_params=pltpu.CompilerParams(
            dimension_semantics=("parallel",)),         # keeps both v7x TCs busy
    )(*args)
    return jnp.transpose(out_nhwc, (0, 3, 1, 2))        # NHWC -> NCHW


# ----------------------------------------------------------------------------
# Parameter init (same distributions as the PyTorch module) + constant prep.
# ----------------------------------------------------------------------------
def init_resblock_params(key, inch, outch, styledim):
    k1, k2, k3, k4, k5 = jax.random.split(key, 5)

    def styled(kw, km, cin, cout):
        return dict(
            weight=jax.random.normal(kw, (cout, cin, 3, 3), jnp.float32),
            mod_w=jax.random.normal(km, (cin, styledim), jnp.float32),
            mod_b=jnp.ones((cin,), jnp.float32),           # EqualLinear bias_init=1
            act_b=jnp.zeros((cout,), jnp.float32))         # FusedLeakyReLU bias

    p = dict(conv1=styled(k1, k2, inch, outch),
             conv2=styled(k3, k4, outch, outch))
    if inch != outch:
        p["skip_w"] = jax.random.normal(k5, (outch, inch, 1, 1), jnp.float32)
    return p


def prepare_params(raw, styledim):
    """Hoist all forward-constant preprocessing: equalized-lr scale, demodulation,
    OIHW -> (tap, Cin, Cout) layout, modulation-weight fusion, bf16 casts."""
    def prep_conv(cp):
        cout, cin = cp["weight"].shape[0], cp["weight"].shape[1]
        w = (1.0 / math.sqrt(cin * 9)) * cp["weight"]                  # (cout,cin,3,3)
        demod = jax.lax.rsqrt(jnp.sum(w * w, axis=(1, 2, 3)) + 1e-8)   # style-independent
        w = w * demod[:, None, None, None]
        w = jnp.transpose(w, (2, 3, 1, 0)).reshape(9, cin, cout)       # tap-major
        wmod = ((1.0 / math.sqrt(styledim)) * cp["mod_w"]).T           # (S, cin)
        return (w.astype(jnp.bfloat16), wmod.astype(jnp.bfloat16),
                cp["mod_b"], cp["act_b"], cin, cout)

    w1, wm1, bm1, b1, cin, cout = prep_conv(raw["conv1"])
    w2, wm2, bm2, b2, _, _ = prep_conv(raw["conv2"])
    prep = dict(
        w1=w1, w2=w2,
        b1=b1.reshape(1, cout), b2=b2.reshape(1, cout),
        wmod=jnp.concatenate([wm1, wm2], axis=1),                      # (S, cin+cout)
        bmod=jnp.concatenate([bm1, bm2]).reshape(1, cin + cout),
    )
    if "skip_w" in raw:
        prep["wskip"] = ((1.0 / math.sqrt(cin)) *
                         raw["skip_w"][:, :, 0, 0]).T.astype(jnp.bfloat16)  # (cin,cout)
    return prep


# ----------------------------------------------------------------------------
# Pure-JAX (XLA) reference for correctness.
# ----------------------------------------------------------------------------
def _reference_forward(raw, x_nchw, style, styledim):
    def styled_conv(cp, x):
        cout, cin = cp["weight"].shape[0], cp["weight"].shape[1]
        st = style @ ((1.0 / math.sqrt(styledim)) * cp["mod_w"]).T + cp["mod_b"]
        st = st * jax.lax.rsqrt(jnp.mean(st * st, axis=1, keepdims=True) + 1e-8)
        xm = x * st[:, :, None, None]
        w = (1.0 / math.sqrt(cin * 9)) * cp["weight"]
        demod = jax.lax.rsqrt(jnp.sum(w * w, axis=(1, 2, 3)) + 1e-8)
        w = w * demod[:, None, None, None]
        out = jax.lax.conv_general_dilated(
            xm, w, window_strides=(1, 1), padding=[(1, 1), (1, 1)],
            dimension_numbers=("NCHW", "OIHW", "NCHW"))
        out = out + cp["act_b"][None, :, None, None]
        return jnp.where(out >= 0, out, 0.2 * out) * SQRT2

    if "skip_w" in raw:
        cin = raw["skip_w"].shape[1]
        ws = (1.0 / math.sqrt(cin)) * raw["skip_w"]
        skip = jax.lax.conv_general_dilated(
            x_nchw, ws, window_strides=(1, 1), padding=[(0, 0), (0, 0)],
            dimension_numbers=("NCHW", "OIHW", "NCHW"))
    else:
        skip = x_nchw
    h = styled_conv(raw["conv1"], x_nchw)
    h = styled_conv(raw["conv2"], h)
    return (skip + h) / SQRT2


# ----------------------------------------------------------------------------
if __name__ == "__main__":
    key = jax.random.PRNGKey(0)
    kp, kx, ks = jax.random.split(key, 3)

    B, inch, outch, styledim, H, W = 2, 256, 128, 1024, 8, 8
    raw = init_resblock_params(kp, inch, outch, styledim)
    prep = prepare_params(raw, styledim)

    x = jax.random.normal(kx, (B, inch, H, W), jnp.float32)      # feature map (NCHW)
    style = jax.random.normal(ks, (B, styledim), jnp.float32)    # style code

    out = jax.block_until_ready(resnet_block_forward(prep, x, style))
    assert out.shape == (B, outch, H, W), out.shape
    assert out.dtype == jnp.float32

    ref = _reference_forward(raw, x, style, styledim)
    err = float(jnp.max(jnp.abs(out - ref)) / (jnp.max(jnp.abs(ref)) + 1e-6))
    assert err < 5e-2, f"kernel/reference mismatch: rel-to-max err {err:.4g}"
    print("KERNEL_OK")
</pallas_src>

<mosaic_0001>
module attributes {stable_mosaic.version = 11 : i64} {
  func.func @_resblock_kernel(%arg0: i32, %arg1: memref<1x10x10x256xbf16, #tpu.memory_space<vmem>>, %arg2: memref<1x1x1024xbf16, #tpu.memory_space<vmem>>, %arg3: memref<1024x384xbf16, #tpu.memory_space<vmem>>, %arg4: memref<1x384xf32, #tpu.memory_space<vmem>>, %arg5: memref<9x256x128xbf16, #tpu.memory_space<vmem>>, %arg6: memref<1x128xf32, #tpu.memory_space<vmem>>, %arg7: memref<9x128x128xbf16, #tpu.memory_space<vmem>>, %arg8: memref<1x128xf32, #tpu.memory_space<vmem>>, %arg9: memref<256x128xbf16, #tpu.memory_space<vmem>>, %arg10: memref<1x8x8x128xf32, #tpu.memory_space<vmem>>, %arg11: memref<10x10x128xf32, #tpu.memory_space<vmem>>) attributes {dimension_semantics = [#tpu.dimension_semantics<parallel>], iteration_bounds = array<i64: 2>, scalar_prefetch = 0 : i64, scratch_operands = 1 : i64, tpu.core_type = #tpu.core_type<tc>, window_params = [{transform_indices = @transform_0, window_bounds = array<i64: 1, 10, 10, 256>}, {transform_indices = @transform_1, window_bounds = array<i64: 1, 1, 1024>}, {pipeline_mode = #tpu.pipeline_mode<synchronous>, transform_indices = @transform_2, window_bounds = array<i64: 1024, 384>}, {pipeline_mode = #tpu.pipeline_mode<synchronous>, transform_indices = @transform_3, window_bounds = array<i64: 1, 384>}, {pipeline_mode = #tpu.pipeline_mode<synchronous>, transform_indices = @transform_4, window_bounds = array<i64: 9, 256, 128>}, {pipeline_mode = #tpu.pipeline_mode<synchronous>, transform_indices = @transform_5, window_bounds = array<i64: 1, 128>}, {pipeline_mode = #tpu.pipeline_mode<synchronous>, transform_indices = @transform_6, window_bounds = array<i64: 9, 128, 128>}, {pipeline_mode = #tpu.pipeline_mode<synchronous>, transform_indices = @transform_7, window_bounds = array<i64: 1, 128>}, {pipeline_mode = #tpu.pipeline_mode<synchronous>, transform_indices = @transform_8, window_bounds = array<i64: 256, 128>}, {transform_indices = @transform_9, window_bounds = array<i64: 1, 8, 8, 128>}]} {
    %c0 = arith.constant 0 : index
    %c0_0 = arith.constant 0 : index
    %c0_1 = arith.constant 0 : index
    %0 = vector.load %arg2[%c0, %c0_0, %c0_1] : memref<1x1x1024xbf16, #tpu.memory_space<vmem>>, vector<1x1x1024xbf16>
    %1 = vector.shape_cast %0 : vector<1x1x1024xbf16> to vector<1x1024xbf16>
    %c0_2 = arith.constant 0 : index
    %c0_3 = arith.constant 0 : index
    %2 = vector.load %arg3[%c0_2, %c0_3] : memref<1024x384xbf16, #tpu.memory_space<vmem>>, vector<1024x384xbf16>
    %cst = arith.constant dense<0.000000e+00> : vector<1x384xf32>
    %3 = tpu.matmul %1, %2, %cst {dimension_numbers = #tpu.dot_dimension_numbers<[1], [0], [0], [1], [0, 0, 1, 1], [], []>} : vector<1x1024xbf16>, vector<1024x384xbf16>, vector<1x384xf32> -> vector<1x384xf32>
    %c0_4 = arith.constant 0 : index
    %c0_5 = arith.constant 0 : index
    %4 = vector.load %arg4[%c0_4, %c0_5] : memref<1x384xf32, #tpu.memory_space<vmem>>, vector<1x384xf32>
    %5 = arith.addf %3, %4 : vector<1x384xf32>
    %6 = vector.extract_strided_slice %5 {offsets = [0, 0], sizes = [1, 256], strides = [1, 1]} : vector<1x384xf32> to vector<1x256xf32>
    %7 = arith.mulf %6, %6 : vector<1x256xf32>
    %cst_6 = arith.constant dense<0.000000e+00> : vector<1xf32>
    %8 = vector.multi_reduction <add>, %7, %cst_6 [1] : vector<1x256xf32> to vector<1xf32>
    %9 = vector.shape_cast %8 : vector<1xf32> to vector<1x1xf32>
    %cst_7 = arith.constant 2.560000e+02 : f32
    %10 = vector.broadcast %cst_7 : f32 to vector<1x1xf32>
    %11 = arith.divf %9, %10 : vector<1x1xf32>
    %cst_8 = arith.constant 9.99999993E-9 : f32
    %12 = vector.broadcast %cst_8 : f32 to vector<1x1xf32>
    %13 = arith.addf %11, %12 : vector<1x1xf32>
    %14 = math.rsqrt %13 : vector<1x1xf32>
    %15 = vector.broadcast %14 : vector<1x1xf32> to vector<1x256xf32>
    %16 = arith.mulf %6, %15 : vector<1x256xf32>
    %17 = vector.extract_strided_slice %5 {offsets = [0, 256], sizes = [1, 128], strides = [1, 1]} : vector<1x384xf32> to vector<1x128xf32>
    %18 = arith.mulf %17, %17 : vector<1x128xf32>
    %cst_9 = arith.constant dense<0.000000e+00> : vector<1xf32>
    %19 = vector.multi_reduction <add>, %18, %cst_9 [1] : vector<1x128xf32> to vector<1xf32>
    %20 = vector.shape_cast %19 : vector<1xf32> to vector<1x1xf32>
    %cst_10 = arith.constant 1.280000e+02 : f32
    %21 = vector.broadcast %cst_10 : f32 to vector<1x1xf32>
    %22 = arith.divf %20, %21 : vector<1x1xf32>
    %cst_11 = arith.constant 9.99999993E-9 : f32
    %23 = vector.broadcast %cst_11 : f32 to vector<1x1xf32>
    %24 = arith.addf %22, %23 : vector<1x1xf32>
    %25 = math.rsqrt %24 : vector<1x1xf32>
    %26 = vector.broadcast %25 : vector<1x1xf32> to vector<1x128xf32>
    %27 = arith.mulf %17, %26 : vector<1x128xf32>
    %c0_12 = arith.constant 0 : index
    %c0_13 = arith.constant 0 : index
    %c0_14 = arith.constant 0 : index
    %c0_15 = arith.constant 0 : index
    %28 = vector.load %arg1[%c0_12, %c0_13, %c0_14, %c0_15] : memref<1x10x10x256xbf16, #tpu.memory_space<vmem>>, vector<1x10x10x256xbf16>
    %29 = vector.shape_cast %28 : vector<1x10x10x256xbf16> to vector<10x10x256xbf16>
    %30 = arith.extf %29 : vector<10x10x256xbf16> to vector<10x10x256xf32>
    %31 = vector.shape_cast %16 : vector<1x256xf32> to vector<1x1x256xf32>
    %32 = vector.broadcast %31 : vector<1x1x256xf32> to vector<10x10x256xf32>
    %33 = arith.mulf %30, %32 : vector<10x10x256xf32>
    %34 = arith.truncf %33 : vector<10x10x256xf32> to vector<10x10x256xbf16>
    %cst_16 = arith.constant 0.000000e+00 : f32
    %35 = vector.broadcast %cst_16 : f32 to vector<64x128xf32>
    %36 = vector.extract_strided_slice %34 {offsets = [0, 0, 0], sizes = [8, 8, 256], strides = [1, 1, 1]} : vector<10x10x256xbf16> to vector<8x8x256xbf16>
    %37 = vector.shape_cast %36 : vector<8x8x256xbf16> to vector<64x256xbf16>
    %c0_17 = arith.constant 0 : index
    %c0_18 = arith.constant 0 : index
    %c0_19 = arith.constant 0 : index
    %38 = vector.load %arg5[%c0_17, %c0_18, %c0_19] : memref<9x256x128xbf16, #tpu.memory_space<vmem>>, vector<1x256x128xbf16>
    %39 = vector.shape_cast %38 : vector<1x256x128xbf16> to vector<256x128xbf16>
    %cst_20 = arith.constant dense<0.000000e+00> : vector<64x128xf32>
    %40 = tpu.matmul %37, %39, %cst_20 {dimension_numbers = #tpu.dot_dimension_numbers<[1], [0], [0], [1], [0, 0, 1, 1], [], []>} : vector<64x256xbf16>, vector<256x128xbf16>, vector<64x128xf32> -> vector<64x128xf32>
    %41 = arith.addf %35, %40 : vector<64x128xf32>
    %42 = vector.extract_strided_slice %34 {offsets = [0, 1, 0], sizes = [8, 8, 256], strides = [1, 1, 1]} : vector<10x10x256xbf16> to vector<8x8x256xbf16>
    %43 = vector.shape_cast %42 : vector<8x8x256xbf16> to vector<64x256xbf16>
    %c1 = arith.constant 1 : index
    %c0_21 = arith.constant 0 : index
    %c0_22 = arith.constant 0 : index
    %44 = vector.load %arg5[%c1, %c0_21, %c0_22] : memref<9x256x128xbf16, #tpu.memory_space<vmem>>, vector<1x256x128xbf16>
    %45 = vector.shape_cast %44 : vector<1x256x128xbf16> to vector<256x128xbf16>
    %cst_23 = arith.constant dense<0.000000e+00> : vector<64x128xf32>
    %46 = tpu.matmul %43, %45, %cst_23 {dimension_numbers = #tpu.dot_dimension_numbers<[1], [0], [0], [1], [0, 0, 1, 1], [], []>} : vector<64x256xbf16>, vector<256x128xbf16>, vector<64x128xf32> -> vector<64x128xf32>
    %47 = arith.addf %41, %46 : vector<64x128xf32>
    %48 = vector.extract_strided_slice %34 {offsets = [0, 2, 0], sizes = [8, 8, 256], strides = [1, 1, 1]} : vector<10x10x256xbf16> to vector<8x8x256xbf16>
    %49 = vector.shape_cast %48 : vector<8x8x256xbf16> to vector<64x256xbf16>
    %c2 = arith.constant 2 : index
    %c0_24 = arith.constant 0 : index
    %c0_25 = arith.constant 0 : index
    %50 = vector.load %arg5[%c2, %c0_24, %c0_25] : memref<9x256x128xbf16, #tpu.memory_space<vmem>>, vector<1x256x128xbf16>
    %51 = vector.shape_cast %50 : vector<1x256x128xbf16> to vector<256x128xbf16>
    %cst_26 = arith.constant dense<0.000000e+00> : vector<64x128xf32>
    %52 = tpu.matmul %49, %51, %cst_26 {dimension_numbers = #tpu.dot_dimension_numbers<[1], [0], [0], [1], [0, 0, 1, 1], [], []>} : vector<64x256xbf16>, vector<256x128xbf16>, vector<64x128xf32> -> vector<64x128xf32>
    %53 = arith.addf %47, %52 : vector<64x128xf32>
    %54 = vector.extract_strided_slice %34 {offsets = [1, 0, 0], sizes = [8, 8, 256], strides = [1, 1, 1]} : vector<10x10x256xbf16> to vector<8x8x256xbf16>
    %55 = vector.shape_cast %54 : vector<8x8x256xbf16> to vector<64x256xbf16>
    %c3 = arith.constant 3 : index
    %c0_27 = arith.constant 0 : index
    %c0_28 = arith.constant 0 : index
    %56 = vector.load %arg5[%c3, %c0_27, %c0_28] : memref<9x256x128xbf16, #tpu.memory_space<vmem>>, vector<1x256x128xbf16>
    %57 = vector.shape_cast %56 : vector<1x256x128xbf16> to vector<256x128xbf16>
    %cst_29 = arith.constant dense<0.000000e+00> : vector<64x128xf32>
    %58 = tpu.matmul %55, %57, %cst_29 {dimension_numbers = #tpu.dot_dimension_numbers<[1], [0], [0], [1], [0, 0, 1, 1], [], []>} : vector<64x256xbf16>, vector<256x128xbf16>, vector<64x128xf32> -> vector<64x128xf32>
    %59 = arith.addf %53, %58 : vector<64x128xf32>
    %60 = vector.extract_strided_slice %34 {offsets = [1, 1, 0], sizes = [8, 8, 256], strides = [1, 1, 1]} : vector<10x10x256xbf16> to vector<8x8x256xbf16>
    %61 = vector.shape_cast %60 : vector<8x8x256xbf16> to vector<64x256xbf16>
    %c4 = arith.constant 4 : index
    %c0_30 = arith.constant 0 : index
    %c0_31 = arith.constant 0 : index
    %62 = vector.load %arg5[%c4, %c0_30, %c0_31] : memref<9x256x128xbf16, #tpu.memory_space<vmem>>, vector<1x256x128xbf16>
    %63 = vector.shape_cast %62 : vector<1x256x128xbf16> to vector<256x128xbf16>
    %cst_32 = arith.constant dense<0.000000e+00> : vector<64x128xf32>
    %64 = tpu.matmul %61, %63, %cst_32 {dimension_numbers = #tpu.dot_dimension_numbers<[1], [0], [0], [1], [0, 0, 1, 1], [], []>} : vector<64x256xbf16>, vector<256x128xbf16>, vector<64x128xf32> -> vector<64x128xf32>
    %65 = arith.addf %59, %64 : vector<64x128xf32>
    %66 = vector.extract_strided_slice %34 {offsets = [1, 2, 0], sizes = [8, 8, 256], strides = [1, 1, 1]} : vector<10x10x256xbf16> to vector<8x8x256xbf16>
    %67 = vector.shape_cast %66 : vector<8x8x256xbf16> to vector<64x256xbf16>
    %c5 = arith.constant 5 : index
    %c0_33 = arith.constant 0 : index
    %c0_34 = arith.constant 0 : index
    %68 = vector.load %arg5[%c5, %c0_33, %c0_34] : memref<9x256x128xbf16, #tpu.memory_space<vmem>>, vector<1x256x128xbf16>
    %69 = vector.shape_cast %68 : vector<1x256x128xbf16> to vector<256x128xbf16>
    %cst_35 = arith.constant dense<0.000000e+00> : vector<64x128xf32>
    %70 = tpu.matmul %67, %69, %cst_35 {dimension_numbers = #tpu.dot_dimension_numbers<[1], [0], [0], [1], [0, 0, 1, 1], [], []>} : vector<64x256xbf16>, vector<256x128xbf16>, vector<64x128xf32> -> vector<64x128xf32>
    %71 = arith.addf %65, %70 : vector<64x128xf32>
    %72 = vector.extract_strided_slice %34 {offsets = [2, 0, 0], sizes = [8, 8, 256], strides = [1, 1, 1]} : vector<10x10x256xbf16> to vector<8x8x256xbf16>
    %73 = vector.shape_cast %72 : vector<8x8x256xbf16> to vector<64x256xbf16>
    %c6 = arith.constant 6 : index
    %c0_36 = arith.constant 0 : index
    %c0_37 = arith.constant 0 : index
    %74 = vector.load %arg5[%c6, %c0_36, %c0_37] : memref<9x256x128xbf16, #tpu.memory_space<vmem>>, vector<1x256x128xbf16>
    %75 = vector.shape_cast %74 : vector<1x256x128xbf16> to vector<256x128xbf16>
    %cst_38 = arith.constant dense<0.000000e+00> : vector<64x128xf32>
    %76 = tpu.matmul %73, %75, %cst_38 {dimension_numbers = #tpu.dot_dimension_numbers<[1], [0], [0], [1], [0, 0, 1, 1], [], []>} : vector<64x256xbf16>, vector<256x128xbf16>, vector<64x128xf32> -> vector<64x128xf32>
    %77 = arith.addf %71, %76 : vector<64x128xf32>
    %78 = vector.extract_strided_slice %34 {offsets = [2, 1, 0], sizes = [8, 8, 256], strides = [1, 1, 1]} : vector<10x10x256xbf16> to vector<8x8x256xbf16>
    %79 = vector.shape_cast %78 : vector<8x8x256xbf16> to vector<64x256xbf16>
    %c7 = arith.constant 7 : index
    %c0_39 = arith.constant 0 : index
    %c0_40 = arith.constant 0 : index
    %80 = vector.load %arg5[%c7, %c0_39, %c0_40] : memref<9x256x128xbf16, #tpu.memory_space<vmem>>, vector<1x256x128xbf16>
    %81 = vector.shape_cast %80 : vector<1x256x128xbf16> to vector<256x128xbf16>
    %cst_41 = arith.constant dense<0.000000e+00> : vector<64x128xf32>
    %82 = tpu.matmul %79, %81, %cst_41 {dimension_numbers = #tpu.dot_dimension_numbers<[1], [0], [0], [1], [0, 0, 1, 1], [], []>} : vector<64x256xbf16>, vector<256x128xbf16>, vector<64x128xf32> -> vector<64x128xf32>
    %83 = arith.addf %77, %82 : vector<64x128xf32>
    %84 = vector.extract_strided_slice %34 {offsets = [2, 2, 0], sizes = [8, 8, 256], strides = [1, 1, 1]} : vector<10x10x256xbf16> to vector<8x8x256xbf16>
    %85 = vector.shape_cast %84 : vector<8x8x256xbf16> to vector<64x256xbf16>
    %c8 = arith.constant 8 : index
    %c0_42 = arith.constant 0 : index
    %c0_43 = arith.constant 0 : index
    %86 = vector.load %arg5[%c8, %c0_42, %c0_43] : memref<9x256x128xbf16, #tpu.memory_space<vmem>>, vector<1x256x128xbf16>
    %87 = vector.shape_cast %86 : vector<1x256x128xbf16> to vector<256x128xbf16>
    %cst_44 = arith.constant dense<0.000000e+00> : vector<64x128xf32>
    %88 = tpu.matmul %85, %87, %cst_44 {dimension_numbers = #tpu.dot_dimension_numbers<[1], [0], [0], [1], [0, 0, 1, 1], [], []>} : vector<64x256xbf16>, vector<256x128xbf16>, vector<64x128xf32> -> vector<64x128xf32>
    %89 = arith.addf %83, %88 : vector<64x128xf32>
    %c0_45 = arith.constant 0 : index
    %c0_46 = arith.constant 0 : index
    %90 = vector.load %arg6[%c0_45, %c0_46] : memref<1x128xf32, #tpu.memory_space<vmem>>, vector<1x128xf32>
    %91 = vector.broadcast %90 : vector<1x128xf32> to vector<64x128xf32>
    %92 = arith.addf %89, %91 : vector<64x128xf32>
    %cst_47 = arith.constant 0.000000e+00 : f32
    %93 = vector.broadcast %cst_47 : f32 to vector<64x128xf32>
    %94 = arith.cmpf oge, %92, %93 : vector<64x128xf32>
    %cst_48 = arith.constant 2.000000e-01 : f32
    %95 = vector.broadcast %cst_48 : f32 to vector<64x128xf32>
    %96 = arith.mulf %95, %92 : vector<64x128xf32>
    %97 = arith.select %94, %92, %96 : vector<64x128xi1>, vector<64x128xf32>
    %cst_49 = arith.constant 1.41421354 : f32
    %98 = vector.broadcast %cst_49 : f32 to vector<64x128xf32>
    %99 = arith.mulf %97, %98 : vector<64x128xf32>
    %cst_50 = arith.constant 0.000000e+00 : f32
    %100 = vector.broadcast %cst_50 : f32 to vector<10x10x128xf32>
    %c0_51 = arith.constant 0 : index
    %c0_52 = arith.constant 0 : index
    %c0_53 = arith.constant 0 : index
    %101 = vector.load %arg11[%c0_51, %c0_52, %c0_53] : memref<10x10x128xf32, #tpu.memory_space<vmem>>, vector<10x10x128xf32>
    tpu.vector_store %arg11[%c0_51, %c0_52, %c0_53], %100 {strides = array<i32>} : memref<10x10x128xf32, #tpu.memory_space<vmem>>, vector<10x10x128xf32>,
    %102 = vector.shape_cast %99 : vector<64x128xf32> to vector<8x8x128xf32>
    %c1_54 = arith.constant 1 : index
    %c1_55 = arith.constant 1 : index
    %c0_56 = arith.constant 0 : index
    %103 = vector.load %arg11[%c1_54, %c1_55, %c0_56] : memref<10x10x128xf32, #tpu.memory_space<vmem>>, vector<8x8x128xf32>
    tpu.vector_store %arg11[%c1_54, %c1_55, %c0_56], %102 {strides = array<i32>} : memref<10x10x128xf32, #tpu.memory_space<vmem>>, vector<8x8x128xf32>,
    %c0_57 = arith.constant 0 : index
    %c0_58 = arith.constant 0 : index
    %c0_59 = arith.constant 0 : index
    %104 = vector.load %arg11[%c0_57, %c0_58, %c0_59] : memref<10x10x128xf32, #tpu.memory_space<vmem>>, vector<10x10x128xf32>
    %105 = vector.shape_cast %27 : vector<1x128xf32> to vector<1x1x128xf32>
    %106 = vector.broadcast %105 : vector<1x1x128xf32> to vector<10x10x128xf32>
    %107 = arith.mulf %104, %106 : vector<10x10x128xf32>
    %108 = arith.truncf %107 : vector<10x10x128xf32> to vector<10x10x128xbf16>
    %cst_60 = arith.constant 0.000000e+00 : f32
    %109 = vector.broadcast %cst_60 : f32 to vector<64x128xf32>
    %110 = vector.extract_strided_slice %108 {offsets = [0, 0, 0], sizes = [8, 8, 128], strides = [1, 1, 1]} : vector<10x10x128xbf16> to vector<8x8x128xbf16>
    %111 = vector.shape_cast %110 : vector<8x8x128xbf16> to vector<64x128xbf16>
    %c0_61 = arith.constant 0 : index
    %c0_62 = arith.constant 0 : index
    %c0_63 = arith.constant 0 : index
    %112 = vector.load %arg7[%c0_61, %c0_62, %c0_63] : memref<9x128x128xbf16, #tpu.memory_space<vmem>>, vector<1x128x128xbf16>
    %113 = vector.shape_cast %112 : vector<1x128x128xbf16> to vector<128x128xbf16>
    %cst_64 = arith.constant dense<0.000000e+00> : vector<64x128xf32>
    %114 = tpu.matmul %111, %113, %cst_64 {dimension_numbers = #tpu.dot_dimension_numbers<[1], [0], [0], [1], [0, 0, 1, 1], [], []>} : vector<64x128xbf16>, vector<128x128xbf16>, vector<64x128xf32> -> vector<64x128xf32>
    %115 = arith.addf %109, %114 : vector<64x128xf32>
    %116 = vector.extract_strided_slice %108 {offsets = [0, 1, 0], sizes = [8, 8, 128], strides = [1, 1, 1]} : vector<10x10x128xbf16> to vector<8x8x128xbf16>
    %117 = vector.shape_cast %116 : vector<8x8x128xbf16> to vector<64x128xbf16>
    %c1_65 = arith.constant 1 : index
    %c0_66 = arith.constant 0 : index
    %c0_67 = arith.constant 0 : index
    %118 = vector.load %arg7[%c1_65, %c0_66, %c0_67] : memref<9x128x128xbf16, #tpu.memory_space<vmem>>, vector<1x128x128xbf16>
    %119 = vector.shape_cast %118 : vector<1x128x128xbf16> to vector<128x128xbf16>
    %cst_68 = arith.constant dense<0.000000e+00> : vector<64x128xf32>
    %120 = tpu.matmul %117, %119, %cst_68 {dimension_numbers = #tpu.dot_dimension_numbers<[1], [0], [0], [1], [0, 0, 1, 1], [], []>} : vector<64x128xbf16>, vector<128x128xbf16>, vector<64x128xf32> -> vector<64x128xf32>
    %121 = arith.addf %115, %120 : vector<64x128xf32>
    %122 = vector.extract_strided_slice %108 {offsets = [0, 2, 0], sizes = [8, 8, 128], strides = [1, 1, 1]} : vector<10x10x128xbf16> to vector<8x8x128xbf16>
    %123 = vector.shape_cast %122 : vector<8x8x128xbf16> to vector<64x128xbf16>
    %c2_69 = arith.constant 2 : index
    %c0_70 = arith.constant 0 : index
    %c0_71 = arith.constant 0 : index
    %124 = vector.load %arg7[%c2_69, %c0_70, %c0_71] : memref<9x128x128xbf16, #tpu.memory_space<vmem>>, vector<1x128x128xbf16>
    %125 = vector.shape_cast %124 : vector<1x128x128xbf16> to vector<128x128xbf16>
    %cst_72 = arith.constant dense<0.000000e+00> : vector<64x128xf32>
    %126 = tpu.matmul %123, %125, %cst_72 {dimension_numbers = #tpu.dot_dimension_numbers<[1], [0], [0], [1], [0, 0, 1, 1], [], []>} : vector<64x128xbf16>, vector<128x128xbf16>, vector<64x128xf32> -> vector<64x128xf32>
    %127 = arith.addf %121, %126 : vector<64x128xf32>
    %128 = vector.extract_strided_slice %108 {offsets = [1, 0, 0], sizes = [8, 8, 128], strides = [1, 1, 1]} : vector<10x10x128xbf16> to vector<8x8x128xbf16>
    %129 = vector.shape_cast %128 : vector<8x8x128xbf16> to vector<64x128xbf16>
    %c3_73 = arith.constant 3 : index
    %c0_74 = arith.constant 0 : index
    %c0_75 = arith.constant 0 : index
    %130 = vector.load %arg7[%c3_73, %c0_74, %c0_75] : memref<9x128x128xbf16, #tpu.memory_space<vmem>>, vector<1x128x128xbf16>
    %131 = vector.shape_cast %130 : vector<1x128x128xbf16> to vector<128x128xbf16>
    %cst_76 = arith.constant dense<0.000000e+00> : vector<64x128xf32>
    %132 = tpu.matmul %129, %131, %cst_76 {dimension_numbers = #tpu.dot_dimension_numbers<[1], [0], [0], [1], [0, 0, 1, 1], [], []>} : vector<64x128xbf16>, vector<128x128xbf16>, vector<64x128xf32> -> vector<64x128xf32>
    %133 = arith.addf %127, %132 : vector<64x128xf32>
    %134 = vector.extract_strided_slice %108 {offsets = [1, 1, 0], sizes = [8, 8, 128], strides = [1, 1, 1]} : vector<10x10x128xbf16> to vector<8x8x128xbf16>
    %135 = vector.shape_cast %134 : vector<8x8x128xbf16> to vector<64x128xbf16>
    %c4_77 = arith.constant 4 : index
    %c0_78 = arith.constant 0 : index
    %c0_79 = arith.constant 0 : index
    %136 = vector.load %arg7[%c4_77, %c0_78, %c0_79] : memref<9x128x128xbf16, #tpu.memory_space<vmem>>, vector<1x128x128xbf16>
    %137 = vector.shape_cast %136 : vector<1x128x128xbf16> to vector<128x128xbf16>
    %cst_80 = arith.constant dense<0.000000e+00> : vector<64x128xf32>
    %138 = tpu.matmul %135, %137, %cst_80 {dimension_numbers = #tpu.dot_dimension_numbers<[1], [0], [0], [1], [0, 0, 1, 1], [], []>} : vector<64x128xbf16>, vector<128x128xbf16>, vector<64x128xf32> -> vector<64x128xf32>
    %139 = arith.addf %133, %138 : vector<64x128xf32>
    %140 = vector.extract_strided_slice %108 {offsets = [1, 2, 0], sizes = [8, 8, 128], strides = [1, 1, 1]} : vector<10x10x128xbf16> to vector<8x8x128xbf16>
    %141 = vector.shape_cast %140 : vector<8x8x128xbf16> to vector<64x128xbf16>
    %c5_81 = arith.constant 5 : index
    %c0_82 = arith.constant 0 : index
    %c0_83 = arith.constant 0 : index
    %142 = vector.load %arg7[%c5_81, %c0_82, %c0_83] : memref<9x128x128xbf16, #tpu.memory_space<vmem>>, vector<1x128x128xbf16>
    %143 = vector.shape_cast %142 : vector<1x128x128xbf16> to vector<128x128xbf16>
    %cst_84 = arith.constant dense<0.000000e+00> : vector<64x128xf32>
    %144 = tpu.matmul %141, %143, %cst_84 {dimension_numbers = #tpu.dot_dimension_numbers<[1], [0], [0], [1], [0, 0, 1, 1], [], []>} : vector<64x128xbf16>, vector<128x128xbf16>, vector<64x128xf32> -> vector<64x128xf32>
    %145 = arith.addf %139, %144 : vector<64x128xf32>
    %146 = vector.extract_strided_slice %108 {offsets = [2, 0, 0], sizes = [8, 8, 128], strides = [1, 1, 1]} : vector<10x10x128xbf16> to vector<8x8x128xbf16>
    %147 = vector.shape_cast %146 : vector<8x8x128xbf16> to vector<64x128xbf16>
    %c6_85 = arith.constant 6 : index
    %c0_86 = arith.constant 0 : index
    %c0_87 = arith.constant 0 : index
    %148 = vector.load %arg7[%c6_85, %c0_86, %c0_87] : memref<9x128x128xbf16, #tpu.memory_space<vmem>>, vector<1x128x128xbf16>
    %149 = vector.shape_cast %148 : vector<1x128x128xbf16> to vector<128x128xbf16>
    %cst_88 = arith.constant dense<0.000000e+00> : vector<64x128xf32>
    %150 = tpu.matmul %147, %149, %cst_88 {dimension_numbers = #tpu.dot_dimension_numbers<[1], [0], [0], [1], [0, 0, 1, 1], [], []>} : vector<64x128xbf16>, vector<128x128xbf16>, vector<64x128xf32> -> vector<64x128xf32>
    %151 = arith.addf %145, %150 : vector<64x128xf32>
    %152 = vector.extract_strided_slice %108 {offsets = [2, 1, 0], sizes = [8, 8, 128], strides = [1, 1, 1]} : vector<10x10x128xbf16> to vector<8x8x128xbf16>
    %153 = vector.shape_cast %152 : vector<8x8x128xbf16> to vector<64x128xbf16>
    %c7_89 = arith.constant 7 : index
    %c0_90 = arith.constant 0 : index
    %c0_91 = arith.constant 0 : index
    %154 = vector.load %arg7[%c7_89, %c0_90, %c0_91] : memref<9x128x128xbf16, #tpu.memory_space<vmem>>, vector<1x128x128xbf16>
    %155 = vector.shape_cast %154 : vector<1x128x128xbf16> to vector<128x128xbf16>
    %cst_92 = arith.constant dense<0.000000e+00> : vector<64x128xf32>
    %156 = tpu.matmul %153, %155, %cst_92 {dimension_numbers = #tpu.dot_dimension_numbers<[1], [0], [0], [1], [0, 0, 1, 1], [], []>} : vector<64x128xbf16>, vector<128x128xbf16>, vector<64x128xf32> -> vector<64x128xf32>
    %157 = arith.addf %151, %156 : vector<64x128xf32>
    %158 = vector.extract_strided_slice %108 {offsets = [2, 2, 0], sizes = [8, 8, 128], strides = [1, 1, 1]} : vector<10x10x128xbf16> to vector<8x8x128xbf16>
    %159 = vector.shape_cast %158 : vector<8x8x128xbf16> to vector<64x128xbf16>
    %c8_93 = arith.constant 8 : index
    %c0_94 = arith.constant 0 : index
    %c0_95 = arith.constant 0 : index
    %160 = vector.load %arg7[%c8_93, %c0_94, %c0_95] : memref<9x128x128xbf16, #tpu.memory_space<vmem>>, vector<1x128x128xbf16>
    %161 = vector.shape_cast %160 : vector<1x128x128xbf16> to vector<128x128xbf16>
    %cst_96 = arith.constant dense<0.000000e+00> : vector<64x128xf32>
    %162 = tpu.matmul %159, %161, %cst_96 {dimension_numbers = #tpu.dot_dimension_numbers<[1], [0], [0], [1], [0, 0, 1, 1], [], []>} : vector<64x128xbf16>, vector<128x128xbf16>, vector<64x128xf32> -> vector<64x128xf32>
    %163 = arith.addf %157, %162 : vector<64x128xf32>
    %c0_97 = arith.constant 0 : index
    %c0_98 = arith.constant 0 : index
    %164 = vector.load %arg8[%c0_97, %c0_98] : memref<1x128xf32, #tpu.memory_space<vmem>>, vector<1x128xf32>
    %165 = vector.broadcast %164 : vector<1x128xf32> to vector<64x128xf32>
    %166 = arith.addf %163, %165 : vector<64x128xf32>
    %cst_99 = arith.constant 0.000000e+00 : f32
    %167 = vector.broadcast %cst_99 : f32 to vector<64x128xf32>
    %168 = arith.cmpf oge, %166, %167 : vector<64x128xf32>
    %cst_100 = arith.constant 2.000000e-01 : f32
    %169 = vector.broadcast %cst_100 : f32 to vector<64x128xf32>
    %170 = arith.mulf %169, %166 : vector<64x128xf32>
    %171 = arith.select %168, %166, %170 : vector<64x128xi1>, vector<64x128xf32>
    %cst_101 = arith.constant 1.41421354 : f32
    %172 = vector.broadcast %cst_101 : f32 to vector<64x128xf32>
    %173 = arith.mulf %171, %172 : vector<64x128xf32>
    %174 = vector.extract_strided_slice %29 {offsets = [1, 1, 0], sizes = [8, 8, 256], strides = [1, 1, 1]} : vector<10x10x256xbf16> to vector<8x8x256xbf16>
    %175 = vector.shape_cast %174 : vector<8x8x256xbf16> to vector<64x256xbf16>
    %c0_102 = arith.constant 0 : index
    %c0_103 = arith.constant 0 : index
    %176 = vector.load %arg9[%c0_102, %c0_103] : memref<256x128xbf16, #tpu.memory_space<vmem>>, vector<256x128xbf16>
    %cst_104 = arith.constant dense<0.000000e+00> : vector<64x128xf32>
    %177 = tpu.matmul %175, %176, %cst_104 {dimension_numbers = #tpu.dot_dimension_numbers<[1], [0], [0], [1], [0, 0, 1, 1], [], []>} : vector<64x256xbf16>, vector<256x128xbf16>, vector<64x128xf32> -> vector<64x128xf32>
    %178 = arith.addf %177, %173 : vector<64x128xf32>
    %cst_105 = arith.constant 0.707106769 : f32
    %179 = vector.broadcast %cst_105 : f32 to vector<64x128xf32>
    %180 = arith.mulf %178, %179 : vector<64x128xf32>
    %181 = vector.shape_cast %180 : vector<64x128xf32> to vector<1x8x8x128xf32>
    %c0_106 = arith.constant 0 : index
    %c0_107 = arith.constant 0 : index
    %c0_108 = arith.constant 0 : index
    %c0_109 = arith.constant 0 : index
    %182 = vector.load %arg10[%c0_106, %c0_107, %c0_108, %c0_109] : memref<1x8x8x128xf32, #tpu.memory_space<vmem>>, vector<1x8x8x128xf32>
    tpu.vector_store %arg10[%c0_106, %c0_107, %c0_108, %c0_109], %181 {strides = array<i32>} : memref<1x8x8x128xf32, #tpu.memory_space<vmem>>, vector<1x8x8x128xf32>,
    return
  }
  func.func @transform_0(%arg0: i32) -> (i32, i32, i32, i32) {
    %c0_i32 = arith.constant 0 : i32
    %c0_i32_0 = arith.constant 0 : i32
    %c0_i32_1 = arith.constant 0 : i32
    %c0_i32_2 = arith.constant 0 : i32
    return %arg0, %c0_i32, %c0_i32_0, %c0_i32_1 : i32, i32, i32, i32
  }
  func.func @transform_1(%arg0: i32) -> (i32, i32, i32) {
    %c0_i32 = arith.constant 0 : i32
    %c0_i32_0 = arith.constant 0 : i32
    %c0_i32_1 = arith.constant 0 : i32
    return %arg0, %c0_i32, %c0_i32_0 : i32, i32, i32
  }
  func.func @transform_2(%arg0: i32) -> (i32, i32) {
    %c0_i32 = arith.constant 0 : i32
    %c0_i32_0 = arith.constant 0 : i32
    %c0_i32_1 = arith.constant 0 : i32
    return %c0_i32, %c0_i32_0 : i32, i32
  }
  func.func @transform_3(%arg0: i32) -> (i32, i32) {
    %c0_i32 = arith.constant 0 : i32
    %c0_i32_0 = arith.constant 0 : i32
    %c0_i32_1 = arith.constant 0 : i32
    return %c0_i32, %c0_i32_0 : i32, i32
  }
  func.func @transform_4(%arg0: i32) -> (i32, i32, i32) {
    %c0_i32 = arith.constant 0 : i32
    %c0_i32_0 = arith.constant 0 : i32
    %c0_i32_1 = arith.constant 0 : i32
    %c0_i32_2 = arith.constant 0 : i32
    return %c0_i32, %c0_i32_0, %c0_i32_1 : i32, i32, i32
  }
  func.func @transform_5(%arg0: i32) -> (i32, i32) {
    %c0_i32 = arith.constant 0 : i32
    %c0_i32_0 = arith.constant 0 : i32
    %c0_i32_1 = arith.constant 0 : i32
    return %c0_i32, %c0_i32_0 : i32, i32
  }
  func.func @transform_6(%arg0: i32) -> (i32, i32, i32) {
    %c0_i32 = arith.constant 0 : i32
    %c0_i32_0 = arith.constant 0 : i32
    %c0_i32_1 = arith.constant 0 : i32
    %c0_i32_2 = arith.constant 0 : i32
    return %c0_i32, %c0_i32_0, %c0_i32_1 : i32, i32, i32
  }
  func.func @transform_7(%arg0: i32) -> (i32, i32) {
    %c0_i32 = arith.constant 0 : i32
    %c0_i32_0 = arith.constant 0 : i32
    %c0_i32_1 = arith.constant 0 : i32
    return %c0_i32, %c0_i32_0 : i32, i32
  }
  func.func @transform_8(%arg0: i32) -> (i32, i32) {
    %c0_i32 = arith.constant 0 : i32
    %c0_i32_0 = arith.constant 0 : i32
    %c0_i32_1 = arith.constant 0 : i32
    return %c0_i32, %c0_i32_0 : i32, i32
  }
  func.func @transform_9(%arg0: i32) -> (i32, i32, i32, i32) {
    %c0_i32 = arith.constant 0 : i32
    %c0_i32_0 = arith.constant 0 : i32
    %c0_i32_1 = arith.constant 0 : i32
    %c0_i32_2 = arith.constant 0 : i32
    return %arg0, %c0_i32, %c0_i32_0, %c0_i32_1 : i32, i32, i32, i32
  }
}

</mosaic_0001>

<llo_original>
// kernel: resnet_block_forward.1
$region0: #{resnet_block_forward.1}
  #allocation0 [shape = 'u32[]', space=smem, size = 0x4, offset = 0x4, fixed_abs, tag = 'smem constant byte address 0x4 - core index']
  #allocation1 [shape = 'u32[144,128]{1,0:T(1,128)}', space=vmem, size = 0x12000, scoped, tag = 'internal scratch']
  #allocation2 [shape = 'f32[10,10,128]{2,1,0:T(8,128)}', space=vmem, size = 0x14000, scoped, tag = 'scratch operand']
  %s0 = inlined_call_operand.vmem [shape: bf16[2,10,10,256], index: 0, kind: input, shape index: {}]
  %s1 = inlined_call_operand.vmem [shape: bf16[2,1,1024], index: 1, kind: input, shape index: {}]
  %s2 = inlined_call_operand.hbm [shape: bf16[1024,384], index: 2, kind: input, shape index: {}]
  %s3 = inlined_call_operand.vmem [shape: f32[1,384], index: 3, kind: input, shape index: {}]
  %s4 = inlined_call_operand.hbm [shape: bf16[9,256,128], index: 4, kind: input, shape index: {}]
  %s5 = inlined_call_operand.vmem [shape: f32[1,128], index: 5, kind: input, shape index: {}]
  %s6 = inlined_call_operand.vmem [shape: bf16[9,128,128], index: 6, kind: input, shape index: {}]
  %s7 = inlined_call_operand.vmem [shape: f32[1,128], index: 7, kind: input, shape index: {}]
  %s8 = inlined_call_operand.vmem [shape: bf16[256,128], index: 8, kind: input, shape index: {}]
  %s9 = inlined_call_operand.hbm [shape: f32[2,8,8,128], index: 9, kind: output, shape index: {}]
  %s10 = sld [smem:[#allocation0]]
  $region77: #{resnet_block_forward.1} parent=0
    _
  %s12 = ssub.s32 1, %s10
  %s13 = scalar_select 0, %s12, %s10
  $region1: #{resnet_block_forward.1} parent=0
    #allocation3 [shape = 'u8[786432]{0}', space=vmem, size = 0xc0000, scoped, tag = 'input window, operand 2, single buffered']
    #allocation4 [shape = 's32[2]{0}', space=sflag, size = 0x8, scoped, tag = 'scoped memory for resnet_block_forward.1']
    #allocation5 [shape = 's32[2]{0}', space=sflag, size = 0x8, scoped, tag = 'scoped memory for resnet_block_forward.1']
    #allocation6 [shape = 'u8[589824]{0}', space=vmem, size = 0x90000, scoped, tag = 'input window, operand 4, single buffered']
    #allocation7 [shape = 's32[1]{0}', space=sflag, size = 0x4, scoped, tag = 'scoped memory for resnet_block_forward.1']
    #allocation8 [shape = 'u8[65536]{0}', space=vmem, size = 0x10000, scoped, tag = 'output window, operand 0']
    %14 = vsyncpa [#allocation4], 0
    %15 = vsyncpa [#allocation7], 0
    %16 = vsyncpa [#allocation5], 0
    %s17 = scalar_lea.sflag [#allocation5], 1
    %18 = vsyncpa %s17, 0
    loop: start=0, step=1, limit=4
    $region2: #{resnet_block_forward.1} parent=1 // loop_pre_header
      _
    $region3: #{resnet_block_forward.1} parent=1 // loop_header
      %s20 = sphi 0, %s24
      %p21 = scmp.ge.s32.totalorder %s20, 4
      %s30 = sphi 0, %s32
      %s33 = sphi 0, %s30
      %s34 = sphi 0, %s33
      %s50 = sphi 0, %s34
      %s56 = sphi 0, %s58
      %s59 = sphi 0, %s56
      %s60 = sphi 0, %s59
      %s76 = sphi 0, %s60
      %s80 = sphi 0, %s80
      %s82 = sphi 0, %s80
      %s83 = sphi 0, %s82
      %s97 = sphi 0, %s83
      %s101 = sphi 0, %s101
      %s103 = sphi 0, %s101
      %s104 = sphi 0, %s103
      %s118 = sphi 0, %s104
      %s122 = sphi 0, %s122
      %s124 = sphi 0, %s122
      %s125 = sphi 0, %s124
      %s139 = sphi 0, %s125
      %s143 = sphi 0, %s143
      %s145 = sphi 0, %s143
      %s146 = sphi 0, %s145
      %s160 = sphi 0, %s146
      %s164 = sphi 0, %s164
      %s166 = sphi 0, %s164
      %s167 = sphi 0, %s166
      %s181 = sphi 0, %s167
      %s185 = sphi 0, %s185
      %s187 = sphi 0, %s185
      %s188 = sphi 0, %s187
      %s202 = sphi 0, %s188
      %s206 = sphi 0, %s206
      %s208 = sphi 0, %s206
      %s209 = sphi 0, %s208
      %s223 = sphi 0, %s209
      %s229 = sphi 0, %s231
      %s232 = sphi 0, %s229
      %s233 = sphi 0, %s232
      %s249 = sphi 0, %s233
    $region4: #{resnet_block_forward.1} parent=1 // loop_header_branch
      %23 = sbr.rel (%p21) target = $region8
    $region5: #{resnet_block_forward.1} parent=1 // loop_body
      %s25 = ssub.s32 %s20, 1
      %s26 = ssub.s32 %s20, 2
      %s27 = sadd.s32 %s20, 1
      %s28 = ssub.s32 %s20, %s27
      %p29 = scmp.eq.s32.totalorder %s28, 0
      %s31 = sadd.s32 %s30, 1
      %s32 = scalar_select %p29, %s30, %s31
      %p35 = pneg %p29
      %p36 = scmp.eq.s32.totalorder %s20, 1
      %p37 = por %p35, %p36
      %p38 = scmp.ne.s32.totalorder %s30, %s33
      %p39 = scmp.eq.s32.totalorder %s20, 0
      %p40 = por %p38, %p39
      %p41 = scmp.ne.s32.totalorder %s30, %s33
      %p42 = scmp.eq.s32.totalorder %s25, 1
      %p43 = por %p41, %p42
      %p44 = scmp.ne.s32.totalorder %s33, %s34
      %p45 = scmp.eq.s32.totalorder %s25, 0
      %p46 = por %p44, %p45
      %p47 = scmp.ne.s32.totalorder %s33, %s34
      %p48 = scmp.eq.s32.totalorder %s26, 1
      %p49 = por %p47, %p48
      %p51 = scmp.ne.s32.totalorder %s34, %s50
      %p52 = scmp.eq.s32.totalorder %s26, 0
      %p53 = por %p51, %p52
      %s54 = ssub.s32 %s20, %s27
      %p55 = scmp.eq.s32.totalorder %s54, 0
      %s57 = sadd.s32 %s56, 1
      %s58 = scalar_select %p55, %s56, %s57
      %p61 = pneg %p55
      %p62 = scmp.eq.s32.totalorder %s20, 1
      %p63 = por %p61, %p62
      %p64 = scmp.ne.s32.totalorder %s56, %s59
      %p65 = scmp.eq.s32.totalorder %s20, 0
      %p66 = por %p64, %p65
      %p67 = scmp.ne.s32.totalorder %s56, %s59
      %p68 = scmp.eq.s32.totalorder %s25, 1
      %p69 = por %p67, %p68
      %p70 = scmp.ne.s32.totalorder %s59, %s60
      %p71 = scmp.eq.s32.totalorder %s25, 0
      %p72 = por %p70, %p71
      %p73 = scmp.ne.s32.totalorder %s59, %s60
      %p74 = scmp.eq.s32.totalorder %s26, 1
      %p75 = por %p73, %p74
      %p77 = scmp.ne.s32.totalorder %s60, %s76
      %p78 = scmp.eq.s32.totalorder %s26, 0
      %p79 = por %p77, %p78
      %s81 = sadd.s32 %s80, 1
      %p84 = scmp.eq.s32.totalorder %s20, 1
      %p85 = scmp.ne.s32.totalorder %s80, %s82
      %p86 = scmp.eq.s32.totalorder %s20, 0
      %p87 = por %p85, %p86
      %p88 = scmp.ne.s32.totalorder %s80, %s82
      %p89 = scmp.eq.s32.totalorder %s25, 1
      %p90 = por %p88, %p89
      %p91 = scmp.ne.s32.totalorder %s82, %s83
      %p92 = scmp.eq.s32.totalorder %s25, 0
      %p93 = por %p91, %p92
      %p94 = scmp.ne.s32.totalorder %s82, %s83
      %p95 = scmp.eq.s32.totalorder %s26, 1
      %p96 = por %p94, %p95
      %p98 = scmp.ne.s32.totalorder %s83, %s97
      %p99 = scmp.eq.s32.totalorder %s26, 0
      %p100 = por %p98, %p99
      %s102 = sadd.s32 %s101, 1
      %p105 = scmp.eq.s32.totalorder %s20, 1
      %p106 = scmp.ne.s32.totalorder %s101, %s103
      %p107 = scmp.eq.s32.totalorder %s20, 0
      %p108 = por %p106, %p107
      %p109 = scmp.ne.s32.totalorder %s101, %s103
      %p110 = scmp.eq.s32.totalorder %s25, 1
      %p111 = por %p109, %p110
      %p112 = scmp.ne.s32.totalorder %s103, %s104
      %p113 = scmp.eq.s32.totalorder %s25, 0
      %p114 = por %p112, %p113
      %p115 = scmp.ne.s32.totalorder %s103, %s104
      %p116 = scmp.eq.s32.totalorder %s26, 1
      %p117 = por %p115, %p116
      %p119 = scmp.ne.s32.totalorder %s104, %s118
      %p120 = scmp.eq.s32.totalorder %s26, 0
      %p121 = por %p119, %p120
      %s123 = sadd.s32 %s122, 1
      %p126 = scmp.eq.s32.totalorder %s20, 1
      %p127 = scmp.ne.s32.totalorder %s122, %s124
      %p128 = scmp.eq.s32.totalorder %s20, 0
      %p129 = por %p127, %p128
      %p130 = scmp.ne.s32.totalorder %s122, %s124
      %p131 = scmp.eq.s32.totalorder %s25, 1
      %p132 = por %p130, %p131
      %p133 = scmp.ne.s32.totalorder %s124, %s125
      %p134 = scmp.eq.s32.totalorder %s25, 0
      %p135 = por %p133, %p134
      %p136 = scmp.ne.s32.totalorder %s124, %s125
      %p137 = scmp.eq.s32.totalorder %s26, 1
      %p138 = por %p136, %p137
      %p140 = scmp.ne.s32.totalorder %s125, %s139
      %p141 = scmp.eq.s32.totalorder %s26, 0
      %p142 = por %p140, %p141
      %s144 = sadd.s32 %s143, 1
      %p147 = scmp.eq.s32.totalorder %s20, 1
      %p148 = scmp.ne.s32.totalorder %s143, %s145
      %p149 = scmp.eq.s32.totalorder %s20, 0
      %p150 = por %p148, %p149
      %p151 = scmp.ne.s32.totalorder %s143, %s145
      %p152 = scmp.eq.s32.totalorder %s25, 1
      %p153 = por %p151, %p152
      %p154 = scmp.ne.s32.totalorder %s145, %s146
      %p155 = scmp.eq.s32.totalorder %s25, 0
      %p156 = por %p154, %p155
      %p157 = scmp.ne.s32.totalorder %s145, %s146
      %p158 = scmp.eq.s32.totalorder %s26, 1
      %p159 = por %p157, %p158
      %p161 = scmp.ne.s32.totalorder %s146, %s160
      %p162 = scmp.eq.s32.totalorder %s26, 0
      %p163 = por %p161, %p162
      %s165 = sadd.s32 %s164, 1
      %p168 = scmp.eq.s32.totalorder %s20, 1
      %p169 = scmp.ne.s32.totalorder %s164, %s166
      %p170 = scmp.eq.s32.totalorder %s20, 0
      %p171 = por %p169, %p170
      %p172 = scmp.ne.s32.totalorder %s164, %s166
      %p173 = scmp.eq.s32.totalorder %s25, 1
      %p174 = por %p172, %p173
      %p175 = scmp.ne.s32.totalorder %s166, %s167
      %p176 = scmp.eq.s32.totalorder %s25, 0
      %p177 = por %p175, %p176
      %p178 = scmp.ne.s32.totalorder %s166, %s167
      %p179 = scmp.eq.s32.totalorder %s26, 1
      %p180 = por %p178, %p179
      %p182 = scmp.ne.s32.totalorder %s167, %s181
      %p183 = scmp.eq.s32.totalorder %s26, 0
      %p184 = por %p182, %p183
      %s186 = sadd.s32 %s185, 1
      %p189 = scmp.eq.s32.totalorder %s20, 1
      %p190 = scmp.ne.s32.totalorder %s185, %s187
      %p191 = scmp.eq.s32.totalorder %s20, 0
      %p192 = por %p190, %p191
      %p193 = scmp.ne.s32.totalorder %s185, %s187
      %p194 = scmp.eq.s32.totalorder %s25, 1
      %p195 = por %p193, %p194
      %p196 = scmp.ne.s32.totalorder %s187, %s188
      %p197 = scmp.eq.s32.totalorder %s25, 0
      %p198 = por %p196, %p197
      %p199 = scmp.ne.s32.totalorder %s187, %s188
      %p200 = scmp.eq.s32.totalorder %s26, 1
      %p201 = por %p199, %p200
      %p203 = scmp.ne.s32.totalorder %s188, %s202
      %p204 = scmp.eq.s32.totalorder %s26, 0
      %p205 = por %p203, %p204
      %s207 = sadd.s32 %s206, 1
      %p210 = scmp.eq.s32.totalorder %s20, 1
      %p211 = scmp.ne.s32.totalorder %s206, %s208
      %p212 = scmp.eq.s32.totalorder %s20, 0
      %p213 = por %p211, %p212
      %p214 = scmp.ne.s32.totalorder %s206, %s208
      %p215 = scmp.eq.s32.totalorder %s25, 1
      %p216 = por %p214, %p215
      %p217 = scmp.ne.s32.totalorder %s208, %s209
      %p218 = scmp.eq.s32.totalorder %s25, 0
      %p219 = por %p217, %p218
      %p220 = scmp.ne.s32.totalorder %s208, %s209
      %p221 = scmp.eq.s32.totalorder %s26, 1
      %p222 = por %p220, %p221
      %p224 = scmp.ne.s32.totalorder %s209, %s223
      %p225 = scmp.eq.s32.totalorder %s26, 0
      %p226 = por %p224, %p225
      %s227 = ssub.s32 %s20, %s27
      %p228 = scmp.eq.s32.totalorder %s227, 0
      %s230 = sadd.s32 %s229, 1
      %s231 = scalar_select %p228, %s229, %s230
      %p234 = pneg %p228
      %p235 = scmp.eq.s32.totalorder %s20, 1
      %p236 = por %p234, %p235
      %p237 = scmp.ne.s32.totalorder %s229, %s232
      %p238 = scmp.eq.s32.totalorder %s20, 0
      %p239 = por %p237, %p238
      %p240 = scmp.ne.s32.totalorder %s229, %s232
      %p241 = scmp.eq.s32.totalorder %s25, 1
      %p242 = por %p240, %p241
      %p243 = scmp.ne.s32.totalorder %s232, %s233
      %p244 = scmp.eq.s32.totalorder %s25, 0
      %p245 = por %p243, %p244
      %p246 = scmp.ne.s32.totalorder %s232, %s233
      %p247 = scmp.eq.s32.totalorder %s26, 1
      %p248 = por %p246, %p247
      %p250 = scmp.ne.s32.totalorder %s233, %s249
      %p251 = scmp.eq.s32.totalorder %s26, 0
      %p252 = por %p250, %p251
      %p253 = scmp.le.s32.totalorder 1, %s20
      %p254 = scmp.lt.s32.totalorder %s20, 3
      %p255 = pnand %p253, %p254
      %p256 = pneg %p255
      // Predicated region
      $region9: #{resnet_block_forward.1} parent=5 // pred_check
        _
      $region10: #{resnet_block_forward.1} parent=5 // pred_check_branch
        %258 = sbr.rel (%p255) target = $region12
      $region11: #{resnet_block_forward.1} parent=5 // pred_region
        %s259 = ssub.s32 %s20, 1
        // Predicated region
        $region13: #{resnet_block_forward.1} parent=11 // pred_check
          %p260 = pneg %p93
        $region14: #{resnet_block_forward.1} parent=11 // pred_check_branch
          %262 = sbr.rel (%p260) target = $region16
        $region15: #{resnet_block_forward.1} parent=11 // pred_region
          %s264 = ssub.s32 24576, 24576
          %265 = vsyncadd [#allocation4], %s264
          %s266 = sshll.u32 [#allocation3], 4
          %s267 = int_to_ptr.vmem [resolvable:$true] %s266
          %272 = dma.hbm_to_vmem [thread:$0]  %s2, 24576, %s267, [#allocation4], 192, 192, 12
        $region16: #{resnet_block_forward.1} parent=11 // pred_fallthru
          _
        // Predicated region
        $region17: #{resnet_block_forward.1} parent=11 // pred_check
          %p273 = pneg %p114
        $region18: #{resnet_block_forward.1} parent=11 // pred_check_branch
          %275 = sbr.rel (%p273) target = $region20
        $region19: #{resnet_block_forward.1} parent=11 // pred_region
          _
        $region20: #{resnet_block_forward.1} parent=11 // pred_fallthru
          _
        // Predicated region
        $region21: #{resnet_block_forward.1} parent=11 // pred_check
          %p276 = pneg %p135
        $region22: #{resnet_block_forward.1} parent=11 // pred_check_branch
          %278 = sbr.rel (%p276) target = $region24
        $region23: #{resnet_block_forward.1} parent=11 // pred_region
          %s280 = ssub.s32 18432, 18432
          %281 = vsyncadd [#allocation7], %s280
          %s282 = sshll.u32 [#allocation6], 4
          %s283 = int_to_ptr.vmem [resolvable:$true] %s282
          %288 = dma.hbm_to_vmem [thread:$0]  %s4, 18432, %s283, [#allocation7], 64, 64, 4
        $region24: #{resnet_block_forward.1} parent=11 // pred_fallthru
          _
        // Predicated region
        $region25: #{resnet_block_forward.1} parent=11 // pred_check
          %p289 = pneg %p156
        $region26: #{resnet_block_forward.1} parent=11 // pred_check_branch
          %291 = sbr.rel (%p289) target = $region28
        $region27: #{resnet_block_forward.1} parent=11 // pred_region
          _
        $region28: #{resnet_block_forward.1} parent=11 // pred_fallthru
          _
        // Predicated region
        $region29: #{resnet_block_forward.1} parent=11 // pred_check
          %p292 = pneg %p177
        $region30: #{resnet_block_forward.1} parent=11 // pred_check_branch
          %294 = sbr.rel (%p292) target = $region32
        $region31: #{resnet_block_forward.1} parent=11 // pred_region
          _
        $region32: #{resnet_block_forward.1} parent=11 // pred_fallthru
          _
        // Predicated region
        $region33: #{resnet_block_forward.1} parent=11 // pred_check
          %p295 = pneg %p198
        $region34: #{resnet_block_forward.1} parent=11 // pred_check_branch
          %297 = sbr.rel (%p295) target = $region36
        $region35: #{resnet_block_forward.1} parent=11 // pred_region
          _
        $region36: #{resnet_block_forward.1} parent=11 // pred_fallthru
          _
        // Predicated region
        $region37: #{resnet_block_forward.1} parent=11 // pred_check
          %p298 = pneg %p219
        $region38: #{resnet_block_forward.1} parent=11 // pred_check_branch
          %300 = sbr.rel (%p298) target = $region40
        $region39: #{resnet_block_forward.1} parent=11 // pred_region
          _
        $region40: #{resnet_block_forward.1} parent=11 // pred_fallthru
          _
      $region12: #{resnet_block_forward.1} parent=5 // pred_fallthru
        _
      %p301 = scmp.lt.s32.totalorder %s20, 2
      // Predicated region
      $region41: #{resnet_block_forward.1} parent=5 // pred_check
        %p302 = pneg %p301
      $region42: #{resnet_block_forward.1} parent=5 // pred_check_branch
        %304 = sbr.rel (%p302) target = $region44
      $region43: #{resnet_block_forward.1} parent=5 // pred_region
        // Predicated region
        $region45: #{resnet_block_forward.1} parent=43 // pred_check
          %p305 = pneg %p40
        $region46: #{resnet_block_forward.1} parent=43 // pred_check_branch
          %307 = sbr.rel (%p305) target = $region48
        $region47: #{resnet_block_forward.1} parent=43 // pred_region
          %p308 = scmp.lt.s32.totalorder %s20, 1
          %s309 = scalar_select %p308, %s20, 1
          %s310 = smul.addr %s309, 40
          %s311 = smul.addr %s310, 4
          %s312 = scalar_lea.vmem %s0, %s311
        $region48: #{resnet_block_forward.1} parent=43 // pred_fallthru
          _
        // Predicated region
        $region49: #{resnet_block_forward.1} parent=43 // pred_check
          %p313 = pneg %p66
        $region50: #{resnet_block_forward.1} parent=43 // pred_check_branch
          %315 = sbr.rel (%p313) target = $region52
        $region51: #{resnet_block_forward.1} parent=43 // pred_region
          %p316 = scmp.lt.s32.totalorder %s20, 1
          %s317 = scalar_select %p316, %s20, 1
          %s318 = smul.addr %s317, 8
          %s319 = scalar_lea.vmem %s1, %s318
        $region52: #{resnet_block_forward.1} parent=43 // pred_fallthru
          _
      $region44: #{resnet_block_forward.1} parent=5 // pred_fallthru
        _
      %p320 = scmp.le.s32.totalorder 1, %s20
      %p321 = scmp.lt.s32.totalorder %s20, 3
      %p322 = pnand %p320, %p321
      %p323 = pneg %p322
      // Predicated region
      $region53: #{resnet_block_forward.1} parent=5 // pred_check
        _
      $region54: #{resnet_block_forward.1} parent=5 // pred_check_branch
        %325 = sbr.rel (%p322) target = $region56
      $region55: #{resnet_block_forward.1} parent=5 // pred_region
        %s326 = ssub.s32 %s20, 1
        // Predicated region
        $region57: #{resnet_block_forward.1} parent=55 // pred_check
          %p327 = pneg %p93
        $region58: #{resnet_block_forward.1} parent=55 // pred_check_branch
          %329 = sbr.rel (%p327) target = $region60
        $region59: #{resnet_block_forward.1} parent=55 // pred_region
          %330 = dma.done [#allocation4], 24576
        $region60: #{resnet_block_forward.1} parent=55 // pred_fallthru
          _
        // Predicated region
        $region61: #{resnet_block_forward.1} parent=55 // pred_check
          %p331 = pneg %p135
        $region62: #{resnet_block_forward.1} parent=55 // pred_check_branch
          %333 = sbr.rel (%p331) target = $region64
        $region63: #{resnet_block_forward.1} parent=55 // pred_region
          %334 = dma.done [#allocation7], 18432
        $region64: #{resnet_block_forward.1} parent=55 // pred_fallthru
          _
        %p335 = scmp.lt.s32.totalorder %s25, 1
        %s336 = scalar_select %p335, %s25, 1
        %s337 = smul.addr %s336, 40
        %s338 = smul.addr %s337, 4
        %s339 = scalar_lea.vmem %s0, %s338
        %p340 = pneg %p46
        %p341 = pneg %p43
        %p342 = scmp.lt.s32.totalorder %s25, 1
        %s343 = scalar_select %p342, %s25, 1
        %s344 = smul.addr %s343, 8
        %s345 = scalar_lea.vmem %s1, %s344
        %p346 = pneg %p72
        %p347 = pneg %p69
        %p348 = pneg %p93
        %p349 = pneg %p90
        %p350 = pneg %p114
        %p351 = pneg %p111
        %p352 = pneg %p135
        %p353 = pneg %p132
        %p354 = pneg %p156
        %p355 = pneg %p153
        %p356 = pneg %p177
        %p357 = pneg %p174
        %p358 = pneg %p198
        %p359 = pneg %p195
        %p360 = pneg %p219
        %p361 = pneg %p216
        %p362 = pneg %p245
        %p363 = pneg %p242
        %s364 = sand.u32 %s232, 1
        %s365 = scalar_lea.sflag [#allocation5], %s364
        %s366 = sand.u32 %s232, 1
        %s367 = smul.addr %s366, 64
        %s368 = scalar_lea.vmem [#allocation8], %s367
        %p369 = scmp.lt.s32.totalorder %s25, 1
        %s370 = scalar_select %p369, %s25, 1
        %s371 = smul.addr %s370, 40
        %s372 = smul.addr %s371, 4
        %s373 = scalar_lea.vmem %s0, %s372
        %p374 = scmp.lt.s32.totalorder %s25, 1
        %s375 = scalar_select %p374, %s25, 1
        %s376 = smul.addr %s375, 8
        %s377 = scalar_lea.vmem %s1, %s376
        %v379 = vld [vmem:[%s377] sm:$0xff]
        %v380 = vld [vmem:[#allocation3] sm:$0xff]
        %v381 = vld [vmem:[#allocation3 + $0x8] sm:$0xf]
        %v382 = vld [vmem:[#allocation3 + $0xc] sm:$0xff]
        %v383 = vld [vmem:[#allocation3 + $0x14] sm:$0xf]
        %v384 = vld [vmem:[#allocation3 + $0x18] sm:$0xff]
        %v385 = vld [vmem:[#allocation3 + $0x20] sm:$0xf]
        %v386 = vld [vmem:[#allocation3 + $0x24] sm:$0xff]
        %v387 = vld [vmem:[#allocation3 + $0x2c] sm:$0xf]
        %v388 = vld [vmem:[#allocation3 + $0x30] sm:$0xff]
        %v389 = vld [vmem:[#allocation3 + $0x38] sm:$0xf]
        %v390 = vld [vmem:[#allocation3 + $0x3c] sm:$0xff]
        %v391 = vld [vmem:[#allocation3 + $0x44] sm:$0xf]
        %v392 = vld [vmem:[#allocation3 + $0x48] sm:$0xff]
        %v393 = vld [vmem:[#allocation3 + $0x50] sm:$0xf]
        %v394 = vld [vmem:[#allocation3 + $0x54] sm:$0xff]
        %v395 = vld [vmem:[#allocation3 + $0x5c] sm:$0xf]
        %v396 = vld [vmem:[#allocation3 + $0x60] sm:$0xff]
        %v397 = vld [vmem:[#allocation3 + $0x68] sm:$0xf]
        %v398 = vld [vmem:[#allocation3 + $0x6c] sm:$0xff]
        %v399 = vld [vmem:[#allocation3 + $0x74] sm:$0xf]
        %v400 = vld [vmem:[#allocation3 + $0x78] sm:$0xff]
        %v401 = vld [vmem:[#allocation3 + $0x80] sm:$0xf]
        %v402 = vld [vmem:[#allocation3 + $0x84] sm:$0xff]
        %v403 = vld [vmem:[#allocation3 + $0x8c] sm:$0xf]
        %v404 = vld [vmem:[#allocation3 + $0x90] sm:$0xff]
        %v405 = vld [vmem:[#allocation3 + $0x98] sm:$0xf]
        %v406 = vld [vmem:[#allocation3 + $0x9c] sm:$0xff]
        %v407 = vld [vmem:[#allocation3 + $0xa4] sm:$0xf]
        %v408 = vld [vmem:[#allocation3 + $0xa8] sm:$0xff]
        %v409 = vld [vmem:[#allocation3 + $0xb0] sm:$0xf]
        %v410 = vld [vmem:[#allocation3 + $0xb4] sm:$0xff]
        %v411 = vld [vmem:[#allocation3 + $0xbc] sm:$0xf]
        %v412 = vld [vmem:[#allocation3 + $0xc0] sm:$0xff]
        %v413 = vld [vmem:[#allocation3 + $0xc8] sm:$0xf]
        %v414 = vld [vmem:[#allocation3 + $0xcc] sm:$0xff]
        %v415 = vld [vmem:[#allocation3 + $0xd4] sm:$0xf]
        %v416 = vld [vmem:[#allocation3 + $0xd8] sm:$0xff]
        %v417 = vld [vmem:[#allocation3 + $0xe0] sm:$0xf]
        %v418 = vld [vmem:[#allocation3 + $0xe4] sm:$0xff]
        %v419 = vld [vmem:[#allocation3 + $0xec] sm:$0xf]
        %v420 = vld [vmem:[#allocation3 + $0xf0] sm:$0xff]
        %v421 = vld [vmem:[#allocation3 + $0xf8] sm:$0xf]
        %v422 = vld [vmem:[#allocation3 + $0xfc] sm:$0xff]
        %v423 = vld [vmem:[#allocation3 + $0x104] sm:$0xf]
        %v424 = vld [vmem:[#allocation3 + $0x108] sm:$0xff]
        %v425 = vld [vmem:[#allocation3 + $0x110] sm:$0xf]
        %v426 = vld [vmem:[#allocation3 + $0x114] sm:$0xff]
        %v427 = vld [vmem:[#allocation3 + $0x11c] sm:$0xf]
        %v428 = vld [vmem:[#allocation3 + $0x120] sm:$0xff]
        %v429 = vld [vmem:[#allocation3 + $0x128] sm:$0xf]
        %v430 = vld [vmem:[#allocation3 + $0x12c] sm:$0xff]
        %v431 = vld [vmem:[#allocation3 + $0x134] sm:$0xf]
        %v432 = vld [vmem:[#allocation3 + $0x138] sm:$0xff]
        %v433 = vld [vmem:[#allocation3 + $0x140] sm:$0xf]
        %v434 = vld [vmem:[#allocation3 + $0x144] sm:$0xff]
        %v435 = vld [vmem:[#allocation3 + $0x14c] sm:$0xf]
        %v436 = vld [vmem:[#allocation3 + $0x150] sm:$0xff]
        %v437 = vld [vmem:[#allocation3 + $0x158] sm:$0xf]
        %v438 = vld [vmem:[#allocation3 + $0x15c] sm:$0xff]
        %v439 = vld [vmem:[#allocation3 + $0x164] sm:$0xf]
        %v440 = vld [vmem:[#allocation3 + $0x168] sm:$0xff]
        %v441 = vld [vmem:[#allocation3 + $0x170] sm:$0xf]
        %v442 = vld [vmem:[#allocation3 + $0x174] sm:$0xff]
        %v443 = vld [vmem:[#allocation3 + $0x17c] sm:$0xf]
        %v444 = vld [vmem:[#allocation3 + $0x180] sm:$0xff]
        %v445 = vld [vmem:[#allocation3 + $0x188] sm:$0xf]
        %v446 = vld [vmem:[#allocation3 + $0x18c] sm:$0xff]
        %v447 = vld [vmem:[#allocation3 + $0x194] sm:$0xf]
        %v448 = vld [vmem:[#allocation3 + $0x198] sm:$0xff]
        %v449 = vld [vmem:[#allocation3 + $0x1a0] sm:$0xf]
        %v450 = vld [vmem:[#allocation3 + $0x1a4] sm:$0xff]
        %v451 = vld [vmem:[#allocation3 + $0x1ac] sm:$0xf]
        %v452 = vld [vmem:[#allocation3 + $0x1b0] sm:$0xff]
        %v453 = vld [vmem:[#allocation3 + $0x1b8] sm:$0xf]
        %v454 = vld [vmem:[#allocation3 + $0x1bc] sm:$0xff]
        %v455 = vld [vmem:[#allocation3 + $0x1c4] sm:$0xf]
        %v456 = vld [vmem:[#allocation3 + $0x1c8] sm:$0xff]
        %v457 = vld [vmem:[#allocation3 + $0x1d0] sm:$0xf]
        %v458 = vld [vmem:[#allocation3 + $0x1d4] sm:$0xff]
        %v459 = vld [vmem:[#allocation3 + $0x1dc] sm:$0xf]
        %v460 = vld [vmem:[#allocation3 + $0x1e0] sm:$0xff]
        %v461 = vld [vmem:[#allocation3 + $0x1e8] sm:$0xf]
        %v462 = vld [vmem:[#allocation3 + $0x1ec] sm:$0xff]
        %v463 = vld [vmem:[#allocation3 + $0x1f4] sm:$0xf]
        %v464 = vld [vmem:[#allocation3 + $0x1f8] sm:$0xff]
        %v465 = vld [vmem:[#allocation3 + $0x200] sm:$0xf]
        %v466 = vld [vmem:[#allocation3 + $0x204] sm:$0xff]
        %v467 = vld [vmem:[#allocation3 + $0x20c] sm:$0xf]
        %v468 = vld [vmem:[#allocation3 + $0x210] sm:$0xff]
        %v469 = vld [vmem:[#allocation3 + $0x218] sm:$0xf]
        %v470 = vld [vmem:[#allocation3 + $0x21c] sm:$0xff]
        %v471 = vld [vmem:[#allocation3 + $0x224] sm:$0xf]
        %v472 = vld [vmem:[#allocation3 + $0x228] sm:$0xff]
        %v473 = vld [vmem:[#allocation3 + $0x230] sm:$0xf]
        %v474 = vld [vmem:[#allocation3 + $0x234] sm:$0xff]
        %v475 = vld [vmem:[#allocation3 + $0x23c] sm:$0xf]
        %v476 = vld [vmem:[#allocation3 + $0x240] sm:$0xff]
        %v477 = vld [vmem:[#allocation3 + $0x248] sm:$0xf]
        %v478 = vld [vmem:[#allocation3 + $0x24c] sm:$0xff]
        %v479 = vld [vmem:[#allocation3 + $0x254] sm:$0xf]
        %v480 = vld [vmem:[#allocation3 + $0x258] sm:$0xff]
        %v481 = vld [vmem:[#allocation3 + $0x260] sm:$0xf]
        %v482 = vld [vmem:[#allocation3 + $0x264] sm:$0xff]
        %v483 = vld [vmem:[#allocation3 + $0x26c] sm:$0xf]
        %v484 = vld [vmem:[#allocation3 + $0x270] sm:$0xff]
        %v485 = vld [vmem:[#allocation3 + $0x278] sm:$0xf]
        %v486 = vld [vmem:[#allocation3 + $0x27c] sm:$0xff]
        %v487 = vld [vmem:[#allocation3 + $0x284] sm:$0xf]
        %v488 = vld [vmem:[#allocation3 + $0x288] sm:$0xff]
        %v489 = vld [vmem:[#allocation3 + $0x290] sm:$0xf]
        %v490 = vld [vmem:[#allocation3 + $0x294] sm:$0xff]
        %v491 = vld [vmem:[#allocation3 + $0x29c] sm:$0xf]
        %v492 = vld [vmem:[#allocation3 + $0x2a0] sm:$0xff]
        %v493 = vld [vmem:[#allocation3 + $0x2a8] sm:$0xf]
        %v494 = vld [vmem:[#allocation3 + $0x2ac] sm:$0xff]
        %v495 = vld [vmem:[#allocation3 + $0x2b4] sm:$0xf]
        %v496 = vld [vmem:[#allocation3 + $0x2b8] sm:$0xff]
        %v497 = vld [vmem:[#allocation3 + $0x2c0] sm:$0xf]
        %v498 = vld [vmem:[#allocation3 + $0x2c4] sm:$0xff]
        %v499 = vld [vmem:[#allocation3 + $0x2cc] sm:$0xf]
        %v500 = vld [vmem:[#allocation3 + $0x2d0] sm:$0xff]
        %v501 = vld [vmem:[#allocation3 + $0x2d8] sm:$0xf]
        %v502 = vld [vmem:[#allocation3 + $0x2dc] sm:$0xff]
        %v503 = vld [vmem:[#allocation3 + $0x2e4] sm:$0xf]
        %v504 = vld [vmem:[#allocation3 + $0x2e8] sm:$0xff]
        %v505 = vld [vmem:[#allocation3 + $0x2f0] sm:$0xf]
        %v506 = vld [vmem:[#allocation3 + $0x2f4] sm:$0xff]
        %v507 = vld [vmem:[#allocation3 + $0x2fc] sm:$0xf]
        %v508 = vld [vmem:[#allocation3 + $0x300] sm:$0xff]
        %v509 = vld [vmem:[#allocation3 + $0x308] sm:$0xf]
        %v510 = vld [vmem:[#allocation3 + $0x30c] sm:$0xff]
        %v511 = vld [vmem:[#allocation3 + $0x314] sm:$0xf]
        %v512 = vld [vmem:[#allocation3 + $0x318] sm:$0xff]
        %v513 = vld [vmem:[#allocation3 + $0x320] sm:$0xf]
        %v514 = vld [vmem:[#allocation3 + $0x324] sm:$0xff]
        %v515 = vld [vmem:[#allocation3 + $0x32c] sm:$0xf]
        %v516 = vld [vmem:[#allocation3 + $0x330] sm:$0xff]
        %v517 = vld [vmem:[#allocation3 + $0x338] sm:$0xf]
        %v518 = vld [vmem:[#allocation3 + $0x33c] sm:$0xff]
        %v519 = vld [vmem:[#allocation3 + $0x344] sm:$0xf]
        %v520 = vld [vmem:[#allocation3 + $0x348] sm:$0xff]
        %v521 = vld [vmem:[#allocation3 + $0x350] sm:$0xf]
        %v522 = vld [vmem:[#allocation3 + $0x354] sm:$0xff]
        %v523 = vld [vmem:[#allocation3 + $0x35c] sm:$0xf]
        %v524 = vld [vmem:[#allocation3 + $0x360] sm:$0xff]
        %v525 = vld [vmem:[#allocation3 + $0x368] sm:$0xf]
        %v526 = vld [vmem:[#allocation3 + $0x36c] sm:$0xff]
        %v527 = vld [vmem:[#allocation3 + $0x374] sm:$0xf]
        %v528 = vld [vmem:[#allocation3 + $0x378] sm:$0xff]
        %v529 = vld [vmem:[#allocation3 + $0x380] sm:$0xf]
        %v530 = vld [vmem:[#allocation3 + $0x384] sm:$0xff]
        %v531 = vld [vmem:[#allocation3 + $0x38c] sm:$0xf]
        %v532 = vld [vmem:[#allocation3 + $0x390] sm:$0xff]
        %v533 = vld [vmem:[#allocation3 + $0x398] sm:$0xf]
        %v534 = vld [vmem:[#allocation3 + $0x39c] sm:$0xff]
        %v535 = vld [vmem:[#allocation3 + $0x3a4] sm:$0xf]
        %v536 = vld [vmem:[#allocation3 + $0x3a8] sm:$0xff]
        %v537 = vld [vmem:[#allocation3 + $0x3b0] sm:$0xf]
        %v538 = vld [vmem:[#allocation3 + $0x3b4] sm:$0xff]
        %v539 = vld [vmem:[#allocation3 + $0x3bc] sm:$0xf]
        %v540 = vld [vmem:[#allocation3 + $0x3c0] sm:$0xff]
        %v541 = vld [vmem:[#allocation3 + $0x3c8] sm:$0xf]
        %v542 = vld [vmem:[#allocation3 + $0x3cc] sm:$0xff]
        %v543 = vld [vmem:[#allocation3 + $0x3d4] sm:$0xf]
        %v544 = vld [vmem:[#allocation3 + $0x3d8] sm:$0xff]
        %v545 = vld [vmem:[#allocation3 + $0x3e0] sm:$0xf]
        %v546 = vld [vmem:[#allocation3 + $0x3e4] sm:$0xff]
        %v547 = vld [vmem:[#allocation3 + $0x3ec] sm:$0xf]
        %v548 = vld [vmem:[#allocation3 + $0x3f0] sm:$0xff]
        %v549 = vld [vmem:[#allocation3 + $0x3f8] sm:$0xf]
        %v550 = vld [vmem:[#allocation3 + $0x3fc] sm:$0xff]
        %v551 = vld [vmem:[#allocation3 + $0x404] sm:$0xf]
        %v552 = vld [vmem:[#allocation3 + $0x408] sm:$0xff]
        %v553 = vld [vmem:[#allocation3 + $0x410] sm:$0xf]
        %v554 = vld [vmem:[#allocation3 + $0x414] sm:$0xff]
        %v555 = vld [vmem:[#allocation3 + $0x41c] sm:$0xf]
        %v556 = vld [vmem:[#allocation3 + $0x420] sm:$0xff]
        %v557 = vld [vmem:[#allocation3 + $0x428] sm:$0xf]
        %v558 = vld [vmem:[#allocation3 + $0x42c] sm:$0xff]
        %v559 = vld [vmem:[#allocation3 + $0x434] sm:$0xf]
        %v560 = vld [vmem:[#allocation3 + $0x438] sm:$0xff]
        %v561 = vld [vmem:[#allocation3 + $0x440] sm:$0xf]
        %v562 = vld [vmem:[#allocation3 + $0x444] sm:$0xff]
        %v563 = vld [vmem:[#allocation3 + $0x44c] sm:$0xf]
        %v564 = vld [vmem:[#allocation3 + $0x450] sm:$0xff]
        %v565 = vld [vmem:[#allocation3 + $0x458] sm:$0xf]
        %v566 = vld [vmem:[#allocation3 + $0x45c] sm:$0xff]
        %v567 = vld [vmem:[#allocation3 + $0x464] sm:$0xf]
        %v568 = vld [vmem:[#allocation3 + $0x468] sm:$0xff]
        %v569 = vld [vmem:[#allocation3 + $0x470] sm:$0xf]
        %v570 = vld [vmem:[#allocation3 + $0x474] sm:$0xff]
        %v571 = vld [vmem:[#allocation3 + $0x47c] sm:$0xf]
        %v572 = vld [vmem:[#allocation3 + $0x480] sm:$0xff]
        %v573 = vld [vmem:[#allocation3 + $0x488] sm:$0xf]
        %v574 = vld [vmem:[#allocation3 + $0x48c] sm:$0xff]
        %v575 = vld [vmem:[#allocation3 + $0x494] sm:$0xf]
        %v576 = vld [vmem:[#allocation3 + $0x498] sm:$0xff]
        %v577 = vld [vmem:[#allocation3 + $0x4a0] sm:$0xf]
        %v578 = vld [vmem:[#allocation3 + $0x4a4] sm:$0xff]
        %v579 = vld [vmem:[#allocation3 + $0x4ac] sm:$0xf]
        %v580 = vld [vmem:[#allocation3 + $0x4b0] sm:$0xff]
        %v581 = vld [vmem:[#allocation3 + $0x4b8] sm:$0xf]
        %v582 = vld [vmem:[#allocation3 + $0x4bc] sm:$0xff]
        %v583 = vld [vmem:[#allocation3 + $0x4c4] sm:$0xf]
        %v584 = vld [vmem:[#allocation3 + $0x4c8] sm:$0xff]
        %v585 = vld [vmem:[#allocation3 + $0x4d0] sm:$0xf]
        %v586 = vld [vmem:[#allocation3 + $0x4d4] sm:$0xff]
        %v587 = vld [vmem:[#allocation3 + $0x4dc] sm:$0xf]
        %v588 = vld [vmem:[#allocation3 + $0x4e0] sm:$0xff]
        %v589 = vld [vmem:[#allocation3 + $0x4e8] sm:$0xf]
        %v590 = vld [vmem:[#allocation3 + $0x4ec] sm:$0xff]
        %v591 = vld [vmem:[#allocation3 + $0x4f4] sm:$0xf]
        %v592 = vld [vmem:[#allocation3 + $0x4f8] sm:$0xff]
        %v593 = vld [vmem:[#allocation3 + $0x500] sm:$0xf]
        %v594 = vld [vmem:[#allocation3 + $0x504] sm:$0xff]
        %v595 = vld [vmem:[#allocation3 + $0x50c] sm:$0xf]
        %v596 = vld [vmem:[#allocation3 + $0x510] sm:$0xff]
        %v597 = vld [vmem:[#allocation3 + $0x518] sm:$0xf]
        %v598 = vld [vmem:[#allocation3 + $0x51c] sm:$0xff]
        %v599 = vld [vmem:[#allocation3 + $0x524] sm:$0xf]
        %v600 = vld [vmem:[#allocation3 + $0x528] sm:$0xff]
        %v601 = vld [vmem:[#allocation3 + $0x530] sm:$0xf]
        %v602 = vld [vmem:[#allocation3 + $0x534] sm:$0xff]
        %v603 = vld [vmem:[#allocation3 + $0x53c] sm:$0xf]
        %v604 = vld [vmem:[#allocation3 + $0x540] sm:$0xff]
        %v605 = vld [vmem:[#allocation3 + $0x548] sm:$0xf]
        %v606 = vld [vmem:[#allocation3 + $0x54c] sm:$0xff]
        %v607 = vld [vmem:[#allocation3 + $0x554] sm:$0xf]
        %v608 = vld [vmem:[#allocation3 + $0x558] sm:$0xff]
        %v609 = vld [vmem:[#allocation3 + $0x560] sm:$0xf]
        %v610 = vld [vmem:[#allocation3 + $0x564] sm:$0xff]
        %v611 = vld [vmem:[#allocation3 + $0x56c] sm:$0xf]
        %v612 = vld [vmem:[#allocation3 + $0x570] sm:$0xff]
        %v613 = vld [vmem:[#allocation3 + $0x578] sm:$0xf]
        %v614 = vld [vmem:[#allocation3 + $0x57c] sm:$0xff]
        %v615 = vld [vmem:[#allocation3 + $0x584] sm:$0xf]
        %v616 = vld [vmem:[#allocation3 + $0x588] sm:$0xff]
        %v617 = vld [vmem:[#allocation3 + $0x590] sm:$0xf]
        %v618 = vld [vmem:[#allocation3 + $0x594] sm:$0xff]
        %v619 = vld [vmem:[#allocation3 + $0x59c] sm:$0xf]
        %v620 = vld [vmem:[#allocation3 + $0x5a0] sm:$0xff]
        %v621 = vld [vmem:[#allocation3 + $0x5a8] sm:$0xf]
        %v622 = vld [vmem:[#allocation3 + $0x5ac] sm:$0xff]
        %v623 = vld [vmem:[#allocation3 + $0x5b4] sm:$0xf]
        %v624 = vld [vmem:[#allocation3 + $0x5b8] sm:$0xff]
        %v625 = vld [vmem:[#allocation3 + $0x5c0] sm:$0xf]
        %v626 = vld [vmem:[#allocation3 + $0x5c4] sm:$0xff]
        %v627 = vld [vmem:[#allocation3 + $0x5cc] sm:$0xf]
        %v628 = vld [vmem:[#allocation3 + $0x5d0] sm:$0xff]
        %v629 = vld [vmem:[#allocation3 + $0x5d8] sm:$0xf]
        %v630 = vld [vmem:[#allocation3 + $0x5dc] sm:$0xff]
        %v631 = vld [vmem:[#allocation3 + $0x5e4] sm:$0xf]
        %v632 = vld [vmem:[#allocation3 + $0x5e8] sm:$0xff]
        %v633 = vld [vmem:[#allocation3 + $0x5f0] sm:$0xf]
        %v634 = vld [vmem:[#allocation3 + $0x5f4] sm:$0xff]
        %v635 = vld [vmem:[#allocation3 + $0x5fc] sm:$0xf]
        %v636 = vld [vmem:[%s3] sm:$0x7]
        %v638 = vcombine.high %v379, %v379
        %v640 = vunpack.c.l.s4 1966171168
        %v641 = vunpack.c.0.s8 %v640
        %v642 = vlaneseq
        %v643 = vshrl.u32 %v642, 7
        %v644 = vsub.s32 %v641, %v643
        %v645 = vrot.slane %v379, %v644
        %v647 = vunpack.c.l.s4 1966171168
        %v648 = vunpack.c.0.s8 %v647
        %v649 = vlaneseq
        %v650 = vshrl.u32 %v649, 7
        %v651 = vsub.s32 %v648, %v650
        %v652 = vrot.slane %v638, %v651
        %v653 = vcombine.high %v645, %v645
        %v654 = vcombine.high %v652, %v652
        %v656 = vunpack.c.l.s4 1966171168
        %v657 = vunpack.c.0.s8 %v656
        %v658 = vlaneseq
        %v659 = vshrl.u32 %v658, 7
        %v660 = vsub.s32 %v657, %v659
        %v661 = vrot.slane %v645, %v660
        %v663 = vunpack.c.l.s4 1966171168
        %v664 = vunpack.c.0.s8 %v663
        %v665 = vlaneseq
        %v666 = vshrl.u32 %v665, 7
        %v667 = vsub.s32 %v664, %v666
        %v668 = vrot.slane %v652, %v667
        %v670 = vunpack.c.l.s4 1966171168
        %v671 = vunpack.c.0.s8 %v670
        %v672 = vlaneseq
        %v673 = vshrl.u32 %v672, 7
        %v674 = vsub.s32 %v671, %v673
        %v675 = vrot.slane %v653, %v674
        %v677 = vunpack.c.l.s4 1966171168
        %v678 = vunpack.c.0.s8 %v677
        %v679 = vlaneseq
        %v680 = vshrl.u32 %v679, 7
        %v681 = vsub.s32 %v678, %v680
        %v682 = vrot.slane %v654, %v681
        %v683 = vcombine.high %v661, %v661
        %v684 = vcombine.high %v668, %v668
        %v685 = vcombine.high %v675, %v675
        %v686 = vcombine.high %v682, %v682
        %v951 = vunpack.c.l.b16 %v380
        %v952 = vunpack.c.h.b16 %v380
        %v953 = vunpack.c.l.b16 %v381
        %v954 = vunpack.c.l.b16 %v382
        %v955 = vunpack.c.h.b16 %v382
        %v956 = vunpack.c.l.b16 %v383
        %v957 = vunpack.c.l.b16 %v384
        %v958 = vunpack.c.h.b16 %v384
        %v959 = vunpack.c.l.b16 %v385
        %v960 = vunpack.c.l.b16 %v386
        %v961 = vunpack.c.h.b16 %v386
        %v962 = vunpack.c.l.b16 %v387
        %v963 = vunpack.c.l.b16 %v388
        %v964 = vunpack.c.h.b16 %v388
        %v965 = vunpack.c.l.b16 %v389
        %v966 = vunpack.c.l.b16 %v390
        %v967 = vunpack.c.h.b16 %v390
        %v968 = vunpack.c.l.b16 %v391
        %v969 = vunpack.c.l.b16 %v392
        %v970 = vunpack.c.h.b16 %v392
        %v971 = vunpack.c.l.b16 %v393
        %v972 = vunpack.c.l.b16 %v394
        %v973 = vunpack.c.h.b16 %v394
        %v974 = vunpack.c.l.b16 %v395
        %v975 = vunpack.c.l.b16 %v396
        %v976 = vunpack.c.h.b16 %v396
        %v977 = vunpack.c.l.b16 %v397
        %v978 = vunpack.c.l.b16 %v398
        %v979 = vunpack.c.h.b16 %v398
        %v980 = vunpack.c.l.b16 %v399
        %v981 = vunpack.c.l.b16 %v400
        %v982 = vunpack.c.h.b16 %v400
        %v983 = vunpack.c.l.b16 %v401
        %v984 = vunpack.c.l.b16 %v402
        %v985 = vunpack.c.h.b16 %v402
        %v986 = vunpack.c.l.b16 %v403
        %v987 = vunpack.c.l.b16 %v404
        %v988 = vunpack.c.h.b16 %v404
        %v989 = vunpack.c.l.b16 %v405
        %v990 = vunpack.c.l.b16 %v406
        %v991 = vunpack.c.h.b16 %v406
        %v992 = vunpack.c.l.b16 %v407
        %v993 = vunpack.c.l.b16 %v408
        %v994 = vunpack.c.h.b16 %v408
        %v995 = vunpack.c.l.b16 %v409
        %v996 = vunpack.c.l.b16 %v410
        %v997 = vunpack.c.h.b16 %v410
        %v998 = vunpack.c.l.b16 %v411
        %v999 = vunpack.c.l.b16 %v412
        %v1000 = vunpack.c.h.b16 %v412
        %v1001 = vunpack.c.l.b16 %v413
        %v1002 = vunpack.c.l.b16 %v414
        %v1003 = vunpack.c.h.b16 %v414
        %v1004 = vunpack.c.l.b16 %v415
        %v1005 = vunpack.c.l.b16 %v416
        %v1006 = vunpack.c.h.b16 %v416
        %v1007 = vunpack.c.l.b16 %v417
        %v1008 = vunpack.c.l.b16 %v418
        %v1009 = vunpack.c.h.b16 %v418
        %v1010 = vunpack.c.l.b16 %v419
        %v1011 = vunpack.c.l.b16 %v420
        %v1012 = vunpack.c.h.b16 %v420
        %v1013 = vunpack.c.l.b16 %v421
        %v1014 = vunpack.c.l.b16 %v422
        %v1015 = vunpack.c.h.b16 %v422
        %v1016 = vunpack.c.l.b16 %v423
        %v1017 = vunpack.c.l.b16 %v424
        %v1018 = vunpack.c.h.b16 %v424
        %v1019 = vunpack.c.l.b16 %v425
        %v1020 = vunpack.c.l.b16 %v426
        %v1021 = vunpack.c.h.b16 %v426
        %v1022 = vunpack.c.l.b16 %v427
        %v1023 = vunpack.c.l.b16 %v428
        %v1024 = vunpack.c.h.b16 %v428
        %v1025 = vunpack.c.l.b16 %v429
        %v1026 = vunpack.c.l.b16 %v430
        %v1027 = vunpack.c.h.b16 %v430
        %v1028 = vunpack.c.l.b16 %v431
        %v1029 = vunpack.c.l.b16 %v432
        %v1030 = vunpack.c.h.b16 %v432
        %v1031 = vunpack.c.l.b16 %v433
        %v1032 = vunpack.c.l.b16 %v434
        %v1033 = vunpack.c.h.b16 %v434
        %v1034 = vunpack.c.l.b16 %v435
        %v1035 = vunpack.c.l.b16 %v436
        %v1036 = vunpack.c.h.b16 %v436
        %v1037 = vunpack.c.l.b16 %v437
        %v1038 = vunpack.c.l.b16 %v438
        %v1039 = vunpack.c.h.b16 %v438
        %v1040 = vunpack.c.l.b16 %v439
        %v1041 = vunpack.c.l.b16 %v440
        %v1042 = vunpack.c.h.b16 %v440
        %v1043 = vunpack.c.l.b16 %v441
        %v1044 = vunpack.c.l.b16 %v442
        %v1045 = vunpack.c.h.b16 %v442
        %v1046 = vunpack.c.l.b16 %v443
        %v1047 = vunpack.c.l.b16 %v444
        %v1048 = vunpack.c.h.b16 %v444
        %v1049 = vunpack.c.l.b16 %v445
        %v1050 = vunpack.c.l.b16 %v446
        %v1051 = vunpack.c.h.b16 %v446
        %v1052 = vunpack.c.l.b16 %v447
        %v1053 = vunpack.c.l.b16 %v448
        %v1054 = vunpack.c.h.b16 %v448
        %v1055 = vunpack.c.l.b16 %v449
        %v1056 = vunpack.c.l.b16 %v450
        %v1057 = vunpack.c.h.b16 %v450
        %v1058 = vunpack.c.l.b16 %v451
        %v1059 = vunpack.c.l.b16 %v452
        %v1060 = vunpack.c.h.b16 %v452
        %v1061 = vunpack.c.l.b16 %v453
        %v1062 = vunpack.c.l.b16 %v454
        %v1063 = vunpack.c.h.b16 %v454
        %v1064 = vunpack.c.l.b16 %v455
        %v1065 = vunpack.c.l.b16 %v456
        %v1066 = vunpack.c.h.b16 %v456
        %v1067 = vunpack.c.l.b16 %v457
        %v1068 = vunpack.c.l.b16 %v458
        %v1069 = vunpack.c.h.b16 %v458
        %v1070 = vunpack.c.l.b16 %v459
        %v1071 = vunpack.c.l.b16 %v460
        %v1072 = vunpack.c.h.b16 %v460
        %v1073 = vunpack.c.l.b16 %v461
        %v1074 = vunpack.c.l.b16 %v462
        %v1075 = vunpack.c.h.b16 %v462
        %v1076 = vunpack.c.l.b16 %v463
        %v1077 = vunpack.c.l.b16 %v464
        %v1078 = vunpack.c.h.b16 %v464
        %v1079 = vunpack.c.l.b16 %v465
        %v1080 = vunpack.c.l.b16 %v466
        %v1081 = vunpack.c.h.b16 %v466
        %v1082 = vunpack.c.l.b16 %v467
        %v1083 = vunpack.c.l.b16 %v468
        %v1084 = vunpack.c.h.b16 %v468
        %v1085 = vunpack.c.l.b16 %v469
        %v1086 = vunpack.c.l.b16 %v470
        %v1087 = vunpack.c.h.b16 %v470
        %v1088 = vunpack.c.l.b16 %v471
        %v1089 = vunpack.c.l.b16 %v472
        %v1090 = vunpack.c.h.b16 %v472
        %v1091 = vunpack.c.l.b16 %v473
        %v1092 = vunpack.c.l.b16 %v474
        %v1093 = vunpack.c.h.b16 %v474
        %v1094 = vunpack.c.l.b16 %v475
        %v1095 = vunpack.c.l.b16 %v476
        %v1096 = vunpack.c.h.b16 %v476
        %v1097 = vunpack.c.l.b16 %v477
        %v1098 = vunpack.c.l.b16 %v478
        %v1099 = vunpack.c.h.b16 %v478
        %v1100 = vunpack.c.l.b16 %v479
        %v1101 = vunpack.c.l.b16 %v480
        %v1102 = vunpack.c.h.b16 %v480
        %v1103 = vunpack.c.l.b16 %v481
        %v1104 = vunpack.c.l.b16 %v482
        %v1105 = vunpack.c.h.b16 %v482
        %v1106 = vunpack.c.l.b16 %v483
        %v1107 = vunpack.c.l.b16 %v484
        %v1108 = vunpack.c.h.b16 %v484
        %v1109 = vunpack.c.l.b16 %v485
        %v1110 = vunpack.c.l.b16 %v486
        %v1111 = vunpack.c.h.b16 %v486
        %v1112 = vunpack.c.l.b16 %v487
        %v1113 = vunpack.c.l.b16 %v488
        %v1114 = vunpack.c.h.b16 %v488
        %v1115 = vunpack.c.l.b16 %v489
        %v1116 = vunpack.c.l.b16 %v490
        %v1117 = vunpack.c.h.b16 %v490
        %v1118 = vunpack.c.l.b16 %v491
        %v1119 = vunpack.c.l.b16 %v492
        %v1120 = vunpack.c.h.b16 %v492
        %v1121 = vunpack.c.l.b16 %v493
        %v1122 = vunpack.c.l.b16 %v494
        %v1123 = vunpack.c.h.b16 %v494
        %v1124 = vunpack.c.l.b16 %v495
        %v1125 = vunpack.c.l.b16 %v496
        %v1126 = vunpack.c.h.b16 %v496
        %v1127 = vunpack.c.l.b16 %v497
        %v1128 = vunpack.c.l.b16 %v498
        %v1129 = vunpack.c.h.b16 %v498
        %v1130 = vunpack.c.l.b16 %v499
        %v1131 = vunpack.c.l.b16 %v500
        %v1132 = vunpack.c.h.b16 %v500
        %v1133 = vunpack.c.l.b16 %v501
        %v1134 = vunpack.c.l.b16 %v502
        %v1135 = vunpack.c.h.b16 %v502
        %v1136 = vunpack.c.l.b16 %v503
        %v1137 = vunpack.c.l.b16 %v504
        %v1138 = vunpack.c.h.b16 %v504
        %v1139 = vunpack.c.l.b16 %v505
        %v1140 = vunpack.c.l.b16 %v506
        %v1141 = vunpack.c.h.b16 %v506
        %v1142 = vunpack.c.l.b16 %v507
        %v1143 = vunpack.c.l.b16 %v508
        %v1144 = vunpack.c.h.b16 %v508
        %v1145 = vunpack.c.l.b16 %v509
        %v1146 = vunpack.c.l.b16 %v510
        %v1147 = vunpack.c.h.b16 %v510
        %v1148 = vunpack.c.l.b16 %v511
        %v1149 = vunpack.c.l.b16 %v512
        %v1150 = vunpack.c.h.b16 %v512
        %v1151 = vunpack.c.l.b16 %v513
        %v1152 = vunpack.c.l.b16 %v514
        %v1153 = vunpack.c.h.b16 %v514
        %v1154 = vunpack.c.l.b16 %v515
        %v1155 = vunpack.c.l.b16 %v516
        %v1156 = vunpack.c.h.b16 %v516
        %v1157 = vunpack.c.l.b16 %v517
        %v1158 = vunpack.c.l.b16 %v518
        %v1159 = vunpack.c.h.b16 %v518
        %v1160 = vunpack.c.l.b16 %v519
        %v1161 = vunpack.c.l.b16 %v520
        %v1162 = vunpack.c.h.b16 %v520
        %v1163 = vunpack.c.l.b16 %v521
        %v1164 = vunpack.c.l.b16 %v522
        %v1165 = vunpack.c.h.b16 %v522
        %v1166 = vunpack.c.l.b16 %v523
        %v1167 = vunpack.c.l.b16 %v524
        %v1168 = vunpack.c.h.b16 %v524
        %v1169 = vunpack.c.l.b16 %v525
        %v1170 = vunpack.c.l.b16 %v526
        %v1171 = vunpack.c.h.b16 %v526
        %v1172 = vunpack.c.l.b16 %v527
        %v1173 = vunpack.c.l.b16 %v528
        %v1174 = vunpack.c.h.b16 %v528
        %v1175 = vunpack.c.l.b16 %v529
        %v1176 = vunpack.c.l.b16 %v530
        %v1177 = vunpack.c.h.b16 %v530
        %v1178 = vunpack.c.l.b16 %v531
        %v1179 = vunpack.c.l.b16 %v532
        %v1180 = vunpack.c.h.b16 %v532
        %v1181 = vunpack.c.l.b16 %v533
        %v1182 = vunpack.c.l.b16 %v534
        %v1183 = vunpack.c.h.b16 %v534
        %v1184 = vunpack.c.l.b16 %v535
        %v1185 = vunpack.c.l.b16 %v536
        %v1186 = vunpack.c.h.b16 %v536
        %v1187 = vunpack.c.l.b16 %v537
        %v1188 = vunpack.c.l.b16 %v538
        %v1189 = vunpack.c.h.b16 %v538
        %v1190 = vunpack.c.l.b16 %v539
        %v1191 = vunpack.c.l.b16 %v540
        %v1192 = vunpack.c.h.b16 %v540
        %v1193 = vunpack.c.l.b16 %v541
        %v1194 = vunpack.c.l.b16 %v542
        %v1195 = vunpack.c.h.b16 %v542
        %v1196 = vunpack.c.l.b16 %v543
        %v1197 = vunpack.c.l.b16 %v544
        %v1198 = vunpack.c.h.b16 %v544
        %v1199 = vunpack.c.l.b16 %v545
        %v1200 = vunpack.c.l.b16 %v546
        %v1201 = vunpack.c.h.b16 %v546
        %v1202 = vunpack.c.l.b16 %v547
        %v1203 = vunpack.c.l.b16 %v548
        %v1204 = vunpack.c.h.b16 %v548
        %v1205 = vunpack.c.l.b16 %v549
        %v1206 = vunpack.c.l.b16 %v550
        %v1207 = vunpack.c.h.b16 %v550
        %v1208 = vunpack.c.l.b16 %v551
        %v1209 = vunpack.c.l.b16 %v552
        %v1210 = vunpack.c.h.b16 %v552
        %v1211 = vunpack.c.l.b16 %v553
        %v1212 = vunpack.c.l.b16 %v554
        %v1213 = vunpack.c.h.b16 %v554
        %v1214 = vunpack.c.l.b16 %v555
        %v1215 = vunpack.c.l.b16 %v556
        %v1216 = vunpack.c.h.b16 %v556
        %v1217 = vunpack.c.l.b16 %v557
        %v1218 = vunpack.c.l.b16 %v558
        %v1219 = vunpack.c.h.b16 %v558
        %v1220 = vunpack.c.l.b16 %v559
        %v1221 = vunpack.c.l.b16 %v560
        %v1222 = vunpack.c.h.b16 %v560
        %v1223 = vunpack.c.l.b16 %v561
        %v1224 = vunpack.c.l.b16 %v562
        %v1225 = vunpack.c.h.b16 %v562
        %v1226 = vunpack.c.l.b16 %v563
        %v1227 = vunpack.c.l.b16 %v564
        %v1228 = vunpack.c.h.b16 %v564
        %v1229 = vunpack.c.l.b16 %v565
        %v1230 = vunpack.c.l.b16 %v566
        %v1231 = vunpack.c.h.b16 %v566
        %v1232 = vunpack.c.l.b16 %v567
        %v1233 = vunpack.c.l.b16 %v568
        %v1234 = vunpack.c.h.b16 %v568
        %v1235 = vunpack.c.l.b16 %v569
        %v1236 = vunpack.c.l.b16 %v570
        %v1237 = vunpack.c.h.b16 %v570
        %v1238 = vunpack.c.l.b16 %v571
        %v1239 = vunpack.c.l.b16 %v572
        %v1240 = vunpack.c.h.b16 %v572
        %v1241 = vunpack.c.l.b16 %v573
        %v1242 = vunpack.c.l.b16 %v574
        %v1243 = vunpack.c.h.b16 %v574
        %v1244 = vunpack.c.l.b16 %v575
        %v1245 = vunpack.c.l.b16 %v576
        %v1246 = vunpack.c.h.b16 %v576
        %v1247 = vunpack.c.l.b16 %v577
        %v1248 = vunpack.c.l.b16 %v578
        %v1249 = vunpack.c.h.b16 %v578
        %v1250 = vunpack.c.l.b16 %v579
        %v1251 = vunpack.c.l.b16 %v580
        %v1252 = vunpack.c.h.b16 %v580
        %v1253 = vunpack.c.l.b16 %v581
        %v1254 = vunpack.c.l.b16 %v582
        %v1255 = vunpack.c.h.b16 %v582
        %v1256 = vunpack.c.l.b16 %v583
        %v1257 = vunpack.c.l.b16 %v584
        %v1258 = vunpack.c.h.b16 %v584
        %v1259 = vunpack.c.l.b16 %v585
        %v1260 = vunpack.c.l.b16 %v586
        %v1261 = vunpack.c.h.b16 %v586
        %v1262 = vunpack.c.l.b16 %v587
        %v1263 = vunpack.c.l.b16 %v588
        %v1264 = vunpack.c.h.b16 %v588
        %v1265 = vunpack.c.l.b16 %v589
        %v1266 = vunpack.c.l.b16 %v590
        %v1267 = vunpack.c.h.b16 %v590
        %v1268 = vunpack.c.l.b16 %v591
        %v1269 = vunpack.c.l.b16 %v592
        %v1270 = vunpack.c.h.b16 %v592
        %v1271 = vunpack.c.l.b16 %v593
        %v1272 = vunpack.c.l.b16 %v594
        %v1273 = vunpack.c.h.b16 %v594
        %v1274 = vunpack.c.l.b16 %v595
        %v1275 = vunpack.c.l.b16 %v596
        %v1276 = vunpack.c.h.b16 %v596
        %v1277 = vunpack.c.l.b16 %v597
        %v1278 = vunpack.c.l.b16 %v598
        %v1279 = vunpack.c.h.b16 %v598
        %v1280 = vunpack.c.l.b16 %v599
        %v1281 = vunpack.c.l.b16 %v600
        %v1282 = vunpack.c.h.b16 %v600
        %v1283 = vunpack.c.l.b16 %v601
        %v1284 = vunpack.c.l.b16 %v602
        %v1285 = vunpack.c.h.b16 %v602
        %v1286 = vunpack.c.l.b16 %v603
        %v1287 = vunpack.c.l.b16 %v604
        %v1288 = vunpack.c.h.b16 %v604
        %v1289 = vunpack.c.l.b16 %v605
        %v1290 = vunpack.c.l.b16 %v606
        %v1291 = vunpack.c.h.b16 %v606
        %v1292 = vunpack.c.l.b16 %v607
        %v1293 = vunpack.c.l.b16 %v608
        %v1294 = vunpack.c.h.b16 %v608
        %v1295 = vunpack.c.l.b16 %v609
        %v1296 = vunpack.c.l.b16 %v610
        %v1297 = vunpack.c.h.b16 %v610
        %v1298 = vunpack.c.l.b16 %v611
        %v1299 = vunpack.c.l.b16 %v612
        %v1300 = vunpack.c.h.b16 %v612
        %v1301 = vunpack.c.l.b16 %v613
        %v1302 = vunpack.c.l.b16 %v614
        %v1303 = vunpack.c.h.b16 %v614
        %v1304 = vunpack.c.l.b16 %v615
        %v1305 = vunpack.c.l.b16 %v616
        %v1306 = vunpack.c.h.b16 %v616
        %v1307 = vunpack.c.l.b16 %v617
        %v1308 = vunpack.c.l.b16 %v618
        %v1309 = vunpack.c.h.b16 %v618
        %v1310 = vunpack.c.l.b16 %v619
        %v1311 = vunpack.c.l.b16 %v620
        %v1312 = vunpack.c.h.b16 %v620
        %v1313 = vunpack.c.l.b16 %v621
        %v1314 = vunpack.c.l.b16 %v622
        %v1315 = vunpack.c.h.b16 %v622
        %v1316 = vunpack.c.l.b16 %v623
        %v1317 = vunpack.c.l.b16 %v624
        %v1318 = vunpack.c.h.b16 %v624
        %v1319 = vunpack.c.l.b16 %v625
        %v1320 = vunpack.c.l.b16 %v626
        %v1321 = vunpack.c.h.b16 %v626
        %v1322 = vunpack.c.l.b16 %v627
        %v1323 = vunpack.c.l.b16 %v628
        %v1324 = vunpack.c.h.b16 %v628
        %v1325 = vunpack.c.l.b16 %v629
        %v1326 = vunpack.c.l.b16 %v630
        %v1327 = vunpack.c.h.b16 %v630
        %v1328 = vunpack.c.l.b16 %v631
        %v1329 = vunpack.c.l.b16 %v632
        %v1330 = vunpack.c.h.b16 %v632
        %v1331 = vunpack.c.l.b16 %v633
        %v1332 = vunpack.c.l.b16 %v634
        %v1333 = vunpack.c.h.b16 %v634
        %v1334 = vunpack.c.l.b16 %v635
        %v1335 = vpack.c.b16 %v954, %v951
        %v1336 = vpack.c.b16 %v955, %v952
        %v1337 = vpack.c.b16 %v956, %v953
        %v1338 = vpack.c.b16 %v960, %v957
        %v1339 = vpack.c.b16 %v961, %v958
        %v1340 = vpack.c.b16 %v962, %v959
        %v1341 = vpack.c.b16 %v966, %v963
        %v1342 = vpack.c.b16 %v967, %v964
        %v1343 = vpack.c.b16 %v968, %v965
        %v1344 = vpack.c.b16 %v972, %v969
        %v1345 = vpack.c.b16 %v973, %v970
        %v1346 = vpack.c.b16 %v974, %v971
        %v1347 = vpack.c.b16 %v978, %v975
        %v1348 = vpack.c.b16 %v979, %v976
        %v1349 = vpack.c.b16 %v980, %v977
        %v1350 = vpack.c.b16 %v984, %v981
        %v1351 = vpack.c.b16 %v985, %v982
        %v1352 = vpack.c.b16 %v986, %v983
        %v1353 = vpack.c.b16 %v990, %v987
        %v1354 = vpack.c.b16 %v991, %v988
        %v1355 = vpack.c.b16 %v992, %v989
        %v1356 = vpack.c.b16 %v996, %v993
        %v1357 = vpack.c.b16 %v997, %v994
        %v1358 = vpack.c.b16 %v998, %v995
        %v1359 = vpack.c.b16 %v1002, %v999
        %v1360 = vpack.c.b16 %v1003, %v1000
        %v1361 = vpack.c.b16 %v1004, %v1001
        %v1362 = vpack.c.b16 %v1008, %v1005
        %v1363 = vpack.c.b16 %v1009, %v1006
        %v1364 = vpack.c.b16 %v1010, %v1007
        %v1365 = vpack.c.b16 %v1014, %v1011
        %v1366 = vpack.c.b16 %v1015, %v1012
        %v1367 = vpack.c.b16 %v1016, %v1013
        %v1368 = vpack.c.b16 %v1020, %v1017
        %v1369 = vpack.c.b16 %v1021, %v1018
        %v1370 = vpack.c.b16 %v1022, %v1019
        %v1371 = vpack.c.b16 %v1026, %v1023
        %v1372 = vpack.c.b16 %v1027, %v1024
        %v1373 = vpack.c.b16 %v1028, %v1025
        %v1374 = vpack.c.b16 %v1032, %v1029
        %v1375 = vpack.c.b16 %v1033, %v1030
        %v1376 = vpack.c.b16 %v1034, %v1031
        %v1377 = vpack.c.b16 %v1038, %v1035
        %v1378 = vpack.c.b16 %v1039, %v1036
        %v1379 = vpack.c.b16 %v1040, %v1037
        %v1380 = vpack.c.b16 %v1044, %v1041
        %v1381 = vpack.c.b16 %v1045, %v1042
        %v1382 = vpack.c.b16 %v1046, %v1043
        %v1383 = vpack.c.b16 %v1050, %v1047
        %v1384 = vpack.c.b16 %v1051, %v1048
        %v1385 = vpack.c.b16 %v1052, %v1049
        %v1386 = vpack.c.b16 %v1056, %v1053
        %v1387 = vpack.c.b16 %v1057, %v1054
        %v1388 = vpack.c.b16 %v1058, %v1055
        %v1389 = vpack.c.b16 %v1062, %v1059
        %v1390 = vpack.c.b16 %v1063, %v1060
        %v1391 = vpack.c.b16 %v1064, %v1061
        %v1392 = vpack.c.b16 %v1068, %v1065
        %v1393 = vpack.c.b16 %v1069, %v1066
        %v1394 = vpack.c.b16 %v1070, %v1067
        %v1395 = vpack.c.b16 %v1074, %v1071
        %v1396 = vpack.c.b16 %v1075, %v1072
        %v1397 = vpack.c.b16 %v1076, %v1073
        %v1398 = vpack.c.b16 %v1080, %v1077
        %v1399 = vpack.c.b16 %v1081, %v1078
        %v1400 = vpack.c.b16 %v1082, %v1079
        %v1401 = vpack.c.b16 %v1086, %v1083
        %v1402 = vpack.c.b16 %v1087, %v1084
        %v1403 = vpack.c.b16 %v1088, %v1085
        %v1404 = vpack.c.b16 %v1092, %v1089
        %v1405 = vpack.c.b16 %v1093, %v1090
        %v1406 = vpack.c.b16 %v1094, %v1091
        %v1407 = vpack.c.b16 %v1098, %v1095
        %v1408 = vpack.c.b16 %v1099, %v1096
        %v1409 = vpack.c.b16 %v1100, %v1097
        %v1410 = vpack.c.b16 %v1104, %v1101
        %v1411 = vpack.c.b16 %v1105, %v1102
        %v1412 = vpack.c.b16 %v1106, %v1103
        %v1413 = vpack.c.b16 %v1110, %v1107
        %v1414 = vpack.c.b16 %v1111, %v1108
        %v1415 = vpack.c.b16 %v1112, %v1109
        %v1416 = vpack.c.b16 %v1116, %v1113
        %v1417 = vpack.c.b16 %v1117, %v1114
        %v1418 = vpack.c.b16 %v1118, %v1115
        %v1419 = vpack.c.b16 %v1122, %v1119
        %v1420 = vpack.c.b16 %v1123, %v1120
        %v1421 = vpack.c.b16 %v1124, %v1121
        %v1422 = vpack.c.b16 %v1128, %v1125
        %v1423 = vpack.c.b16 %v1129, %v1126
        %v1424 = vpack.c.b16 %v1130, %v1127
        %v1425 = vpack.c.b16 %v1134, %v1131
        %v1426 = vpack.c.b16 %v1135, %v1132
        %v1427 = vpack.c.b16 %v1136, %v1133
        %v1428 = vpack.c.b16 %v1140, %v1137
        %v1429 = vpack.c.b16 %v1141, %v1138
        %v1430 = vpack.c.b16 %v1142, %v1139
        %v1431 = vpack.c.b16 %v1146, %v1143
        %v1432 = vpack.c.b16 %v1147, %v1144
        %v1433 = vpack.c.b16 %v1148, %v1145
        %v1434 = vpack.c.b16 %v1152, %v1149
        %v1435 = vpack.c.b16 %v1153, %v1150
        %v1436 = vpack.c.b16 %v1154, %v1151
        %v1437 = vpack.c.b16 %v1158, %v1155
        %v1438 = vpack.c.b16 %v1159, %v1156
        %v1439 = vpack.c.b16 %v1160, %v1157
        %v1440 = vpack.c.b16 %v1164, %v1161
        %v1441 = vpack.c.b16 %v1165, %v1162
        %v1442 = vpack.c.b16 %v1166, %v1163
        %v1443 = vpack.c.b16 %v1170, %v1167
        %v1444 = vpack.c.b16 %v1171, %v1168
        %v1445 = vpack.c.b16 %v1172, %v1169
        %v1446 = vpack.c.b16 %v1176, %v1173
        %v1447 = vpack.c.b16 %v1177, %v1174
        %v1448 = vpack.c.b16 %v1178, %v1175
        %v1449 = vpack.c.b16 %v1182, %v1179
        %v1450 = vpack.c.b16 %v1183, %v1180
        %v1451 = vpack.c.b16 %v1184, %v1181
        %v1452 = vpack.c.b16 %v1188, %v1185
        %v1453 = vpack.c.b16 %v1189, %v1186
        %v1454 = vpack.c.b16 %v1190, %v1187
        %v1455 = vpack.c.b16 %v1194, %v1191
        %v1456 = vpack.c.b16 %v1195, %v1192
        %v1457 = vpack.c.b16 %v1196, %v1193
        %v1458 = vpack.c.b16 %v1200, %v1197
        %v1459 = vpack.c.b16 %v1201, %v1198
        %v1460 = vpack.c.b16 %v1202, %v1199
        %v1461 = vpack.c.b16 %v1206, %v1203
        %v1462 = vpack.c.b16 %v1207, %v1204
        %v1463 = vpack.c.b16 %v1208, %v1205
        %v1464 = vpack.c.b16 %v1212, %v1209
        %v1465 = vpack.c.b16 %v1213, %v1210
        %v1466 = vpack.c.b16 %v1214, %v1211
        %v1467 = vpack.c.b16 %v1218, %v1215
        %v1468 = vpack.c.b16 %v1219, %v1216
        %v1469 = vpack.c.b16 %v1220, %v1217
        %v1470 = vpack.c.b16 %v1224, %v1221
        %v1471 = vpack.c.b16 %v1225, %v1222
        %v1472 = vpack.c.b16 %v1226, %v1223
        %v1473 = vpack.c.b16 %v1230, %v1227
        %v1474 = vpack.c.b16 %v1231, %v1228
        %v1475 = vpack.c.b16 %v1232, %v1229
        %v1476 = vpack.c.b16 %v1236, %v1233
        %v1477 = vpack.c.b16 %v1237, %v1234
        %v1478 = vpack.c.b16 %v1238, %v1235
        %v1479 = vpack.c.b16 %v1242, %v1239
        %v1480 = vpack.c.b16 %v1243, %v1240
        %v1481 = vpack.c.b16 %v1244, %v1241
        %v1482 = vpack.c.b16 %v1248, %v1245
        %v1483 = vpack.c.b16 %v1249, %v1246
        %v1484 = vpack.c.b16 %v1250, %v1247
        %v1485 = vpack.c.b16 %v1254, %v1251
        %v1486 = vpack.c.b16 %v1255, %v1252
        %v1487 = vpack.c.b16 %v1256, %v1253
        %v1488 = vpack.c.b16 %v1260, %v1257
        %v1489 = vpack.c.b16 %v1261, %v1258
        %v1490 = vpack.c.b16 %v1262, %v1259
        %v1491 = vpack.c.b16 %v1266, %v1263
        %v1492 = vpack.c.b16 %v1267, %v1264
        %v1493 = vpack.c.b16 %v1268, %v1265
        %v1494 = vpack.c.b16 %v1272, %v1269
        %v1495 = vpack.c.b16 %v1273, %v1270
        %v1496 = vpack.c.b16 %v1274, %v1271
        %v1497 = vpack.c.b16 %v1278, %v1275
        %v1498 = vpack.c.b16 %v1279, %v1276
        %v1499 = vpack.c.b16 %v1280, %v1277
        %v1500 = vpack.c.b16 %v1284, %v1281
        %v1501 = vpack.c.b16 %v1285, %v1282
        %v1502 = vpack.c.b16 %v1286, %v1283
        %v1503 = vpack.c.b16 %v1290, %v1287
        %v1504 = vpack.c.b16 %v1291, %v1288
        %v1505 = vpack.c.b16 %v1292, %v1289
        %v1506 = vpack.c.b16 %v1296, %v1293
        %v1507 = vpack.c.b16 %v1297, %v1294
        %v1508 = vpack.c.b16 %v1298, %v1295
        %v1509 = vpack.c.b16 %v1302, %v1299
        %v1510 = vpack.c.b16 %v1303, %v1300
        %v1511 = vpack.c.b16 %v1304, %v1301
        %v1512 = vpack.c.b16 %v1308, %v1305
        %v1513 = vpack.c.b16 %v1309, %v1306
        %v1514 = vpack.c.b16 %v1310, %v1307
        %v1515 = vpack.c.b16 %v1314, %v1311
        %v1516 = vpack.c.b16 %v1315, %v1312
        %v1517 = vpack.c.b16 %v1316, %v1313
        %v1518 = vpack.c.b16 %v1320, %v1317
        %v1519 = vpack.c.b16 %v1321, %v1318
        %v1520 = vpack.c.b16 %v1322, %v1319
        %v1521 = vpack.c.b16 %v1326, %v1323
        %v1522 = vpack.c.b16 %v1327, %v1324
        %v1523 = vpack.c.b16 %v1328, %v1325
        %v1524 = vpack.c.b16 %v1332, %v1329
        %v1525 = vpack.c.b16 %v1333, %v1330
        %v1526 = vpack.c.b16 %v1334, %v1331
        %v1720 = vlaneseq
        %v1721 = vshrl.u32 %v1720, 7
        %v1722 = vsub.s32 0, %v1721
        %v1723 = vrot.slane %v636, %v1722
        %v1724 = vlaneseq
        %v1725 = vshrl.u32 %v1724, 7
        %v1726 = vsub.s32 1, %v1725
        %v1727 = vrot.slane %v636, %v1726
        %v1728 = vlaneseq
        %v1729 = vshrl.u32 %v1728, 7
        %v1730 = vsub.s32 2, %v1729
        %v1731 = vrot.slane %v636, %v1730
        %1735 = vmatprep.subr.bf16.mxu0 %v1357
        %1736 = vmatpush1.bf16.msra.mxu0 %v1356
        %1737 = vmatprep.subr.bf16.mxu0 %v1354
        %1738 = vmatpush1.bf16.msra.mxu0 %v1353
        %1739 = vmatprep.subr.bf16.mxu0 %v1351
        %1740 = vmatpush1.bf16.msra.mxu0 %v1350
        %1741 = vmatprep.subr.bf16.mxu0 %v1348
        %1742 = vmatpush1.bf16.msra.mxu0 %v1347
        %1743 = vmatprep.subr.bf16.mxu0 %v1345
        %1744 = vmatpush1.bf16.msra.mxu0 %v1344
        %1745 = vmatprep.subr.bf16.mxu0 %v1342
        %1746 = vmatpush1.bf16.msra.mxu0 %v1341
        %1747 = vmatprep.subr.bf16.mxu0 %v1339
        %1748 = vmatpush1.bf16.msra.mxu0 %v1338
        %1749 = vmatprep.subr.bf16.mxu0 %v1336
        %1750 = vmatpush1.bf16.msra.mxu0 %v1335
        %1751 = vmatprep.subr.bf16.mxu0 %v1381
        %1752 = vmatpush2.bf16.msra.mxu0 %v1380
        %1753 = vmatprep.subr.bf16.mxu0 %v1378
        %1754 = vmatpush2.bf16.msra.mxu0 %v1377
        %1755 = vmatprep.subr.bf16.mxu0 %v1375
        %1756 = vmatpush2.bf16.msra.mxu0 %v1374
        %1757 = vmatprep.subr.bf16.mxu0 %v1372
        %1758 = vmatpush2.bf16.msra.mxu0 %v1371
        %1759 = vmatprep.subr.bf16.mxu0 %v1369
        %1760 = vmatpush2.bf16.msra.mxu0 %v1368
        %1761 = vmatprep.subr.bf16.mxu0 %v1366
        %1762 = vmatpush2.bf16.msra.mxu0 %v1365
        %1763 = vmatprep.subr.bf16.mxu0 %v1363
        %1764 = vmatpush2.bf16.msra.mxu0 %v1362
        %1765 = vmatprep.subr.bf16.mxu0 %v1360
        %1766 = vmatpush2.bf16.msra.mxu0 %v1359
        %1767 = vmatprep.mubr.bf16.mxu0 %v675
        %1768 = vmatmul.mubr.bf16.gmra.mxu0 %v661
        %v1769 = vpop.f32.mrf.mxu0
        %v1770 = vadd.f32 %v1723, %v1769
        %v1771 = vpop.f32.mrf.mxu0
        %v1772 = vadd.f32 %v1727, %v1771
        %v1773 = vpop.f32.mrf.mxu0
        %v1774 = vpop.f32.mrf.mxu0
        %1775 = vdwg.mxu0
        %1776 = vmatprep.subr.bf16.mxu0 %v1405
        %1777 = vmatpush1.bf16.msra.mxu0 %v1404
        %1778 = vmatprep.subr.bf16.mxu0 %v1402
        %1779 = vmatpush1.bf16.msra.mxu0 %v1401
        %1780 = vmatprep.subr.bf16.mxu0 %v1399
        %1781 = vmatpush1.bf16.msra.mxu0 %v1398
        %1782 = vmatprep.subr.bf16.mxu0 %v1396
        %1783 = vmatpush1.bf16.msra.mxu0 %v1395
        %1784 = vmatprep.subr.bf16.mxu0 %v1393
        %1785 = vmatpush1.bf16.msra.mxu0 %v1392
        %1786 = vmatprep.subr.bf16.mxu0 %v1390
        %1787 = vmatpush1.bf16.msra.mxu0 %v1389
        %1788 = vmatprep.subr.bf16.mxu0 %v1387
        %1789 = vmatpush1.bf16.msra.mxu0 %v1386
        %1790 = vmatprep.subr.bf16.mxu0 %v1384
        %1791 = vmatpush1.bf16.msra.mxu0 %v1383
        %1792 = vmatprep.subr.bf16.mxu0 %v1429
        %1793 = vmatpush2.bf16.msra.mxu0 %v1428
        %1794 = vmatprep.subr.bf16.mxu0 %v1426
        %1795 = vmatpush2.bf16.msra.mxu0 %v1425
        %1796 = vmatprep.subr.bf16.mxu0 %v1423
        %1797 = vmatpush2.bf16.msra.mxu0 %v1422
        %1798 = vmatprep.subr.bf16.mxu0 %v1420
        %1799 = vmatpush2.bf16.msra.mxu0 %v1419
        %1800 = vmatprep.subr.bf16.mxu0 %v1417
        %1801 = vmatpush2.bf16.msra.mxu0 %v1416
        %1802 = vmatprep.subr.bf16.mxu0 %v1414
        %1803 = vmatpush2.bf16.msra.mxu0 %v1413
        %1804 = vmatprep.subr.bf16.mxu0 %v1411
        %1805 = vmatpush2.bf16.msra.mxu0 %v1410
        %1806 = vmatprep.subr.bf16.mxu0 %v1408
        %1807 = vmatpush2.bf16.msra.mxu0 %v1407
        %1808 = vmatprep.mubr.bf16.mxu0 %v685
        %1809 = vmatmul.mubr.bf16.gmra.mxu0 %v683
        %v1810 = vpop.f32.mrf.mxu0
        %v1811 = vadd.f32 %v1770, %v1810
        %v1812 = vpop.f32.mrf.mxu0
        %v1813 = vadd.f32 %v1772, %v1812
        %v1814 = vpop.f32.mrf.mxu0
        %v1815 = vpop.f32.mrf.mxu0
        %1816 = vdwg.mxu0
        %1817 = vmatprep.subr.bf16.mxu0 %v1453
        %1818 = vmatpush1.bf16.msra.mxu0 %v1452
        %1819 = vmatprep.subr.bf16.mxu0 %v1450
        %1820 = vmatpush1.bf16.msra.mxu0 %v1449
        %1821 = vmatprep.subr.bf16.mxu0 %v1447
        %1822 = vmatpush1.bf16.msra.mxu0 %v1446
        %1823 = vmatprep.subr.bf16.mxu0 %v1444
        %1824 = vmatpush1.bf16.msra.mxu0 %v1443
        %1825 = vmatprep.subr.bf16.mxu0 %v1441
        %1826 = vmatpush1.bf16.msra.mxu0 %v1440
        %1827 = vmatprep.subr.bf16.mxu0 %v1438
        %1828 = vmatpush1.bf16.msra.mxu0 %v1437
        %1829 = vmatprep.subr.bf16.mxu0 %v1435
        %1830 = vmatpush1.bf16.msra.mxu0 %v1434
        %1831 = vmatprep.subr.bf16.mxu0 %v1432
        %1832 = vmatpush1.bf16.msra.mxu0 %v1431
        %1833 = vmatprep.subr.bf16.mxu0 %v1477
        %1834 = vmatpush2.bf16.msra.mxu0 %v1476
        %1835 = vmatprep.subr.bf16.mxu0 %v1474
        %1836 = vmatpush2.bf16.msra.mxu0 %v1473
        %1837 = vmatprep.subr.bf16.mxu0 %v1471
        %1838 = vmatpush2.bf16.msra.mxu0 %v1470
        %1839 = vmatprep.subr.bf16.mxu0 %v1468
        %1840 = vmatpush2.bf16.msra.mxu0 %v1467
        %1841 = vmatprep.subr.bf16.mxu0 %v1465
        %1842 = vmatpush2.bf16.msra.mxu0 %v1464
        %1843 = vmatprep.subr.bf16.mxu0 %v1462
        %1844 = vmatpush2.bf16.msra.mxu0 %v1461
        %1845 = vmatprep.subr.bf16.mxu0 %v1459
        %1846 = vmatpush2.bf16.msra.mxu0 %v1458
        %1847 = vmatprep.subr.bf16.mxu0 %v1456
        %1848 = vmatpush2.bf16.msra.mxu0 %v1455
        %1849 = vmatprep.mubr.bf16.mxu0 %v682
        %1850 = vmatmul.mubr.bf16.gmra.mxu0 %v668
        %v1851 = vpop.f32.mrf.mxu0
        %v1852 = vadd.f32 %v1811, %v1851
        %v1853 = vpop.f32.mrf.mxu0
        %v1854 = vadd.f32 %v1813, %v1853
        %v1855 = vpop.f32.mrf.mxu0
        %v1856 = vpop.f32.mrf.mxu0
        %1857 = vdwg.mxu0
        %1858 = vmatprep.subr.bf16.mxu0 %v1501
        %1859 = vmatpush1.bf16.msra.mxu0 %v1500
        %1860 = vmatprep.subr.bf16.mxu0 %v1498
        %1861 = vmatpush1.bf16.msra.mxu0 %v1497
        %1862 = vmatprep.subr.bf16.mxu0 %v1495
        %1863 = vmatpush1.bf16.msra.mxu0 %v1494
        %1864 = vmatprep.subr.bf16.mxu0 %v1492
        %1865 = vmatpush1.bf16.msra.mxu0 %v1491
        %1866 = vmatprep.subr.bf16.mxu0 %v1489
        %1867 = vmatpush1.bf16.msra.mxu0 %v1488
        %1868 = vmatprep.subr.bf16.mxu0 %v1486
        %1869 = vmatpush1.bf16.msra.mxu0 %v1485
        %1870 = vmatprep.subr.bf16.mxu0 %v1483
        %1871 = vmatpush1.bf16.msra.mxu0 %v1482
        %1872 = vmatprep.subr.bf16.mxu0 %v1480
        %1873 = vmatpush1.bf16.msra.mxu0 %v1479
        %1874 = vmatprep.subr.bf16.mxu0 %v1525
        %1875 = vmatpush2.bf16.msra.mxu0 %v1524
        %1876 = vmatprep.subr.bf16.mxu0 %v1522
        %1877 = vmatpush2.bf16.msra.mxu0 %v1521
        %1878 = vmatprep.subr.bf16.mxu0 %v1519
        %1879 = vmatpush2.bf16.msra.mxu0 %v1518
        %1880 = vmatprep.subr.bf16.mxu0 %v1516
        %1881 = vmatpush2.bf16.msra.mxu0 %v1515
        %1882 = vmatprep.subr.bf16.mxu0 %v1513
        %1883 = vmatpush2.bf16.msra.mxu0 %v1512
        %1884 = vmatprep.subr.bf16.mxu0 %v1510
        %1885 = vmatpush2.bf16.msra.mxu0 %v1509
        %1886 = vmatprep.subr.bf16.mxu0 %v1507
        %1887 = vmatpush2.bf16.msra.mxu0 %v1506
        %1888 = vmatprep.subr.bf16.mxu0 %v1504
        %1889 = vmatpush2.bf16.msra.mxu0 %v1503
        %1890 = vmatprep.mubr.bf16.mxu0 %v686
        %1891 = vmatmul.mubr.bf16.gmra.mxu0 %v684
        %v1892 = vpop.f32.mrf.mxu0
        %v1893 = vadd.f32 %v1852, %v1892
        %v1894 = vpop.f32.mrf.mxu0
        %v1895 = vadd.f32 %v1854, %v1894
        %v1896 = vpop.f32.mrf.mxu0
        %v1897 = vpop.f32.mrf.mxu0
        %1898 = vdwg.mxu0
        %1899 = vmatprep.subr.bf16.mxu0 0
        %1900 = vmatpush1.bf16.msra.mxu0 %v1358
        %1901 = vmatprep.subr.bf16.mxu0 0
        %1902 = vmatpush1.bf16.msra.mxu0 %v1355
        %1903 = vmatprep.subr.bf16.mxu0 0
        %1904 = vmatpush1.bf16.msra.mxu0 %v1352
        %1905 = vmatprep.subr.bf16.mxu0 0
        %1906 = vmatpush1.bf16.msra.mxu0 %v1349
        %1907 = vmatprep.subr.bf16.mxu0 0
        %1908 = vmatpush1.bf16.msra.mxu0 %v1346
        %1909 = vmatprep.subr.bf16.mxu0 0
        %1910 = vmatpush1.bf16.msra.mxu0 %v1343
        %1911 = vmatprep.subr.bf16.mxu0 0
        %1912 = vmatpush1.bf16.msra.mxu0 %v1340
        %1913 = vmatprep.subr.bf16.mxu0 0
        %1914 = vmatpush1.bf16.msra.mxu0 %v1337
        %1915 = vmatprep.subr.bf16.mxu0 0
        %1916 = vmatpush2.bf16.msra.mxu0 %v1382
        %1917 = vmatprep.subr.bf16.mxu0 0
        %1918 = vmatpush2.bf16.msra.mxu0 %v1379
        %1919 = vmatprep.subr.bf16.mxu0 0
        %1920 = vmatpush2.bf16.msra.mxu0 %v1376
        %1921 = vmatprep.subr.bf16.mxu0 0
        %1922 = vmatpush2.bf16.msra.mxu0 %v1373
        %1923 = vmatprep.subr.bf16.mxu0 0
        %1924 = vmatpush2.bf16.msra.mxu0 %v1370
        %1925 = vmatprep.subr.bf16.mxu0 0
        %1926 = vmatpush2.bf16.msra.mxu0 %v1367
        %1927 = vmatprep.subr.bf16.mxu0 0
        %1928 = vmatpush2.bf16.msra.mxu0 %v1364
        %1929 = vmatprep.subr.bf16.mxu0 0
        %1930 = vmatpush2.bf16.msra.mxu0 %v1361
        %1931 = vmatprep.mubr.bf16.mxu0 %v675
        %1932 = vmatmul.mubr.bf16.gmra.mxu0 %v661
        %v1933 = vpop.f32.mrf.mxu0
        %v1934 = vadd.f32 %v1731, %v1933
        %v1935 = vpop.f32.mrf.mxu0
        %v1936 = vpop.f32.mrf.mxu0
        %v1937 = vpop.f32.mrf.mxu0
        %1938 = vdwg.mxu0
        %1939 = vmatprep.subr.bf16.mxu0 0
        %1940 = vmatpush1.bf16.msra.mxu0 %v1406
        %1941 = vmatprep.subr.bf16.mxu0 0
        %1942 = vmatpush1.bf16.msra.mxu0 %v1403
        %1943 = vmatprep.subr.bf16.mxu0 0
        %1944 = vmatpush1.bf16.msra.mxu0 %v1400
        %1945 = vmatprep.subr.bf16.mxu0 0
        %1946 = vmatpush1.bf16.msra.mxu0 %v1397
        %1947 = vmatprep.subr.bf16.mxu0 0
        %1948 = vmatpush1.bf16.msra.mxu0 %v1394
        %1949 = vmatprep.subr.bf16.mxu0 0
        %1950 = vmatpush1.bf16.msra.mxu0 %v1391
        %1951 = vmatprep.subr.bf16.mxu0 0
        %1952 = vmatpush1.bf16.msra.mxu0 %v1388
        %1953 = vmatprep.subr.bf16.mxu0 0
        %1954 = vmatpush1.bf16.msra.mxu0 %v1385
        %1955 = vmatprep.subr.bf16.mxu0 0
        %1956 = vmatpush2.bf16.msra.mxu0 %v1430
        %1957 = vmatprep.subr.bf16.mxu0 0
        %1958 = vmatpush2.bf16.msra.mxu0 %v1427
        %1959 = vmatprep.subr.bf16.mxu0 0
        %1960 = vmatpush2.bf16.msra.mxu0 %v1424
        %1961 = vmatprep.subr.bf16.mxu0 0
        %1962 = vmatpush2.bf16.msra.mxu0 %v1421
        %1963 = vmatprep.subr.bf16.mxu0 0
        %1964 = vmatpush2.bf16.msra.mxu0 %v1418
        %1965 = vmatprep.subr.bf16.mxu0 0
        %1966 = vmatpush2.bf16.msra.mxu0 %v1415
        %1967 = vmatprep.subr.bf16.mxu0 0
        %1968 = vmatpush2.bf16.msra.mxu0 %v1412
        %1969 = vmatprep.subr.bf16.mxu0 0
        %1970 = vmatpush2.bf16.msra.mxu0 %v1409
        %1971 = vmatprep.mubr.bf16.mxu0 %v685
        %1972 = vmatmul.mubr.bf16.gmra.mxu0 %v683
        %v1973 = vpop.f32.mrf.mxu0
        %v1974 = vadd.f32 %v1934, %v1973
        %v1975 = vpop.f32.mrf.mxu0
        %v1976 = vpop.f32.mrf.mxu0
        %v1977 = vpop.f32.mrf.mxu0
        %1978 = vdwg.mxu0
        %1979 = vmatprep.subr.bf16.mxu0 0
        %1980 = vmatpush1.bf16.msra.mxu0 %v1454
        %1981 = vmatprep.subr.bf16.mxu0 0
        %1982 = vmatpush1.bf16.msra.mxu0 %v1451
        %1983 = vmatprep.subr.bf16.mxu0 0
        %1984 = vmatpush1.bf16.msra.mxu0 %v1448
        %1985 = vmatprep.subr.bf16.mxu0 0
        %1986 = vmatpush1.bf16.msra.mxu0 %v1445
        %1987 = vmatprep.subr.bf16.mxu0 0
        %1988 = vmatpush1.bf16.msra.mxu0 %v1442
        %1989 = vmatprep.subr.bf16.mxu0 0
        %1990 = vmatpush1.bf16.msra.mxu0 %v1439
        %1991 = vmatprep.subr.bf16.mxu0 0
        %1992 = vmatpush1.bf16.msra.mxu0 %v1436
        %1993 = vmatprep.subr.bf16.mxu0 0
        %1994 = vmatpush1.bf16.msra.mxu0 %v1433
        %1995 = vmatprep.subr.bf16.mxu0 0
        %1996 = vmatpush2.bf16.msra.mxu0 %v1478
        %1997 = vmatprep.subr.bf16.mxu0 0
        %1998 = vmatpush2.bf16.msra.mxu0 %v1475
        %1999 = vmatprep.subr.bf16.mxu0 0
        %2000 = vmatpush2.bf16.msra.mxu0 %v1472
        %2001 = vmatprep.subr.bf16.mxu0 0
        %2002 = vmatpush2.bf16.msra.mxu0 %v1469
        %2003 = vmatprep.subr.bf16.mxu0 0
        %2004 = vmatpush2.bf16.msra.mxu0 %v1466
        %2005 = vmatprep.subr.bf16.mxu0 0
        %2006 = vmatpush2.bf16.msra.mxu0 %v1463
        %2007 = vmatprep.subr.bf16.mxu0 0
        %2008 = vmatpush2.bf16.msra.mxu0 %v1460
        %2009 = vmatprep.subr.bf16.mxu0 0
        %2010 = vmatpush2.bf16.msra.mxu0 %v1457
        %2011 = vmatprep.mubr.bf16.mxu0 %v682
        %2012 = vmatmul.mubr.bf16.gmra.mxu0 %v668
        %v2013 = vpop.f32.mrf.mxu0
        %v2014 = vadd.f32 %v1974, %v2013
        %v2015 = vpop.f32.mrf.mxu0
        %v2016 = vpop.f32.mrf.mxu0
        %v2017 = vpop.f32.mrf.mxu0
        %2018 = vdwg.mxu0
        %2019 = vmatprep.subr.bf16.mxu0 0
        %2020 = vmatpush1.bf16.msra.mxu0 %v1502
        %2021 = vmatprep.subr.bf16.mxu0 0
        %2022 = vmatpush1.bf16.msra.mxu0 %v1499
        %2023 = vmatprep.subr.bf16.mxu0 0
        %2024 = vmatpush1.bf16.msra.mxu0 %v1496
        %2025 = vmatprep.subr.bf16.mxu0 0
        %2026 = vmatpush1.bf16.msra.mxu0 %v1493
        %2027 = vmatprep.subr.bf16.mxu0 0
        %2028 = vmatpush1.bf16.msra.mxu0 %v1490
        %2029 = vmatprep.subr.bf16.mxu0 0
        %2030 = vmatpush1.bf16.msra.mxu0 %v1487
        %2031 = vmatprep.subr.bf16.mxu0 0
        %2032 = vmatpush1.bf16.msra.mxu0 %v1484
        %2033 = vmatprep.subr.bf16.mxu0 0
        %2034 = vmatpush1.bf16.msra.mxu0 %v1481
        %2035 = vmatprep.subr.bf16.mxu0 0
        %2036 = vmatpush2.bf16.msra.mxu0 %v1526
        %2037 = vmatprep.subr.bf16.mxu0 0
        %2038 = vmatpush2.bf16.msra.mxu0 %v1523
        %2039 = vmatprep.subr.bf16.mxu0 0
        %2040 = vmatpush2.bf16.msra.mxu0 %v1520
        %2041 = vmatprep.subr.bf16.mxu0 0
        %2042 = vmatpush2.bf16.msra.mxu0 %v1517
        %2043 = vmatprep.subr.bf16.mxu0 0
        %2044 = vmatpush2.bf16.msra.mxu0 %v1514
        %2045 = vmatprep.subr.bf16.mxu0 0
        %2046 = vmatpush2.bf16.msra.mxu0 %v1511
        %2047 = vmatprep.subr.bf16.mxu0 0
        %2048 = vmatpush2.bf16.msra.mxu0 %v1508
        %2049 = vmatprep.subr.bf16.mxu0 0
        %2050 = vmatpush2.bf16.msra.mxu0 %v1505
        %2051 = vmatprep.mubr.bf16.mxu0 %v686
        %2052 = vmatmul.mubr.bf16.gmra.mxu0 %v684
        %v2053 = vpop.f32.mrf.mxu0
        %v2054 = vadd.f32 %v2014, %v2053
        %v2055 = vpop.f32.mrf.mxu0
        %v2056 = vpop.f32.mrf.mxu0
        %v2057 = vpop.f32.mrf.mxu0
        %2058 = vdwg.mxu0
        %v2059 = vmul.f32 %v1893, %v1893
        %v2060 = vmul.f32 %v1895, %v1895
        %vm2061 = vcmask 1040384
        %v2062 = vsel %vm2061, %v2059, 0.0
        %v2063 = vsel %vm2061, %v2060, 0.0
        %v2064 = vadd.f32 %v2062, %v2063
        %2065 = vadd.xlane.f32.xlu0 %v2064
        %v2066 = vpop.xlane.xlu0 %2065
        %v2067 = vrcp.pop 256.0
        %v2068 = vmul.f32 %v2066, %v2067
        %v2069 = vadd.f32 %v2068, 1e-08
        %v2070 = vrsqrt.pop %v2069
        %v2071 = vmul.f32 %v1893, %v2070
        %v2072 = vmul.f32 %v1895, %v2070
        %v2073 = vmul.f32 %v2054, %v2054
        %v2074 = vsel %vm2061, %v2073, 0.0
        %2075 = vadd.xlane.f32.xlu0 %v2074
        %v2076 = vpop.xlane.xlu0 %2075
        %v2077 = vrcp.pop 128.0
        %v2078 = vmul.f32 %v2076, %v2077
        %v2079 = vadd.f32 %v2078, 1e-08
        %v2080 = vrsqrt.pop %v2079
        %v2081 = vmul.f32 %v2054, %v2080
        %v2082 = vld [vmem:[%s373] sm:$0xff]
        %v2083 = vld [vmem:[%s373 + $0x8] sm:$0x11]
        %v2084 = vld [vmem:[%s373 + $0x10] sm:$0xff]
        %v2085 = vld [vmem:[%s373 + $0x18] sm:$0x11]
        %v2086 = vld [vmem:[%s373 + $0x20] sm:$0xff]
        %v2087 = vld [vmem:[%s373 + $0x28] sm:$0x11]
        %v2088 = vld [vmem:[%s373 + $0x30] sm:$0xff]
        %v2089 = vld [vmem:[%s373 + $0x38] sm:$0x11]
        %v2090 = vld [vmem:[%s373 + $0x40] sm:$0xff]
        %v2091 = vld [vmem:[%s373 + $0x48] sm:$0x11]
        %v2092 = vld [vmem:[%s373 + $0x50] sm:$0xff]
        %v2093 = vld [vmem:[%s373 + $0x58] sm:$0x11]
        %v2094 = vld [vmem:[%s373 + $0x60] sm:$0xff]
        %v2095 = vld [vmem:[%s373 + $0x68] sm:$0x11]
        %v2096 = vld [vmem:[%s373 + $0x70] sm:$0xff]
        %v2097 = vld [vmem:[%s373 + $0x78] sm:$0x11]
        %v2098 = vld [vmem:[%s373 + $0x80] sm:$0xff]
        %v2099 = vld [vmem:[%s373 + $0x88] sm:$0x11]
        %v2100 = vld [vmem:[%s373 + $0x90] sm:$0xff]
        %v2101 = vld [vmem:[%s373 + $0x98] sm:$0x11]
        %v2102 = vunpack.c.l.bf16 %v2082
        %v2103 = vunpack.c.h.bf16 %v2082
        %v2104 = vunpack.c.l.bf16 %v2083
        %v2105 = vunpack.c.h.bf16 %v2083
        %v2106 = vunpack.c.l.bf16 %v2084
        %v2107 = vunpack.c.h.bf16 %v2084
        %v2108 = vunpack.c.l.bf16 %v2085
        %v2109 = vunpack.c.h.bf16 %v2085
        %v2110 = vunpack.c.l.bf16 %v2086
        %v2111 = vunpack.c.h.bf16 %v2086
        %v2112 = vunpack.c.l.bf16 %v2087
        %v2113 = vunpack.c.h.bf16 %v2087
        %v2114 = vunpack.c.l.bf16 %v2088
        %v2115 = vunpack.c.h.bf16 %v2088
        %v2116 = vunpack.c.l.bf16 %v2089
        %v2117 = vunpack.c.h.bf16 %v2089
        %v2118 = vunpack.c.l.bf16 %v2090
        %v2119 = vunpack.c.h.bf16 %v2090
        %v2120 = vunpack.c.l.bf16 %v2091
        %v2121 = vunpack.c.h.bf16 %v2091
        %v2122 = vunpack.c.l.bf16 %v2092
        %v2123 = vunpack.c.h.bf16 %v2092
        %v2124 = vunpack.c.l.bf16 %v2093
        %v2125 = vunpack.c.h.bf16 %v2093
        %v2126 = vunpack.c.l.bf16 %v2094
        %v2127 = vunpack.c.h.bf16 %v2094
        %v2128 = vunpack.c.l.bf16 %v2095
        %v2129 = vunpack.c.h.bf16 %v2095
        %v2130 = vunpack.c.l.bf16 %v2096
        %v2131 = vunpack.c.h.bf16 %v2096
        %v2132 = vunpack.c.l.bf16 %v2097
        %v2133 = vunpack.c.h.bf16 %v2097
        %v2134 = vunpack.c.l.bf16 %v2098
        %v2135 = vunpack.c.h.bf16 %v2098
        %v2136 = vunpack.c.l.bf16 %v2099
        %v2137 = vunpack.c.h.bf16 %v2099
        %v2138 = vunpack.c.l.bf16 %v2100
        %v2139 = vunpack.c.h.bf16 %v2100
        %v2140 = vunpack.c.l.bf16 %v2101
        %v2141 = vunpack.c.h.bf16 %v2101
        %v2142 = vlaneseq
        %v2143 = vshrl.u32 %v2142, 7
        %v2144 = vsub.s32 0, %v2143
        %v2145 = vrot.slane %v2071, %v2144
        %v2146 = vlaneseq
        %v2147 = vshrl.u32 %v2146, 7
        %v2148 = vsub.s32 0, %v2147
        %v2149 = vrot.slane %v2072, %v2148
        %v2150 = vmul.f32 %v2102, %v2145
        %v2151 = vmul.f32 %v2103, %v2149
        %v2152 = vmul.f32 %v2104, %v2145
        %v2153 = vmul.f32 %v2105, %v2149
        %v2154 = vmul.f32 %v2106, %v2145
        %v2155 = vmul.f32 %v2107, %v2149
        %v2156 = vmul.f32 %v2108, %v2145
        %v2157 = vmul.f32 %v2109, %v2149
        %v2158 = vmul.f32 %v2110, %v2145
        %v2159 = vmul.f32 %v2111, %v2149
        %v2160 = vmul.f32 %v2112, %v2145
        %v2161 = vmul.f32 %v2113, %v2149
        %v2162 = vmul.f32 %v2114, %v2145
        %v2163 = vmul.f32 %v2115, %v2149
        %v2164 = vmul.f32 %v2116, %v2145
        %v2165 = vmul.f32 %v2117, %v2149
        %v2166 = vmul.f32 %v2118, %v2145
        %v2167 = vmul.f32 %v2119, %v2149
        %v2168 = vmul.f32 %v2120, %v2145
        %v2169 = vmul.f32 %v2121, %v2149
        %v2170 = vmul.f32 %v2122, %v2145
        %v2171 = vmul.f32 %v2123, %v2149
        %v2172 = vmul.f32 %v2124, %v2145
        %v2173 = vmul.f32 %v2125, %v2149
        %v2174 = vmul.f32 %v2126, %v2145
        %v2175 = vmul.f32 %v2127, %v2149
        %v2176 = vmul.f32 %v2128, %v2145
        %v2177 = vmul.f32 %v2129, %v2149
        %v2178 = vmul.f32 %v2130, %v2145
        %v2179 = vmul.f32 %v2131, %v2149
        %v2180 = vmul.f32 %v2132, %v2145
        %v2181 = vmul.f32 %v2133, %v2149
        %v2182 = vmul.f32 %v2134, %v2145
        %v2183 = vmul.f32 %v2135, %v2149
        %v2184 = vmul.f32 %v2136, %v2145
        %v2185 = vmul.f32 %v2137, %v2149
        %v2186 = vmul.f32 %v2138, %v2145
        %v2187 = vmul.f32 %v2139, %v2149
        %v2188 = vmul.f32 %v2140, %v2145
        %v2189 = vmul.f32 %v2141, %v2149
        %v2190 = vpack.c.bf16 %v2152, %v2150
        %v2191 = vpack.c.bf16 %v2153, %v2151
        %v2192 = vpack.c.bf16 %v2156, %v2154
        %v2193 = vpack.c.bf16 %v2157, %v2155
        %v2194 = vpack.c.bf16 %v2160, %v2158
        %v2195 = vpack.c.bf16 %v2161, %v2159
        %v2196 = vpack.c.bf16 %v2164, %v2162
        %v2197 = vpack.c.bf16 %v2165, %v2163
        %v2198 = vpack.c.bf16 %v2168, %v2166
        %v2199 = vpack.c.bf16 %v2169, %v2167
        %v2200 = vpack.c.bf16 %v2172, %v2170
        %v2201 = vpack.c.bf16 %v2173, %v2171
        %v2202 = vpack.c.bf16 %v2176, %v2174
        %v2203 = vpack.c.bf16 %v2177, %v2175
        %v2204 = vpack.c.bf16 %v2180, %v2178
        %v2205 = vpack.c.bf16 %v2181, %v2179
        %v2206 = vpack.c.bf16 %v2184, %v2182
        %v2207 = vpack.c.bf16 %v2185, %v2183
        %v2208 = vpack.c.bf16 %v2188, %v2186
        %v2209 = vpack.c.bf16 %v2189, %v2187
        %v2226 = vunpack.c.l.b16 %v2190
        %v2227 = vunpack.c.l.b16 %v2191
        %v2228 = vunpack.c.l.b16 %v2192
        %v2229 = vunpack.c.l.b16 %v2193
        %v2230 = vunpack.c.l.b16 %v2194
        %v2231 = vunpack.c.l.b16 %v2195
        %v2232 = vunpack.c.l.b16 %v2196
        %v2233 = vunpack.c.l.b16 %v2197
        %v2234 = vunpack.c.l.b16 %v2198
        %v2235 = vunpack.c.l.b16 %v2199
        %v2236 = vunpack.c.l.b16 %v2200
        %v2237 = vunpack.c.l.b16 %v2201
        %v2238 = vunpack.c.l.b16 %v2202
        %v2239 = vunpack.c.l.b16 %v2203
        %v2240 = vunpack.c.l.b16 %v2204
        %v2241 = vunpack.c.l.b16 %v2205
        %v2242 = vld [vmem:[#allocation6] sm:$0xf]
        %v2243 = vld [vmem:[#allocation6 + $0x4] sm:$0xf]
        %v2244 = vld [vmem:[#allocation6 + $0x8] sm:$0xf]
        %v2245 = vld [vmem:[#allocation6 + $0xc] sm:$0xf]
        %v2246 = vld [vmem:[#allocation6 + $0x10] sm:$0xf]
        %v2247 = vld [vmem:[#allocation6 + $0x14] sm:$0xf]
        %v2248 = vld [vmem:[#allocation6 + $0x18] sm:$0xf]
        %v2249 = vld [vmem:[#allocation6 + $0x1c] sm:$0xf]
        %v2250 = vld [vmem:[#allocation6 + $0x20] sm:$0xf]
        %v2251 = vld [vmem:[#allocation6 + $0x24] sm:$0xf]
        %v2252 = vld [vmem:[#allocation6 + $0x28] sm:$0xf]
        %v2253 = vld [vmem:[#allocation6 + $0x2c] sm:$0xf]
        %v2254 = vld [vmem:[#allocation6 + $0x30] sm:$0xf]
        %v2255 = vld [vmem:[#allocation6 + $0x34] sm:$0xf]
        %v2256 = vld [vmem:[#allocation6 + $0x38] sm:$0xf]
        %v2257 = vld [vmem:[#allocation6 + $0x3c] sm:$0xf]
        %v2258 = vld [vmem:[#allocation6 + $0x40] sm:$0xf]
        %v2259 = vld [vmem:[#allocation6 + $0x44] sm:$0xf]
        %v2260 = vld [vmem:[#allocation6 + $0x48] sm:$0xf]
        %v2261 = vld [vmem:[#allocation6 + $0x4c] sm:$0xf]
        %v2262 = vld [vmem:[#allocation6 + $0x50] sm:$0xf]
        %v2263 = vld [vmem:[#allocation6 + $0x54] sm:$0xf]
        %v2264 = vld [vmem:[#allocation6 + $0x58] sm:$0xf]
        %v2265 = vld [vmem:[#allocation6 + $0x5c] sm:$0xf]
        %v2266 = vld [vmem:[#allocation6 + $0x60] sm:$0xf]
        %v2267 = vld [vmem:[#allocation6 + $0x64] sm:$0xf]
        %v2268 = vld [vmem:[#allocation6 + $0x68] sm:$0xf]
        %v2269 = vld [vmem:[#allocation6 + $0x6c] sm:$0xf]
        %v2270 = vld [vmem:[#allocation6 + $0x70] sm:$0xf]
        %v2271 = vld [vmem:[#allocation6 + $0x74] sm:$0xf]
        %v2272 = vld [vmem:[#allocation6 + $0x78] sm:$0xf]
        %v2273 = vld [vmem:[#allocation6 + $0x7c] sm:$0xf]
        %v2274 = vunpack.c.h.b16 %v2190
        %v2275 = vunpack.c.h.b16 %v2191
        %v2276 = vunpack.c.h.b16 %v2192
        %v2277 = vunpack.c.h.b16 %v2193
        %v2278 = vunpack.c.h.b16 %v2194
        %v2279 = vunpack.c.h.b16 %v2195
        %v2280 = vunpack.c.h.b16 %v2196
        %v2281 = vunpack.c.h.b16 %v2197
        %v2282 = vunpack.c.h.b16 %v2198
        %v2283 = vunpack.c.h.b16 %v2199
        %v2284 = vunpack.c.h.b16 %v2200
        %v2285 = vunpack.c.h.b16 %v2201
        %v2286 = vunpack.c.h.b16 %v2202
        %v2287 = vunpack.c.h.b16 %v2203
        %v2288 = vunpack.c.h.b16 %v2204
        %v2289 = vunpack.c.h.b16 %v2205
        %v2290 = vpack.c.b16 %v2227, %v2226
        %v2291 = vpack.c.b16 %v2275, %v2274
        %v2292 = vpack.c.b16 %v2229, %v2228
        %v2293 = vpack.c.b16 %v2277, %v2276
        %v2294 = vpack.c.b16 %v2231, %v2230
        %v2295 = vpack.c.b16 %v2279, %v2278
        %v2296 = vpack.c.b16 %v2233, %v2232
        %v2297 = vpack.c.b16 %v2281, %v2280
        %v2298 = vpack.c.b16 %v2235, %v2234
        %v2299 = vpack.c.b16 %v2283, %v2282
        %v2300 = vpack.c.b16 %v2237, %v2236
        %v2301 = vpack.c.b16 %v2285, %v2284
        %v2302 = vpack.c.b16 %v2239, %v2238
        %v2303 = vpack.c.b16 %v2287, %v2286
        %v2304 = vpack.c.b16 %v2241, %v2240
        %v2305 = vpack.c.b16 %v2289, %v2288
        %vm2306 = vsmask.f32 3328
        %vm2307 = vsmask.f32 7440
        %vm2308 = vmor %vm2306, %vm2307
        %v2310 = vshrl.u32 %v2290, 16
        %v2312 = vrot.slane %v2310, 4
        %v2313 = vshll.u32 %v2290, 16
        %v2315 = vrot.slane %v2313, 5
        %v2316 = vor.u32 %v2312, %v2315
        %v2317 = vrot.slane %v2316, 4
        %v2319 = vshll.u32 %v2291, 16
        %v2321 = vrot.slane %v2319, 5
        %v2322 = vsel %vm2308, %v2317, %v2321
        %v2324 = vshrl.u32 %v2292, 16
        %v2326 = vrot.slane %v2324, 4
        %v2327 = vshll.u32 %v2292, 16
        %v2329 = vrot.slane %v2327, 5
        %v2330 = vor.u32 %v2326, %v2329
        %v2331 = vrot.slane %v2330, 4
        %v2333 = vshll.u32 %v2293, 16
        %v2335 = vrot.slane %v2333, 5
        %v2336 = vsel %vm2308, %v2331, %v2335
        %v2338 = vshrl.u32 %v2294, 16
        %v2340 = vrot.slane %v2338, 4
        %v2341 = vshll.u32 %v2294, 16
        %v2343 = vrot.slane %v2341, 5
        %v2344 = vor.u32 %v2340, %v2343
        %v2345 = vrot.slane %v2344, 4
        %v2347 = vshll.u32 %v2295, 16
        %v2349 = vrot.slane %v2347, 5
        %v2350 = vsel %vm2308, %v2345, %v2349
        %v2352 = vshrl.u32 %v2296, 16
        %v2354 = vrot.slane %v2352, 4
        %v2355 = vshll.u32 %v2296, 16
        %v2357 = vrot.slane %v2355, 5
        %v2358 = vor.u32 %v2354, %v2357
        %v2359 = vrot.slane %v2358, 4
        %v2361 = vshll.u32 %v2297, 16
        %v2363 = vrot.slane %v2361, 5
        %v2364 = vsel %vm2308, %v2359, %v2363
        %v2366 = vshrl.u32 %v2298, 16
        %v2368 = vrot.slane %v2366, 4
        %v2369 = vshll.u32 %v2298, 16
        %v2371 = vrot.slane %v2369, 5
        %v2372 = vor.u32 %v2368, %v2371
        %v2373 = vrot.slane %v2372, 4
        %v2375 = vshll.u32 %v2299, 16
        %v2377 = vrot.slane %v2375, 5
        %v2378 = vsel %vm2308, %v2373, %v2377
        %v2380 = vshrl.u32 %v2300, 16
        %v2382 = vrot.slane %v2380, 4
        %v2383 = vshll.u32 %v2300, 16
        %v2385 = vrot.slane %v2383, 5
        %v2386 = vor.u32 %v2382, %v2385
        %v2387 = vrot.slane %v2386, 4
        %v2389 = vshll.u32 %v2301, 16
        %v2391 = vrot.slane %v2389, 5
        %v2392 = vsel %vm2308, %v2387, %v2391
        %v2394 = vshrl.u32 %v2302, 16
        %v2396 = vrot.slane %v2394, 4
        %v2397 = vshll.u32 %v2302, 16
        %v2399 = vrot.slane %v2397, 5
        %v2400 = vor.u32 %v2396, %v2399
        %v2401 = vrot.slane %v2400, 4
        %v2403 = vshll.u32 %v2303, 16
        %v2405 = vrot.slane %v2403, 5
        %v2406 = vsel %vm2308, %v2401, %v2405
        %v2408 = vshrl.u32 %v2304, 16
        %v2410 = vrot.slane %v2408, 4
        %v2411 = vshll.u32 %v2304, 16
        %v2413 = vrot.slane %v2411, 5
        %v2414 = vor.u32 %v2410, %v2413
        %v2415 = vrot.slane %v2414, 4
        %v2417 = vshll.u32 %v2305, 16
        %v2419 = vrot.slane %v2417, 5
        %v2420 = vsel %vm2308, %v2415, %v2419
        %s2421 = scalar_lea.vmem [#allocation6], 128
        %v2422 = vld [vmem:[%s2421] sm:$0xf]
        %v2423 = vld [vmem:[%s2421 + $0x4] sm:$0xf]
        %v2424 = vld [vmem:[%s2421 + $0x8] sm:$0xf]
        %v2425 = vld [vmem:[%s2421 + $0xc] sm:$0xf]
        %v2426 = vld [vmem:[%s2421 + $0x10] sm:$0xf]
        %v2427 = vld [vmem:[%s2421 + $0x14] sm:$0xf]
        %v2428 = vld [vmem:[%s2421 + $0x18] sm:$0xf]
        %v2429 = vld [vmem:[%s2421 + $0x1c] sm:$0xf]
        %v2430 = vld [vmem:[%s2421 + $0x20] sm:$0xf]
        %v2431 = vld [vmem:[%s2421 + $0x24] sm:$0xf]
        %v2432 = vld [vmem:[%s2421 + $0x28] sm:$0xf]
        %v2433 = vld [vmem:[%s2421 + $0x2c] sm:$0xf]
        %v2434 = vld [vmem:[%s2421 + $0x30] sm:$0xf]
        %v2435 = vld [vmem:[%s2421 + $0x34] sm:$0xf]
        %v2436 = vld [vmem:[%s2421 + $0x38] sm:$0xf]
        %v2437 = vld [vmem:[%s2421 + $0x3c] sm:$0xf]
        %v2438 = vld [vmem:[%s2421 + $0x40] sm:$0xf]
        %v2439 = vld [vmem:[%s2421 + $0x44] sm:$0xf]
        %v2440 = vld [vmem:[%s2421 + $0x48] sm:$0xf]
        %v2441 = vld [vmem:[%s2421 + $0x4c] sm:$0xf]
        %v2442 = vld [vmem:[%s2421 + $0x50] sm:$0xf]
        %v2443 = vld [vmem:[%s2421 + $0x54] sm:$0xf]
        %v2444 = vld [vmem:[%s2421 + $0x58] sm:$0xf]
        %v2445 = vld [vmem:[%s2421 + $0x5c] sm:$0xf]
        %v2446 = vld [vmem:[%s2421 + $0x60] sm:$0xf]
        %v2447 = vld [vmem:[%s2421 + $0x64] sm:$0xf]
        %v2448 = vld [vmem:[%s2421 + $0x68] sm:$0xf]
        %v2449 = vld [vmem:[%s2421 + $0x6c] sm:$0xf]
        %v2450 = vld [vmem:[%s2421 + $0x70] sm:$0xf]
        %v2451 = vld [vmem:[%s2421 + $0x74] sm:$0xf]
        %v2452 = vld [vmem:[%s2421 + $0x78] sm:$0xf]
        %v2453 = vld [vmem:[%s2421 + $0x7c] sm:$0xf]
        %v2454 = vunpack.c.l.b16 %v2322
        %v2455 = vunpack.c.h.b16 %v2322
        %v2456 = vunpack.c.l.b16 %v2336
        %v2457 = vunpack.c.h.b16 %v2336
        %v2458 = vunpack.c.l.b16 %v2350
        %v2459 = vunpack.c.h.b16 %v2350
        %v2460 = vunpack.c.l.b16 %v2364
        %v2461 = vunpack.c.h.b16 %v2364
        %v2462 = vunpack.c.l.b16 %v2378
        %v2463 = vunpack.c.h.b16 %v2378
        %v2464 = vunpack.c.l.b16 %v2392
        %v2465 = vunpack.c.h.b16 %v2392
        %v2466 = vunpack.c.l.b16 %v2406
        %v2467 = vunpack.c.h.b16 %v2406
        %v2468 = vunpack.c.l.b16 %v2420
        %v2469 = vunpack.c.h.b16 %v2420
        %v2470 = vpack.c.b16 %v2456, %v2454
        %v2471 = vpack.c.b16 %v2457, %v2455
        %v2472 = vpack.c.b16 %v2460, %v2458
        %v2473 = vpack.c.b16 %v2461, %v2459
        %v2474 = vpack.c.b16 %v2464, %v2462
        %v2475 = vpack.c.b16 %v2465, %v2463
        %v2476 = vpack.c.b16 %v2468, %v2466
        %v2477 = vpack.c.b16 %v2469, %v2467
        %v2518 = vunpack.c.l.b16 %v2422
        %v2519 = vunpack.c.l.b16 %v2423
        %v2520 = vunpack.c.l.b16 %v2424
        %v2521 = vunpack.c.l.b16 %v2425
        %v2522 = vunpack.c.l.b16 %v2426
        %v2523 = vunpack.c.l.b16 %v2427
        %v2524 = vunpack.c.l.b16 %v2428
        %v2525 = vunpack.c.l.b16 %v2429
        %v2526 = vunpack.c.l.b16 %v2430
        %v2527 = vunpack.c.l.b16 %v2431
        %v2528 = vunpack.c.l.b16 %v2432
        %v2529 = vunpack.c.l.b16 %v2433
        %v2530 = vunpack.c.l.b16 %v2434
        %v2531 = vunpack.c.l.b16 %v2435
        %v2532 = vunpack.c.l.b16 %v2436
        %v2533 = vunpack.c.l.b16 %v2437
        %v2534 = vunpack.c.l.b16 %v2438
        %v2535 = vunpack.c.l.b16 %v2439
        %v2536 = vunpack.c.l.b16 %v2440
        %v2537 = vunpack.c.l.b16 %v2441
        %v2538 = vunpack.c.l.b16 %v2442
        %v2539 = vunpack.c.l.b16 %v2443
        %v2540 = vunpack.c.l.b16 %v2444
        %v2541 = vunpack.c.l.b16 %v2445
        %v2542 = vunpack.c.l.b16 %v2446
        %v2543 = vunpack.c.l.b16 %v2447
        %v2544 = vunpack.c.l.b16 %v2448
        %v2545 = vunpack.c.l.b16 %v2449
        %v2546 = vunpack.c.l.b16 %v2450
        %v2547 = vunpack.c.l.b16 %v2451
        %v2548 = vunpack.c.l.b16 %v2452
        %v2549 = vunpack.c.l.b16 %v2453
        %v2550 = vpack.c.b16 %v2519, %v2518
        %v2551 = vpack.c.b16 %v2521, %v2520
        %v2552 = vpack.c.b16 %v2523, %v2522
        %v2553 = vpack.c.b16 %v2525, %v2524
        %v2554 = vpack.c.b16 %v2527, %v2526
        %v2555 = vpack.c.b16 %v2529, %v2528
        %v2556 = vpack.c.b16 %v2531, %v2530
        %v2557 = vpack.c.b16 %v2533, %v2532
        %v2558 = vpack.c.b16 %v2535, %v2534
        %v2559 = vpack.c.b16 %v2537, %v2536
        %v2560 = vpack.c.b16 %v2539, %v2538
        %v2561 = vpack.c.b16 %v2541, %v2540
        %v2562 = vpack.c.b16 %v2543, %v2542
        %v2563 = vpack.c.b16 %v2545, %v2544
        %v2564 = vpack.c.b16 %v2547, %v2546
        %v2565 = vpack.c.b16 %v2549, %v2548
        %2582 = vmatprep.subr.bf16.mxu0 0
        %2583 = vmatpush1.bf16.msra.mxu0 %v2557
        %2584 = vmatprep.subr.bf16.mxu0 0
        %2585 = vmatpush1.bf16.msra.mxu0 %v2556
        %2586 = vmatprep.subr.bf16.mxu0 0
        %2587 = vmatpush1.bf16.msra.mxu0 %v2555
        %2588 = vmatprep.subr.bf16.mxu0 0
        %2589 = vmatpush1.bf16.msra.mxu0 %v2554
        %2590 = vmatprep.subr.bf16.mxu0 0
        %2591 = vmatpush1.bf16.msra.mxu0 %v2553
        %2592 = vmatprep.subr.bf16.mxu0 0
        %2593 = vmatpush1.bf16.msra.mxu0 %v2552
        %2594 = vmatprep.subr.bf16.mxu0 0
        %2595 = vmatpush1.bf16.msra.mxu0 %v2551
        %2596 = vmatprep.subr.bf16.mxu0 0
        %2597 = vmatpush1.bf16.msra.mxu0 %v2550
        %2598 = vmatprep.subr.bf16.mxu0 0
        %2599 = vmatpush2.bf16.msra.mxu0 %v2565
        %2600 = vmatprep.subr.bf16.mxu0 0
        %2601 = vmatpush2.bf16.msra.mxu0 %v2564
        %2602 = vmatprep.subr.bf16.mxu0 0
        %2603 = vmatpush2.bf16.msra.mxu0 %v2563
        %2604 = vmatprep.subr.bf16.mxu0 0
        %2605 = vmatpush2.bf16.msra.mxu0 %v2562
        %2606 = vmatprep.subr.bf16.mxu0 0
        %2607 = vmatpush2.bf16.msra.mxu0 %v2561
        %2608 = vmatprep.subr.bf16.mxu0 0
        %2609 = vmatpush2.bf16.msra.mxu0 %v2560
        %2610 = vmatprep.subr.bf16.mxu0 0
        %2611 = vmatpush2.bf16.msra.mxu0 %v2559
        %2612 = vmatprep.subr.bf16.mxu0 0
        %2613 = vmatpush2.bf16.msra.mxu0 %v2558
        %2614 = vmatprep.mubr.bf16.mxu0 %v2471
        %2615 = vmatmul.mubr.bf16.gmra.mxu0 %v2470
        %v2616 = vpop.f32.mrf.mxu0
        %v2617 = vadd.f32 0.0, %v2616
        %v2618 = vpop.f32.mrf.mxu0
        %v2619 = vpop.f32.mrf.mxu0
        %v2620 = vadd.f32 0.0, %v2619
        %v2621 = vpop.f32.mrf.mxu0
        %2622 = vmatprep.mubr.bf16.mxu0 %v2473
        %2623 = vmatmul.mubr.bf16.gmra.mxu0 %v2472
        %v2624 = vpop.f32.mrf.mxu0
        %v2625 = vadd.f32 0.0, %v2624
        %v2626 = vpop.f32.mrf.mxu0
        %v2627 = vpop.f32.mrf.mxu0
        %v2628 = vadd.f32 0.0, %v2627
        %v2629 = vpop.f32.mrf.mxu0
        %2630 = vmatprep.mubr.bf16.mxu0 %v2475
        %2631 = vmatmul.mubr.bf16.gmra.mxu0 %v2474
        %v2632 = vpop.f32.mrf.mxu0
        %v2633 = vadd.f32 0.0, %v2632
        %v2634 = vpop.f32.mrf.mxu0
        %v2635 = vpop.f32.mrf.mxu0
        %v2636 = vadd.f32 0.0, %v2635
        %v2637 = vpop.f32.mrf.mxu0
        %2638 = vmatprep.mubr.bf16.mxu0 %v2477
        %2639 = vmatmul.mubr.bf16.gmra.mxu0 %v2476
        %v2640 = vpop.f32.mrf.mxu0
        %v2641 = vadd.f32 0.0, %v2640
        %v2642 = vpop.f32.mrf.mxu0
        %v2643 = vpop.f32.mrf.mxu0
        %v2644 = vadd.f32 0.0, %v2643
        %v2645 = vpop.f32.mrf.mxu0
        %2646 = vdwg.mxu0
        %v2647 = vpack.c.b16 %v2228, %v2226
        %v2648 = vpack.c.b16 %v2229, %v2227
        %v2649 = vpack.c.b16 %v2232, %v2230
        %v2650 = vpack.c.b16 %v2233, %v2231
        %v2651 = vpack.c.b16 %v2236, %v2234
        %v2652 = vpack.c.b16 %v2237, %v2235
        %v2653 = vpack.c.b16 %v2240, %v2238
        %v2654 = vpack.c.b16 %v2241, %v2239
        %v2695 = vunpack.c.l.b16 %v2242
        %v2696 = vunpack.c.l.b16 %v2243
        %v2697 = vunpack.c.l.b16 %v2244
        %v2698 = vunpack.c.l.b16 %v2245
        %v2699 = vunpack.c.l.b16 %v2246
        %v2700 = vunpack.c.l.b16 %v2247
        %v2701 = vunpack.c.l.b16 %v2248
        %v2702 = vunpack.c.l.b16 %v2249
        %v2703 = vunpack.c.l.b16 %v2250
        %v2704 = vunpack.c.l.b16 %v2251
        %v2705 = vunpack.c.l.b16 %v2252
        %v2706 = vunpack.c.l.b16 %v2253
        %v2707 = vunpack.c.l.b16 %v2254
        %v2708 = vunpack.c.l.b16 %v2255
        %v2709 = vunpack.c.l.b16 %v2256
        %v2710 = vunpack.c.l.b16 %v2257
        %v2711 = vunpack.c.l.b16 %v2258
        %v2712 = vunpack.c.l.b16 %v2259
        %v2713 = vunpack.c.l.b16 %v2260
        %v2714 = vunpack.c.l.b16 %v2261
        %v2715 = vunpack.c.l.b16 %v2262
        %v2716 = vunpack.c.l.b16 %v2263
        %v2717 = vunpack.c.l.b16 %v2264
        %v2718 = vunpack.c.l.b16 %v2265
        %v2719 = vunpack.c.l.b16 %v2266
        %v2720 = vunpack.c.l.b16 %v2267
        %v2721 = vunpack.c.l.b16 %v2268
        %v2722 = vunpack.c.l.b16 %v2269
        %v2723 = vunpack.c.l.b16 %v2270
        %v2724 = vunpack.c.l.b16 %v2271
        %v2725 = vunpack.c.l.b16 %v2272
        %v2726 = vunpack.c.l.b16 %v2273
        %v2727 = vpack.c.b16 %v2696, %v2695
        %v2728 = vpack.c.b16 %v2698, %v2697
        %v2729 = vpack.c.b16 %v2700, %v2699
        %v2730 = vpack.c.b16 %v2702, %v2701
        %v2731 = vpack.c.b16 %v2704, %v2703
        %v2732 = vpack.c.b16 %v2706, %v2705
        %v2733 = vpack.c.b16 %v2708, %v2707
        %v2734 = vpack.c.b16 %v2710, %v2709
        %v2735 = vpack.c.b16 %v2712, %v2711
        %v2736 = vpack.c.b16 %v2714, %v2713
        %v2737 = vpack.c.b16 %v2716, %v2715
        %v2738 = vpack.c.b16 %v2718, %v2717
        %v2739 = vpack.c.b16 %v2720, %v2719
        %v2740 = vpack.c.b16 %v2722, %v2721
        %v2741 = vpack.c.b16 %v2724, %v2723
        %v2742 = vpack.c.b16 %v2726, %v2725
        %2759 = vmatprep.subr.bf16.mxu0 0
        %2760 = vmatpush1.bf16.msra.mxu0 %v2734
        %2761 = vmatprep.subr.bf16.mxu0 0
        %2762 = vmatpush1.bf16.msra.mxu0 %v2733
        %2763 = vmatprep.subr.bf16.mxu0 0
        %2764 = vmatpush1.bf16.msra.mxu0 %v2732
        %2765 = vmatprep.subr.bf16.mxu0 0
        %2766 = vmatpush1.bf16.msra.mxu0 %v2731
        %2767 = vmatprep.subr.bf16.mxu0 0
        %2768 = vmatpush1.bf16.msra.mxu0 %v2730
        %2769 = vmatprep.subr.bf16.mxu0 0
        %2770 = vmatpush1.bf16.msra.mxu0 %v2729
        %2771 = vmatprep.subr.bf16.mxu0 0
        %2772 = vmatpush1.bf16.msra.mxu0 %v2728
        %2773 = vmatprep.subr.bf16.mxu0 0
        %2774 = vmatpush1.bf16.msra.mxu0 %v2727
        %2775 = vmatprep.subr.bf16.mxu0 0
        %2776 = vmatpush2.bf16.msra.mxu0 %v2742
        %2777 = vmatprep.subr.bf16.mxu0 0
        %2778 = vmatpush2.bf16.msra.mxu0 %v2741
        %2779 = vmatprep.subr.bf16.mxu0 0
        %2780 = vmatpush2.bf16.msra.mxu0 %v2740
        %2781 = vmatprep.subr.bf16.mxu0 0
        %2782 = vmatpush2.bf16.msra.mxu0 %v2739
        %2783 = vmatprep.subr.bf16.mxu0 0
        %2784 = vmatpush2.bf16.msra.mxu0 %v2738
        %2785 = vmatprep.subr.bf16.mxu0 0
        %2786 = vmatpush2.bf16.msra.mxu0 %v2737
        %2787 = vmatprep.subr.bf16.mxu0 0
        %2788 = vmatpush2.bf16.msra.mxu0 %v2736
        %2789 = vmatprep.subr.bf16.mxu0 0
        %2790 = vmatpush2.bf16.msra.mxu0 %v2735
        %2791 = vmatprep.mubr.bf16.mxu0 %v2648
        %2792 = vmatmul.mubr.bf16.gmra.mxu0 %v2647
        %v2793 = vpop.f32.mrf.mxu0
        %v2794 = vadd.f32 %v2617, %v2793
        %v2795 = vpop.f32.mrf.mxu0
        %v2796 = vpop.f32.mrf.mxu0
        %v2797 = vadd.f32 %v2620, %v2796
        %v2798 = vpop.f32.mrf.mxu0
        %2799 = vmatprep.mubr.bf16.mxu0 %v2650
        %2800 = vmatmul.mubr.bf16.gmra.mxu0 %v2649
        %v2801 = vpop.f32.mrf.mxu0
        %v2802 = vadd.f32 %v2625, %v2801
        %v2803 = vpop.f32.mrf.mxu0
        %v2804 = vpop.f32.mrf.mxu0
        %v2805 = vadd.f32 %v2628, %v2804
        %v2806 = vpop.f32.mrf.mxu0
        %2807 = vmatprep.mubr.bf16.mxu0 %v2652
        %2808 = vmatmul.mubr.bf16.gmra.mxu0 %v2651
        %v2809 = vpop.f32.mrf.mxu0
        %v2810 = vadd.f32 %v2633, %v2809
        %v2811 = vpop.f32.mrf.mxu0
        %v2812 = vpop.f32.mrf.mxu0
        %v2813 = vadd.f32 %v2636, %v2812
        %v2814 = vpop.f32.mrf.mxu0
        %2815 = vmatprep.mubr.bf16.mxu0 %v2654
        %2816 = vmatmul.mubr.bf16.gmra.mxu0 %v2653
        %v2817 = vpop.f32.mrf.mxu0
        %v2818 = vadd.f32 %v2641, %v2817
        %v2819 = vpop.f32.mrf.mxu0
        %v2820 = vpop.f32.mrf.mxu0
        %v2821 = vadd.f32 %v2644, %v2820
        %v2822 = vpop.f32.mrf.mxu0
        %2823 = vdwg.mxu0
        %vm2824 = vcmask 1042432
        %vm2825 = vcmask 1046532
        %vm2826 = vmor %vm2824, %vm2825
        %v2827 = vrot.slane %v2290, 5
        %v2828 = vrot.slane %v2827, 4
        %v2829 = vrot.slane %v2291, 5
        %v2830 = vsel %vm2826, %v2828, %v2829
        %v2831 = vrot.slane %v2292, 5
        %v2832 = vrot.slane %v2831, 4
        %v2833 = vrot.slane %v2293, 5
        %v2834 = vsel %vm2826, %v2832, %v2833
        %v2835 = vrot.slane %v2294, 5
        %v2836 = vrot.slane %v2835, 4
        %v2837 = vrot.slane %v2295, 5
        %v2838 = vsel %vm2826, %v2836, %v2837
        %v2839 = vrot.slane %v2296, 5
        %v2840 = vrot.slane %v2839, 4
        %v2841 = vrot.slane %v2297, 5
        %v2842 = vsel %vm2826, %v2840, %v2841
        %v2843 = vrot.slane %v2298, 5
        %v2844 = vrot.slane %v2843, 4
        %v2845 = vrot.slane %v2299, 5
        %v2846 = vsel %vm2826, %v2844, %v2845
        %v2847 = vrot.slane %v2300, 5
        %v2848 = vrot.slane %v2847, 4
        %v2849 = vrot.slane %v2301, 5
        %v2850 = vsel %vm2826, %v2848, %v2849
        %v2851 = vrot.slane %v2302, 5
        %v2852 = vrot.slane %v2851, 4
        %v2853 = vrot.slane %v2303, 5
        %v2854 = vsel %vm2826, %v2852, %v2853
        %v2855 = vrot.slane %v2304, 5
        %v2856 = vrot.slane %v2855, 4
        %v2857 = vrot.slane %v2305, 5
        %v2858 = vsel %vm2826, %v2856, %v2857
        %s2859 = scalar_lea.vmem [#allocation6], 256
        %v2860 = vld [vmem:[%s2859] sm:$0xf]
        %v2861 = vld [vmem:[%s2859 + $0x4] sm:$0xf]
        %v2862 = vld [vmem:[%s2859 + $0x8] sm:$0xf]
        %v2863 = vld [vmem:[%s2859 + $0xc] sm:$0xf]
        %v2864 = vld [vmem:[%s2859 + $0x10] sm:$0xf]
        %v2865 = vld [vmem:[%s2859 + $0x14] sm:$0xf]
        %v2866 = vld [vmem:[%s2859 + $0x18] sm:$0xf]
        %v2867 = vld [vmem:[%s2859 + $0x1c] sm:$0xf]
        %v2868 = vld [vmem:[%s2859 + $0x20] sm:$0xf]
        %v2869 = vld [vmem:[%s2859 + $0x24] sm:$0xf]
        %v2870 = vld [vmem:[%s2859 + $0x28] sm:$0xf]
        %v2871 = vld [vmem:[%s2859 + $0x2c] sm:$0xf]
        %v2872 = vld [vmem:[%s2859 + $0x30] sm:$0xf]
        %v2873 = vld [vmem:[%s2859 + $0x34] sm:$0xf]
        %v2874 = vld [vmem:[%s2859 + $0x38] sm:$0xf]
        %v2875 = vld [vmem:[%s2859 + $0x3c] sm:$0xf]
        %v2876 = vld [vmem:[%s2859 + $0x40] sm:$0xf]
        %v2877 = vld [vmem:[%s2859 + $0x44] sm:$0xf]
        %v2878 = vld [vmem:[%s2859 + $0x48] sm:$0xf]
        %v2879 = vld [vmem:[%s2859 + $0x4c] sm:$0xf]
        %v2880 = vld [vmem:[%s2859 + $0x50] sm:$0xf]
        %v2881 = vld [vmem:[%s2859 + $0x54] sm:$0xf]
        %v2882 = vld [vmem:[%s2859 + $0x58] sm:$0xf]
        %v2883 = vld [vmem:[%s2859 + $0x5c] sm:$0xf]
        %v2884 = vld [vmem:[%s2859 + $0x60] sm:$0xf]
        %v2885 = vld [vmem:[%s2859 + $0x64] sm:$0xf]
        %v2886 = vld [vmem:[%s2859 + $0x68] sm:$0xf]
        %v2887 = vld [vmem:[%s2859 + $0x6c] sm:$0xf]
        %v2888 = vld [vmem:[%s2859 + $0x70] sm:$0xf]
        %v2889 = vld [vmem:[%s2859 + $0x74] sm:$0xf]
        %v2890 = vld [vmem:[%s2859 + $0x78] sm:$0xf]
        %v2891 = vld [vmem:[%s2859 + $0x7c] sm:$0xf]
        %v2892 = vunpack.c.l.b16 %v2830
        %v2893 = vunpack.c.h.b16 %v2830
        %v2894 = vunpack.c.l.b16 %v2834
        %v2895 = vunpack.c.h.b16 %v2834
        %v2896 = vunpack.c.l.b16 %v2838
        %v2897 = vunpack.c.h.b16 %v2838
        %v2898 = vunpack.c.l.b16 %v2842
        %v2899 = vunpack.c.h.b16 %v2842
        %v2900 = vunpack.c.l.b16 %v2846
        %v2901 = vunpack.c.h.b16 %v2846
        %v2902 = vunpack.c.l.b16 %v2850
        %v2903 = vunpack.c.h.b16 %v2850
        %v2904 = vunpack.c.l.b16 %v2854
        %v2905 = vunpack.c.h.b16 %v2854
        %v2906 = vunpack.c.l.b16 %v2858
        %v2907 = vunpack.c.h.b16 %v2858
        %v2908 = vpack.c.b16 %v2894, %v2892
        %v2909 = vpack.c.b16 %v2895, %v2893
        %v2910 = vpack.c.b16 %v2898, %v2896
        %v2911 = vpack.c.b16 %v2899, %v2897
        %v2912 = vpack.c.b16 %v2902, %v2900
        %v2913 = vpack.c.b16 %v2903, %v2901
        %v2914 = vpack.c.b16 %v2906, %v2904
        %v2915 = vpack.c.b16 %v2907, %v2905
        %v2956 = vunpack.c.l.b16 %v2860
        %v2957 = vunpack.c.l.b16 %v2861
        %v2958 = vunpack.c.l.b16 %v2862
        %v2959 = vunpack.c.l.b16 %v2863
        %v2960 = vunpack.c.l.b16 %v2864
        %v2961 = vunpack.c.l.b16 %v2865
        %v2962 = vunpack.c.l.b16 %v2866
        %v2963 = vunpack.c.l.b16 %v2867
        %v2964 = vunpack.c.l.b16 %v2868
        %v2965 = vunpack.c.l.b16 %v2869
        %v2966 = vunpack.c.l.b16 %v2870
        %v2967 = vunpack.c.l.b16 %v2871
        %v2968 = vunpack.c.l.b16 %v2872
        %v2969 = vunpack.c.l.b16 %v2873
        %v2970 = vunpack.c.l.b16 %v2874
        %v2971 = vunpack.c.l.b16 %v2875
        %v2972 = vunpack.c.l.b16 %v2876
        %v2973 = vunpack.c.l.b16 %v2877
        %v2974 = vunpack.c.l.b16 %v2878
        %v2975 = vunpack.c.l.b16 %v2879
        %v2976 = vunpack.c.l.b16 %v2880
        %v2977 = vunpack.c.l.b16 %v2881
        %v2978 = vunpack.c.l.b16 %v2882
        %v2979 = vunpack.c.l.b16 %v2883
        %v2980 = vunpack.c.l.b16 %v2884
        %v2981 = vunpack.c.l.b16 %v2885
        %v2982 = vunpack.c.l.b16 %v2886
        %v2983 = vunpack.c.l.b16 %v2887
        %v2984 = vunpack.c.l.b16 %v2888
        %v2985 = vunpack.c.l.b16 %v2889
        %v2986 = vunpack.c.l.b16 %v2890
        %v2987 = vunpack.c.l.b16 %v2891
        %v2988 = vpack.c.b16 %v2957, %v2956
        %v2989 = vpack.c.b16 %v2959, %v2958
        %v2990 = vpack.c.b16 %v2961, %v2960
        %v2991 = vpack.c.b16 %v2963, %v2962
        %v2992 = vpack.c.b16 %v2965, %v2964
        %v2993 = vpack.c.b16 %v2967, %v2966
        %v2994 = vpack.c.b16 %v2969, %v2968
        %v2995 = vpack.c.b16 %v2971, %v2970
        %v2996 = vpack.c.b16 %v2973, %v2972
        %v2997 = vpack.c.b16 %v2975, %v2974
        %v2998 = vpack.c.b16 %v2977, %v2976
        %v2999 = vpack.c.b16 %v2979, %v2978
        %v3000 = vpack.c.b16 %v2981, %v2980
        %v3001 = vpack.c.b16 %v2983, %v2982
        %v3002 = vpack.c.b16 %v2985, %v2984
        %v3003 = vpack.c.b16 %v2987, %v2986
        %3020 = vmatprep.subr.bf16.mxu0 0
        %3021 = vmatpush1.bf16.msra.mxu0 %v2995
        %3022 = vmatprep.subr.bf16.mxu0 0
        %3023 = vmatpush1.bf16.msra.mxu0 %v2994
        %3024 = vmatprep.subr.bf16.mxu0 0
        %3025 = vmatpush1.bf16.msra.mxu0 %v2993
        %3026 = vmatprep.subr.bf16.mxu0 0
        %3027 = vmatpush1.bf16.msra.mxu0 %v2992
        %3028 = vmatprep.subr.bf16.mxu0 0
        %3029 = vmatpush1.bf16.msra.mxu0 %v2991
        %3030 = vmatprep.subr.bf16.mxu0 0
        %3031 = vmatpush1.bf16.msra.mxu0 %v2990
        %3032 = vmatprep.subr.bf16.mxu0 0
        %3033 = vmatpush1.bf16.msra.mxu0 %v2989
        %3034 = vmatprep.subr.bf16.mxu0 0
        %3035 = vmatpush1.bf16.msra.mxu0 %v2988
        %3036 = vmatprep.subr.bf16.mxu0 0
        %3037 = vmatpush2.bf16.msra.mxu0 %v3003
        %3038 = vmatprep.subr.bf16.mxu0 0
        %3039 = vmatpush2.bf16.msra.mxu0 %v3002
        %3040 = vmatprep.subr.bf16.mxu0 0
        %3041 = vmatpush2.bf16.msra.mxu0 %v3001
        %3042 = vmatprep.subr.bf16.mxu0 0
        %3043 = vmatpush2.bf16.msra.mxu0 %v3000
        %3044 = vmatprep.subr.bf16.mxu0 0
        %3045 = vmatpush2.bf16.msra.mxu0 %v2999
        %3046 = vmatprep.subr.bf16.mxu0 0
        %3047 = vmatpush2.bf16.msra.mxu0 %v2998
        %3048 = vmatprep.subr.bf16.mxu0 0
        %3049 = vmatpush2.bf16.msra.mxu0 %v2997
        %3050 = vmatprep.subr.bf16.mxu0 0
        %3051 = vmatpush2.bf16.msra.mxu0 %v2996
        %3052 = vmatprep.mubr.bf16.mxu0 %v2909
        %3053 = vmatmul.mubr.bf16.gmra.mxu0 %v2908
        %v3054 = vpop.f32.mrf.mxu0
        %v3055 = vadd.f32 0.0, %v3054
        %v3056 = vpop.f32.mrf.mxu0
        %v3057 = vpop.f32.mrf.mxu0
        %v3058 = vadd.f32 0.0, %v3057
        %v3059 = vpop.f32.mrf.mxu0
        %3060 = vmatprep.mubr.bf16.mxu0 %v2911
        %3061 = vmatmul.mubr.bf16.gmra.mxu0 %v2910
        %v3062 = vpop.f32.mrf.mxu0
        %v3063 = vadd.f32 0.0, %v3062
        %v3064 = vpop.f32.mrf.mxu0
        %v3065 = vpop.f32.mrf.mxu0
        %v3066 = vadd.f32 0.0, %v3065
        %v3067 = vpop.f32.mrf.mxu0
        %3068 = vmatprep.mubr.bf16.mxu0 %v2913
        %3069 = vmatmul.mubr.bf16.gmra.mxu0 %v2912
        %v3070 = vpop.f32.mrf.mxu0
        %v3071 = vadd.f32 0.0, %v3070
        %v3072 = vpop.f32.mrf.mxu0
        %v3073 = vpop.f32.mrf.mxu0
        %v3074 = vadd.f32 0.0, %v3073
        %v3075 = vpop.f32.mrf.mxu0
        %3076 = vmatprep.mubr.bf16.mxu0 %v2915
        %3077 = vmatmul.mubr.bf16.gmra.mxu0 %v2914
        %v3078 = vpop.f32.mrf.mxu0
        %v3079 = vadd.f32 0.0, %v3078
        %v3080 = vpop.f32.mrf.mxu0
        %v3081 = vpop.f32.mrf.mxu0
        %v3082 = vadd.f32 0.0, %v3081
        %v3083 = vpop.f32.mrf.mxu0
        %3084 = vdwg.mxu0
        %v3085 = vadd.f32 %v2794, %v3055
        %v3086 = vadd.f32 %v2797, %v3058
        %v3087 = vadd.f32 %v2802, %v3063
        %v3088 = vadd.f32 %v2805, %v3066
        %v3089 = vadd.f32 %v2810, %v3071
        %v3090 = vadd.f32 %v2813, %v3074
        %v3091 = vadd.f32 %v2818, %v3079
        %v3092 = vadd.f32 %v2821, %v3082
        %v3095 = vunpack.c.l.b16 %v2206
        %v3096 = vunpack.c.l.b16 %v2207
        %s3097 = scalar_lea.vmem [#allocation6], 384
        %v3098 = vld [vmem:[%s3097] sm:$0xf]
        %v3099 = vld [vmem:[%s3097 + $0x4] sm:$0xf]
        %v3100 = vld [vmem:[%s3097 + $0x8] sm:$0xf]
        %v3101 = vld [vmem:[%s3097 + $0xc] sm:$0xf]
        %v3102 = vld [vmem:[%s3097 + $0x10] sm:$0xf]
        %v3103 = vld [vmem:[%s3097 + $0x14] sm:$0xf]
        %v3104 = vld [vmem:[%s3097 + $0x18] sm:$0xf]
        %v3105 = vld [vmem:[%s3097 + $0x1c] sm:$0xf]
        %v3106 = vld [vmem:[%s3097 + $0x20] sm:$0xf]
        %v3107 = vld [vmem:[%s3097 + $0x24] sm:$0xf]
        %v3108 = vld [vmem:[%s3097 + $0x28] sm:$0xf]
        %v3109 = vld [vmem:[%s3097 + $0x2c] sm:$0xf]
        %v3110 = vld [vmem:[%s3097 + $0x30] sm:$0xf]
        %v3111 = vld [vmem:[%s3097 + $0x34] sm:$0xf]
        %v3112 = vld [vmem:[%s3097 + $0x38] sm:$0xf]
        %v3113 = vld [vmem:[%s3097 + $0x3c] sm:$0xf]
        %v3114 = vld [vmem:[%s3097 + $0x40] sm:$0xf]
        %v3115 = vld [vmem:[%s3097 + $0x44] sm:$0xf]
        %v3116 = vld [vmem:[%s3097 + $0x48] sm:$0xf]
        %v3117 = vld [vmem:[%s3097 + $0x4c] sm:$0xf]
        %v3118 = vld [vmem:[%s3097 + $0x50] sm:$0xf]
        %v3119 = vld [vmem:[%s3097 + $0x54] sm:$0xf]
        %v3120 = vld [vmem:[%s3097 + $0x58] sm:$0xf]
        %v3121 = vld [vmem:[%s3097 + $0x5c] sm:$0xf]
        %v3122 = vld [vmem:[%s3097 + $0x60] sm:$0xf]
        %v3123 = vld [vmem:[%s3097 + $0x64] sm:$0xf]
        %v3124 = vld [vmem:[%s3097 + $0x68] sm:$0xf]
        %v3125 = vld [vmem:[%s3097 + $0x6c] sm:$0xf]
        %v3126 = vld [vmem:[%s3097 + $0x70] sm:$0xf]
        %v3127 = vld [vmem:[%s3097 + $0x74] sm:$0xf]
        %v3128 = vld [vmem:[%s3097 + $0x78] sm:$0xf]
        %v3129 = vld [vmem:[%s3097 + $0x7c] sm:$0xf]
        %v3130 = vpack.c.b16 %v2230, %v2228
        %v3131 = vpack.c.b16 %v2231, %v2229
        %v3132 = vpack.c.b16 %v2234, %v2232
        %v3133 = vpack.c.b16 %v2235, %v2233
        %v3134 = vpack.c.b16 %v2238, %v2236
        %v3135 = vpack.c.b16 %v2239, %v2237
        %v3136 = vpack.c.b16 %v3095, %v2240
        %v3137 = vpack.c.b16 %v3096, %v2241
        %v3178 = vunpack.c.l.b16 %v3098
        %v3179 = vunpack.c.l.b16 %v3099
        %v3180 = vunpack.c.l.b16 %v3100
        %v3181 = vunpack.c.l.b16 %v3101
        %v3182 = vunpack.c.l.b16 %v3102
        %v3183 = vunpack.c.l.b16 %v3103
        %v3184 = vunpack.c.l.b16 %v3104
        %v3185 = vunpack.c.l.b16 %v3105
        %v3186 = vunpack.c.l.b16 %v3106
        %v3187 = vunpack.c.l.b16 %v3107
        %v3188 = vunpack.c.l.b16 %v3108
        %v3189 = vunpack.c.l.b16 %v3109
        %v3190 = vunpack.c.l.b16 %v3110
        %v3191 = vunpack.c.l.b16 %v3111
        %v3192 = vunpack.c.l.b16 %v3112
        %v3193 = vunpack.c.l.b16 %v3113
        %v3194 = vunpack.c.l.b16 %v3114
        %v3195 = vunpack.c.l.b16 %v3115
        %v3196 = vunpack.c.l.b16 %v3116
        %v3197 = vunpack.c.l.b16 %v3117
        %v3198 = vunpack.c.l.b16 %v3118
        %v3199 = vunpack.c.l.b16 %v3119
        %v3200 = vunpack.c.l.b16 %v3120
        %v3201 = vunpack.c.l.b16 %v3121
        %v3202 = vunpack.c.l.b16 %v3122
        %v3203 = vunpack.c.l.b16 %v3123
        %v3204 = vunpack.c.l.b16 %v3124
        %v3205 = vunpack.c.l.b16 %v3125
        %v3206 = vunpack.c.l.b16 %v3126
        %v3207 = vunpack.c.l.b16 %v3127
        %v3208 = vunpack.c.l.b16 %v3128
        %v3209 = vunpack.c.l.b16 %v3129
        %v3210 = vpack.c.b16 %v3179, %v3178
        %v3211 = vpack.c.b16 %v3181, %v3180
        %v3212 = vpack.c.b16 %v3183, %v3182
        %v3213 = vpack.c.b16 %v3185, %v3184
        %v3214 = vpack.c.b16 %v3187, %v3186
        %v3215 = vpack.c.b16 %v3189, %v3188
        %v3216 = vpack.c.b16 %v3191, %v3190
        %v3217 = vpack.c.b16 %v3193, %v3192
        %v3218 = vpack.c.b16 %v3195, %v3194
        %v3219 = vpack.c.b16 %v3197, %v3196
        %v3220 = vpack.c.b16 %v3199, %v3198
        %v3221 = vpack.c.b16 %v3201, %v3200
        %v3222 = vpack.c.b16 %v3203, %v3202
        %v3223 = vpack.c.b16 %v3205, %v3204
        %v3224 = vpack.c.b16 %v3207, %v3206
        %v3225 = vpack.c.b16 %v3209, %v3208
        %3242 = vmatprep.subr.bf16.mxu0 0
        %3243 = vmatpush1.bf16.msra.mxu0 %v3217
        %3244 = vmatprep.subr.bf16.mxu0 0
        %3245 = vmatpush1.bf16.msra.mxu0 %v3216
        %3246 = vmatprep.subr.bf16.mxu0 0
        %3247 = vmatpush1.bf16.msra.mxu0 %v3215
        %3248 = vmatprep.subr.bf16.mxu0 0
        %3249 = vmatpush1.bf16.msra.mxu0 %v3214
        %3250 = vmatprep.subr.bf16.mxu0 0
        %3251 = vmatpush1.bf16.msra.mxu0 %v3213
        %3252 = vmatprep.subr.bf16.mxu0 0
        %3253 = vmatpush1.bf16.msra.mxu0 %v3212
        %3254 = vmatprep.subr.bf16.mxu0 0
        %3255 = vmatpush1.bf16.msra.mxu0 %v3211
        %3256 = vmatprep.subr.bf16.mxu0 0
        %3257 = vmatpush1.bf16.msra.mxu0 %v3210
        %3258 = vmatprep.subr.bf16.mxu0 0
        %3259 = vmatpush2.bf16.msra.mxu0 %v3225
        %3260 = vmatprep.subr.bf16.mxu0 0
        %3261 = vmatpush2.bf16.msra.mxu0 %v3224
        %3262 = vmatprep.subr.bf16.mxu0 0
        %3263 = vmatpush2.bf16.msra.mxu0 %v3223
        %3264 = vmatprep.subr.bf16.mxu0 0
        %3265 = vmatpush2.bf16.msra.mxu0 %v3222
        %3266 = vmatprep.subr.bf16.mxu0 0
        %3267 = vmatpush2.bf16.msra.mxu0 %v3221
        %3268 = vmatprep.subr.bf16.mxu0 0
        %3269 = vmatpush2.bf16.msra.mxu0 %v3220
        %3270 = vmatprep.subr.bf16.mxu0 0
        %3271 = vmatpush2.bf16.msra.mxu0 %v3219
        %3272 = vmatprep.subr.bf16.mxu0 0
        %3273 = vmatpush2.bf16.msra.mxu0 %v3218
        %3274 = vmatprep.mubr.bf16.mxu0 %v3131
        %3275 = vmatmul.mubr.bf16.gmra.mxu0 %v3130
        %v3276 = vpop.f32.mrf.mxu0
        %v3277 = vadd.f32 0.0, %v3276
        %v3278 = vpop.f32.mrf.mxu0
        %v3279 = vpop.f32.mrf.mxu0
        %v3280 = vadd.f32 0.0, %v3279
        %v3281 = vpop.f32.mrf.mxu0
        %3282 = vmatprep.mubr.bf16.mxu0 %v3133
        %3283 = vmatmul.mubr.bf16.gmra.mxu0 %v3132
        %v3284 = vpop.f32.mrf.mxu0
        %v3285 = vadd.f32 0.0, %v3284
        %v3286 = vpop.f32.mrf.mxu0
        %v3287 = vpop.f32.mrf.mxu0
        %v3288 = vadd.f32 0.0, %v3287
        %v3289 = vpop.f32.mrf.mxu0
        %3290 = vmatprep.mubr.bf16.mxu0 %v3135
        %3291 = vmatmul.mubr.bf16.gmra.mxu0 %v3134
        %v3292 = vpop.f32.mrf.mxu0
        %v3293 = vadd.f32 0.0, %v3292
        %v3294 = vpop.f32.mrf.mxu0
        %v3295 = vpop.f32.mrf.mxu0
        %v3296 = vadd.f32 0.0, %v3295
        %v3297 = vpop.f32.mrf.mxu0
        %3298 = vmatprep.mubr.bf16.mxu0 %v3137
        %3299 = vmatmul.mubr.bf16.gmra.mxu0 %v3136
        %v3300 = vpop.f32.mrf.mxu0
        %v3301 = vadd.f32 0.0, %v3300
        %v3302 = vpop.f32.mrf.mxu0
        %v3303 = vpop.f32.mrf.mxu0
        %v3304 = vadd.f32 0.0, %v3303
        %v3305 = vpop.f32.mrf.mxu0
        %3306 = vdwg.mxu0
        %v3307 = vadd.f32 %v3085, %v3277
        %v3308 = vadd.f32 %v3086, %v3280
        %v3309 = vadd.f32 %v3087, %v3285
        %v3310 = vadd.f32 %v3088, %v3288
        %v3311 = vadd.f32 %v3089, %v3293
        %v3312 = vadd.f32 %v3090, %v3296
        %v3313 = vadd.f32 %v3091, %v3301
        %v3314 = vadd.f32 %v3092, %v3304
        %v3315 = vunpack.c.h.b16 %v2206
        %v3316 = vunpack.c.h.b16 %v2207
        %v3317 = vpack.c.b16 %v3096, %v3095
        %v3318 = vpack.c.b16 %v3316, %v3315
        %v3320 = vshrl.u32 %v3317, 16
        %v3322 = vrot.slane %v3320, 4
        %v3323 = vshll.u32 %v3317, 16
        %v3325 = vrot.slane %v3323, 5
        %v3326 = vor.u32 %v3322, %v3325
        %v3327 = vrot.slane %v3326, 4
        %v3329 = vshll.u32 %v3318, 16
        %v3331 = vrot.slane %v3329, 5
        %v3332 = vsel %vm2308, %v3327, %v3331
        %s3333 = scalar_lea.vmem [#allocation6], 512
        %v3334 = vld [vmem:[%s3333] sm:$0xf]
        %v3335 = vld [vmem:[%s3333 + $0x4] sm:$0xf]
        %v3336 = vld [vmem:[%s3333 + $0x8] sm:$0xf]
        %v3337 = vld [vmem:[%s3333 + $0xc] sm:$0xf]
        %v3338 = vld [vmem:[%s3333 + $0x10] sm:$0xf]
        %v3339 = vld [vmem:[%s3333 + $0x14] sm:$0xf]
        %v3340 = vld [vmem:[%s3333 + $0x18] sm:$0xf]
        %v3341 = vld [vmem:[%s3333 + $0x1c] sm:$0xf]
        %v3342 = vld [vmem:[%s3333 + $0x20] sm:$0xf]
        %v3343 = vld [vmem:[%s3333 + $0x24] sm:$0xf]
        %v3344 = vld [vmem:[%s3333 + $0x28] sm:$0xf]
        %v3345 = vld [vmem:[%s3333 + $0x2c] sm:$0xf]
        %v3346 = vld [vmem:[%s3333 + $0x30] sm:$0xf]
        %v3347 = vld [vmem:[%s3333 + $0x34] sm:$0xf]
        %v3348 = vld [vmem:[%s3333 + $0x38] sm:$0xf]
        %v3349 = vld [vmem:[%s3333 + $0x3c] sm:$0xf]
        %v3350 = vld [vmem:[%s3333 + $0x40] sm:$0xf]
        %v3351 = vld [vmem:[%s3333 + $0x44] sm:$0xf]
        %v3352 = vld [vmem:[%s3333 + $0x48] sm:$0xf]
        %v3353 = vld [vmem:[%s3333 + $0x4c] sm:$0xf]
        %v3354 = vld [vmem:[%s3333 + $0x50] sm:$0xf]
        %v3355 = vld [vmem:[%s3333 + $0x54] sm:$0xf]
        %v3356 = vld [vmem:[%s3333 + $0x58] sm:$0xf]
        %v3357 = vld [vmem:[%s3333 + $0x5c] sm:$0xf]
        %v3358 = vld [vmem:[%s3333 + $0x60] sm:$0xf]
        %v3359 = vld [vmem:[%s3333 + $0x64] sm:$0xf]
        %v3360 = vld [vmem:[%s3333 + $0x68] sm:$0xf]
        %v3361 = vld [vmem:[%s3333 + $0x6c] sm:$0xf]
        %v3362 = vld [vmem:[%s3333 + $0x70] sm:$0xf]
        %v3363 = vld [vmem:[%s3333 + $0x74] sm:$0xf]
        %v3364 = vld [vmem:[%s3333 + $0x78] sm:$0xf]
        %v3365 = vld [vmem:[%s3333 + $0x7c] sm:$0xf]
        %v3366 = vunpack.c.l.b16 %v3332
        %v3367 = vunpack.c.h.b16 %v3332
        %v3368 = vpack.c.b16 %v2458, %v2456
        %v3369 = vpack.c.b16 %v2459, %v2457
        %v3370 = vpack.c.b16 %v2462, %v2460
        %v3371 = vpack.c.b16 %v2463, %v2461
        %v3372 = vpack.c.b16 %v2466, %v2464
        %v3373 = vpack.c.b16 %v2467, %v2465
        %v3374 = vpack.c.b16 %v3366, %v2468
        %v3375 = vpack.c.b16 %v3367, %v2469
        %v3416 = vunpack.c.l.b16 %v3334
        %v3417 = vunpack.c.l.b16 %v3335
        %v3418 = vunpack.c.l.b16 %v3336
        %v3419 = vunpack.c.l.b16 %v3337
        %v3420 = vunpack.c.l.b16 %v3338
        %v3421 = vunpack.c.l.b16 %v3339
        %v3422 = vunpack.c.l.b16 %v3340
        %v3423 = vunpack.c.l.b16 %v3341
        %v3424 = vunpack.c.l.b16 %v3342
        %v3425 = vunpack.c.l.b16 %v3343
        %v3426 = vunpack.c.l.b16 %v3344
        %v3427 = vunpack.c.l.b16 %v3345
        %v3428 = vunpack.c.l.b16 %v3346
        %v3429 = vunpack.c.l.b16 %v3347
        %v3430 = vunpack.c.l.b16 %v3348
        %v3431 = vunpack.c.l.b16 %v3349
        %v3432 = vunpack.c.l.b16 %v3350
        %v3433 = vunpack.c.l.b16 %v3351
        %v3434 = vunpack.c.l.b16 %v3352
        %v3435 = vunpack.c.l.b16 %v3353
        %v3436 = vunpack.c.l.b16 %v3354
        %v3437 = vunpack.c.l.b16 %v3355
        %v3438 = vunpack.c.l.b16 %v3356
        %v3439 = vunpack.c.l.b16 %v3357
        %v3440 = vunpack.c.l.b16 %v3358
        %v3441 = vunpack.c.l.b16 %v3359
        %v3442 = vunpack.c.l.b16 %v3360
        %v3443 = vunpack.c.l.b16 %v3361
        %v3444 = vunpack.c.l.b16 %v3362
        %v3445 = vunpack.c.l.b16 %v3363
        %v3446 = vunpack.c.l.b16 %v3364
        %v3447 = vunpack.c.l.b16 %v3365
        %v3448 = vpack.c.b16 %v3417, %v3416
        %v3449 = vpack.c.b16 %v3419, %v3418
        %v3450 = vpack.c.b16 %v3421, %v3420
        %v3451 = vpack.c.b16 %v3423, %v3422
        %v3452 = vpack.c.b16 %v3425, %v3424
        %v3453 = vpack.c.b16 %v3427, %v3426
        %v3454 = vpack.c.b16 %v3429, %v3428
        %v3455 = vpack.c.b16 %v3431, %v3430
        %v3456 = vpack.c.b16 %v3433, %v3432
        %v3457 = vpack.c.b16 %v3435, %v3434
        %v3458 = vpack.c.b16 %v3437, %v3436
        %v3459 = vpack.c.b16 %v3439, %v3438
        %v3460 = vpack.c.b16 %v3441, %v3440
        %v3461 = vpack.c.b16 %v3443, %v3442
        %v3462 = vpack.c.b16 %v3445, %v3444
        %v3463 = vpack.c.b16 %v3447, %v3446
        %3480 = vmatprep.subr.bf16.mxu0 0
        %3481 = vmatpush1.bf16.msra.mxu0 %v3455
        %3482 = vmatprep.subr.bf16.mxu0 0
        %3483 = vmatpush1.bf16.msra.mxu0 %v3454
        %3484 = vmatprep.subr.bf16.mxu0 0
        %3485 = vmatpush1.bf16.msra.mxu0 %v3453
        %3486 = vmatprep.subr.bf16.mxu0 0
        %3487 = vmatpush1.bf16.msra.mxu0 %v3452
        %3488 = vmatprep.subr.bf16.mxu0 0
        %3489 = vmatpush1.bf16.msra.mxu0 %v3451
        %3490 = vmatprep.subr.bf16.mxu0 0
        %3491 = vmatpush1.bf16.msra.mxu0 %v3450
        %3492 = vmatprep.subr.bf16.mxu0 0
        %3493 = vmatpush1.bf16.msra.mxu0 %v3449
        %3494 = vmatprep.subr.bf16.mxu0 0
        %3495 = vmatpush1.bf16.msra.mxu0 %v3448
        %3496 = vmatprep.subr.bf16.mxu0 0
        %3497 = vmatpush2.bf16.msra.mxu0 %v3463
        %3498 = vmatprep.subr.bf16.mxu0 0
        %3499 = vmatpush2.bf16.msra.mxu0 %v3462
        %3500 = vmatprep.subr.bf16.mxu0 0
        %3501 = vmatpush2.bf16.msra.mxu0 %v3461
        %3502 = vmatprep.subr.bf16.mxu0 0
        %3503 = vmatpush2.bf16.msra.mxu0 %v3460
        %3504 = vmatprep.subr.bf16.mxu0 0
        %3505 = vmatpush2.bf16.msra.mxu0 %v3459
        %3506 = vmatprep.subr.bf16.mxu0 0
        %3507 = vmatpush2.bf16.msra.mxu0 %v3458
        %3508 = vmatprep.subr.bf16.mxu0 0
        %3509 = vmatpush2.bf16.msra.mxu0 %v3457
        %3510 = vmatprep.subr.bf16.mxu0 0
        %3511 = vmatpush2.bf16.msra.mxu0 %v3456
        %3512 = vmatprep.mubr.bf16.mxu0 %v3369
        %3513 = vmatmul.mubr.bf16.gmra.mxu0 %v3368
        %v3514 = vpop.f32.mrf.mxu0
        %v3515 = vadd.f32 0.0, %v3514
        %v3516 = vpop.f32.mrf.mxu0
        %v3517 = vpop.f32.mrf.mxu0
        %v3518 = vadd.f32 0.0, %v3517
        %v3519 = vpop.f32.mrf.mxu0
        %3520 = vmatprep.mubr.bf16.mxu0 %v3371
        %3521 = vmatmul.mubr.bf16.gmra.mxu0 %v3370
        %v3522 = vpop.f32.mrf.mxu0
        %v3523 = vadd.f32 0.0, %v3522
        %v3524 = vpop.f32.mrf.mxu0
        %v3525 = vpop.f32.mrf.mxu0
        %v3526 = vadd.f32 0.0, %v3525
        %v3527 = vpop.f32.mrf.mxu0
        %3528 = vmatprep.mubr.bf16.mxu0 %v3373
        %3529 = vmatmul.mubr.bf16.gmra.mxu0 %v3372
        %v3530 = vpop.f32.mrf.mxu0
        %v3531 = vadd.f32 0.0, %v3530
        %v3532 = vpop.f32.mrf.mxu0
        %v3533 = vpop.f32.mrf.mxu0
        %v3534 = vadd.f32 0.0, %v3533
        %v3535 = vpop.f32.mrf.mxu0
        %3536 = vmatprep.mubr.bf16.mxu0 %v3375
        %3537 = vmatmul.mubr.bf16.gmra.mxu0 %v3374
        %v3538 = vpop.f32.mrf.mxu0
        %v3539 = vadd.f32 0.0, %v3538
        %v3540 = vpop.f32.mrf.mxu0
        %v3541 = vpop.f32.mrf.mxu0
        %v3542 = vadd.f32 0.0, %v3541
        %v3543 = vpop.f32.mrf.mxu0
        %3544 = vdwg.mxu0
        %v3545 = vadd.f32 %v3307, %v3515
        %v3546 = vadd.f32 %v3308, %v3518
        %v3547 = vadd.f32 %v3309, %v3523
        %v3548 = vadd.f32 %v3310, %v3526
        %v3549 = vadd.f32 %v3311, %v3531
        %v3550 = vadd.f32 %v3312, %v3534
        %v3551 = vadd.f32 %v3313, %v3539
        %v3552 = vadd.f32 %v3314, %v3542
        %v3553 = vrot.slane %v3317, 5
        %v3554 = vrot.slane %v3553, 4
        %v3555 = vrot.slane %v3318, 5
        %v3556 = vsel %vm2826, %v3554, %v3555
        %s3557 = scalar_lea.vmem [#allocation6], 640
        %v3558 = vld [vmem:[%s3557] sm:$0xf]
        %v3559 = vld [vmem:[%s3557 + $0x4] sm:$0xf]
        %v3560 = vld [vmem:[%s3557 + $0x8] sm:$0xf]
        %v3561 = vld [vmem:[%s3557 + $0xc] sm:$0xf]
        %v3562 = vld [vmem:[%s3557 + $0x10] sm:$0xf]
        %v3563 = vld [vmem:[%s3557 + $0x14] sm:$0xf]
        %v3564 = vld [vmem:[%s3557 + $0x18] sm:$0xf]
        %v3565 = vld [vmem:[%s3557 + $0x1c] sm:$0xf]
        %v3566 = vld [vmem:[%s3557 + $0x20] sm:$0xf]
        %v3567 = vld [vmem:[%s3557 + $0x24] sm:$0xf]
        %v3568 = vld [vmem:[%s3557 + $0x28] sm:$0xf]
        %v3569 = vld [vmem:[%s3557 + $0x2c] sm:$0xf]
        %v3570 = vld [vmem:[%s3557 + $0x30] sm:$0xf]
        %v3571 = vld [vmem:[%s3557 + $0x34] sm:$0xf]
        %v3572 = vld [vmem:[%s3557 + $0x38] sm:$0xf]
        %v3573 = vld [vmem:[%s3557 + $0x3c] sm:$0xf]
        %v3574 = vld [vmem:[%s3557 + $0x40] sm:$0xf]
        %v3575 = vld [vmem:[%s3557 + $0x44] sm:$0xf]
        %v3576 = vld [vmem:[%s3557 + $0x48] sm:$0xf]
        %v3577 = vld [vmem:[%s3557 + $0x4c] sm:$0xf]
        %v3578 = vld [vmem:[%s3557 + $0x50] sm:$0xf]
        %v3579 = vld [vmem:[%s3557 + $0x54] sm:$0xf]
        %v3580 = vld [vmem:[%s3557 + $0x58] sm:$0xf]
        %v3581 = vld [vmem:[%s3557 + $0x5c] sm:$0xf]
        %v3582 = vld [vmem:[%s3557 + $0x60] sm:$0xf]
        %v3583 = vld [vmem:[%s3557 + $0x64] sm:$0xf]
        %v3584 = vld [vmem:[%s3557 + $0x68] sm:$0xf]
        %v3585 = vld [vmem:[%s3557 + $0x6c] sm:$0xf]
        %v3586 = vld [vmem:[%s3557 + $0x70] sm:$0xf]
        %v3587 = vld [vmem:[%s3557 + $0x74] sm:$0xf]
        %v3588 = vld [vmem:[%s3557 + $0x78] sm:$0xf]
        %v3589 = vld [vmem:[%s3557 + $0x7c] sm:$0xf]
        %v3590 = vunpack.c.l.b16 %v3556
        %v3591 = vunpack.c.h.b16 %v3556
        %v3592 = vpack.c.b16 %v2896, %v2894
        %v3593 = vpack.c.b16 %v2897, %v2895
        %v3594 = vpack.c.b16 %v2900, %v2898
        %v3595 = vpack.c.b16 %v2901, %v2899
        %v3596 = vpack.c.b16 %v2904, %v2902
        %v3597 = vpack.c.b16 %v2905, %v2903
        %v3598 = vpack.c.b16 %v3590, %v2906
        %v3599 = vpack.c.b16 %v3591, %v2907
        %v3640 = vunpack.c.l.b16 %v3558
        %v3641 = vunpack.c.l.b16 %v3559
        %v3642 = vunpack.c.l.b16 %v3560
        %v3643 = vunpack.c.l.b16 %v3561
        %v3644 = vunpack.c.l.b16 %v3562
        %v3645 = vunpack.c.l.b16 %v3563
        %v3646 = vunpack.c.l.b16 %v3564
        %v3647 = vunpack.c.l.b16 %v3565
        %v3648 = vunpack.c.l.b16 %v3566
        %v3649 = vunpack.c.l.b16 %v3567
        %v3650 = vunpack.c.l.b16 %v3568
        %v3651 = vunpack.c.l.b16 %v3569
        %v3652 = vunpack.c.l.b16 %v3570
        %v3653 = vunpack.c.l.b16 %v3571
        %v3654 = vunpack.c.l.b16 %v3572
        %v3655 = vunpack.c.l.b16 %v3573
        %v3656 = vunpack.c.l.b16 %v3574
        %v3657 = vunpack.c.l.b16 %v3575
        %v3658 = vunpack.c.l.b16 %v3576
        %v3659 = vunpack.c.l.b16 %v3577
        %v3660 = vunpack.c.l.b16 %v3578
        %v3661 = vunpack.c.l.b16 %v3579
        %v3662 = vunpack.c.l.b16 %v3580
        %v3663 = vunpack.c.l.b16 %v3581
        %v3664 = vunpack.c.l.b16 %v3582
        %v3665 = vunpack.c.l.b16 %v3583
        %v3666 = vunpack.c.l.b16 %v3584
        %v3667 = vunpack.c.l.b16 %v3585
        %v3668 = vunpack.c.l.b16 %v3586
        %v3669 = vunpack.c.l.b16 %v3587
        %v3670 = vunpack.c.l.b16 %v3588
        %v3671 = vunpack.c.l.b16 %v3589
        %v3672 = vpack.c.b16 %v3641, %v3640
        %v3673 = vpack.c.b16 %v3643, %v3642
        %v3674 = vpack.c.b16 %v3645, %v3644
        %v3675 = vpack.c.b16 %v3647, %v3646
        %v3676 = vpack.c.b16 %v3649, %v3648
        %v3677 = vpack.c.b16 %v3651, %v3650
        %v3678 = vpack.c.b16 %v3653, %v3652
        %v3679 = vpack.c.b16 %v3655, %v3654
        %v3680 = vpack.c.b16 %v3657, %v3656
        %v3681 = vpack.c.b16 %v3659, %v3658
        %v3682 = vpack.c.b16 %v3661, %v3660
        %v3683 = vpack.c.b16 %v3663, %v3662
        %v3684 = vpack.c.b16 %v3665, %v3664
        %v3685 = vpack.c.b16 %v3667, %v3666
        %v3686 = vpack.c.b16 %v3669, %v3668
        %v3687 = vpack.c.b16 %v3671, %v3670
        %3704 = vmatprep.subr.bf16.mxu0 0
        %3705 = vmatpush1.bf16.msra.mxu0 %v3679
        %3706 = vmatprep.subr.bf16.mxu0 0
        %3707 = vmatpush1.bf16.msra.mxu0 %v3678
        %3708 = vmatprep.subr.bf16.mxu0 0
        %3709 = vmatpush1.bf16.msra.mxu0 %v3677
        %3710 = vmatprep.subr.bf16.mxu0 0
        %3711 = vmatpush1.bf16.msra.mxu0 %v3676
        %3712 = vmatprep.subr.bf16.mxu0 0
        %3713 = vmatpush1.bf16.msra.mxu0 %v3675
        %3714 = vmatprep.subr.bf16.mxu0 0
        %3715 = vmatpush1.bf16.msra.mxu0 %v3674
        %3716 = vmatprep.subr.bf16.mxu0 0
        %3717 = vmatpush1.bf16.msra.mxu0 %v3673
        %3718 = vmatprep.subr.bf16.mxu0 0
        %3719 = vmatpush1.bf16.msra.mxu0 %v3672
        %3720 = vmatprep.subr.bf16.mxu0 0
        %3721 = vmatpush2.bf16.msra.mxu0 %v3687
        %3722 = vmatprep.subr.bf16.mxu0 0
        %3723 = vmatpush2.bf16.msra.mxu0 %v3686
        %3724 = vmatprep.subr.bf16.mxu0 0
        %3725 = vmatpush2.bf16.msra.mxu0 %v3685
        %3726 = vmatprep.subr.bf16.mxu0 0
        %3727 = vmatpush2.bf16.msra.mxu0 %v3684
        %3728 = vmatprep.subr.bf16.mxu0 0
        %3729 = vmatpush2.bf16.msra.mxu0 %v3683
        %3730 = vmatprep.subr.bf16.mxu0 0
        %3731 = vmatpush2.bf16.msra.mxu0 %v3682
        %3732 = vmatprep.subr.bf16.mxu0 0
        %3733 = vmatpush2.bf16.msra.mxu0 %v3681
        %3734 = vmatprep.subr.bf16.mxu0 0
        %3735 = vmatpush2.bf16.msra.mxu0 %v3680
        %3736 = vmatprep.mubr.bf16.mxu0 %v3593
        %3737 = vmatmul.mubr.bf16.gmra.mxu0 %v3592
        %v3738 = vpop.f32.mrf.mxu0
        %v3739 = vadd.f32 0.0, %v3738
        %v3740 = vpop.f32.mrf.mxu0
        %v3741 = vpop.f32.mrf.mxu0
        %v3742 = vadd.f32 0.0, %v3741
        %v3743 = vpop.f32.mrf.mxu0
        %3744 = vmatprep.mubr.bf16.mxu0 %v3595
        %3745 = vmatmul.mubr.bf16.gmra.mxu0 %v3594
        %v3746 = vpop.f32.mrf.mxu0
        %v3747 = vadd.f32 0.0, %v3746
        %v3748 = vpop.f32.mrf.mxu0
        %v3749 = vpop.f32.mrf.mxu0
        %v3750 = vadd.f32 0.0, %v3749
        %v3751 = vpop.f32.mrf.mxu0
        %3752 = vmatprep.mubr.bf16.mxu0 %v3597
        %3753 = vmatmul.mubr.bf16.gmra.mxu0 %v3596
        %v3754 = vpop.f32.mrf.mxu0
        %v3755 = vadd.f32 0.0, %v3754
        %v3756 = vpop.f32.mrf.mxu0
        %v3757 = vpop.f32.mrf.mxu0
        %v3758 = vadd.f32 0.0, %v3757
        %v3759 = vpop.f32.mrf.mxu0
        %3760 = vmatprep.mubr.bf16.mxu0 %v3599
        %3761 = vmatmul.mubr.bf16.gmra.mxu0 %v3598
        %v3762 = vpop.f32.mrf.mxu0
        %v3763 = vadd.f32 0.0, %v3762
        %v3764 = vpop.f32.mrf.mxu0
        %v3765 = vpop.f32.mrf.mxu0
        %v3766 = vadd.f32 0.0, %v3765
        %v3767 = vpop.f32.mrf.mxu0
        %3768 = vdwg.mxu0
        %v3769 = vadd.f32 %v3545, %v3739
        %v3770 = vadd.f32 %v3546, %v3742
        %v3771 = vadd.f32 %v3547, %v3747
        %v3772 = vadd.f32 %v3548, %v3750
        %v3773 = vadd.f32 %v3549, %v3755
        %v3774 = vadd.f32 %v3550, %v3758
        %v3775 = vadd.f32 %v3551, %v3763
        %v3776 = vadd.f32 %v3552, %v3766
        %v3779 = vunpack.c.l.b16 %v2208
        %v3780 = vunpack.c.l.b16 %v2209
        %s3781 = scalar_lea.vmem [#allocation6], 768
        %v3782 = vld [vmem:[%s3781] sm:$0xf]
        %v3783 = vld [vmem:[%s3781 + $0x4] sm:$0xf]
        %v3784 = vld [vmem:[%s3781 + $0x8] sm:$0xf]
        %v3785 = vld [vmem:[%s3781 + $0xc] sm:$0xf]
        %v3786 = vld [vmem:[%s3781 + $0x10] sm:$0xf]
        %v3787 = vld [vmem:[%s3781 + $0x14] sm:$0xf]
        %v3788 = vld [vmem:[%s3781 + $0x18] sm:$0xf]
        %v3789 = vld [vmem:[%s3781 + $0x1c] sm:$0xf]
        %v3790 = vld [vmem:[%s3781 + $0x20] sm:$0xf]
        %v3791 = vld [vmem:[%s3781 + $0x24] sm:$0xf]
        %v3792 = vld [vmem:[%s3781 + $0x28] sm:$0xf]
        %v3793 = vld [vmem:[%s3781 + $0x2c] sm:$0xf]
        %v3794 = vld [vmem:[%s3781 + $0x30] sm:$0xf]
        %v3795 = vld [vmem:[%s3781 + $0x34] sm:$0xf]
        %v3796 = vld [vmem:[%s3781 + $0x38] sm:$0xf]
        %v3797 = vld [vmem:[%s3781 + $0x3c] sm:$0xf]
        %v3798 = vld [vmem:[%s3781 + $0x40] sm:$0xf]
        %v3799 = vld [vmem:[%s3781 + $0x44] sm:$0xf]
        %v3800 = vld [vmem:[%s3781 + $0x48] sm:$0xf]
        %v3801 = vld [vmem:[%s3781 + $0x4c] sm:$0xf]
        %v3802 = vld [vmem:[%s3781 + $0x50] sm:$0xf]
        %v3803 = vld [vmem:[%s3781 + $0x54] sm:$0xf]
        %v3804 = vld [vmem:[%s3781 + $0x58] sm:$0xf]
        %v3805 = vld [vmem:[%s3781 + $0x5c] sm:$0xf]
        %v3806 = vld [vmem:[%s3781 + $0x60] sm:$0xf]
        %v3807 = vld [vmem:[%s3781 + $0x64] sm:$0xf]
        %v3808 = vld [vmem:[%s3781 + $0x68] sm:$0xf]
        %v3809 = vld [vmem:[%s3781 + $0x6c] sm:$0xf]
        %v3810 = vld [vmem:[%s3781 + $0x70] sm:$0xf]
        %v3811 = vld [vmem:[%s3781 + $0x74] sm:$0xf]
        %v3812 = vld [vmem:[%s3781 + $0x78] sm:$0xf]
        %v3813 = vld [vmem:[%s3781 + $0x7c] sm:$0xf]
        %v3814 = vpack.c.b16 %v3779, %v3095
        %v3815 = vpack.c.b16 %v3780, %v3096
        %v3850 = vunpack.c.l.b16 %v3782
        %v3851 = vunpack.c.l.b16 %v3783
        %v3852 = vunpack.c.l.b16 %v3784
        %v3853 = vunpack.c.l.b16 %v3785
        %v3854 = vunpack.c.l.b16 %v3786
        %v3855 = vunpack.c.l.b16 %v3787
        %v3856 = vunpack.c.l.b16 %v3788
        %v3857 = vunpack.c.l.b16 %v3789
        %v3858 = vunpack.c.l.b16 %v3790
        %v3859 = vunpack.c.l.b16 %v3791
        %v3860 = vunpack.c.l.b16 %v3792
        %v3861 = vunpack.c.l.b16 %v3793
        %v3862 = vunpack.c.l.b16 %v3794
        %v3863 = vunpack.c.l.b16 %v3795
        %v3864 = vunpack.c.l.b16 %v3796
        %v3865 = vunpack.c.l.b16 %v3797
        %v3866 = vunpack.c.l.b16 %v3798
        %v3867 = vunpack.c.l.b16 %v3799
        %v3868 = vunpack.c.l.b16 %v3800
        %v3869 = vunpack.c.l.b16 %v3801
        %v3870 = vunpack.c.l.b16 %v3802
        %v3871 = vunpack.c.l.b16 %v3803
        %v3872 = vunpack.c.l.b16 %v3804
        %v3873 = vunpack.c.l.b16 %v3805
        %v3874 = vunpack.c.l.b16 %v3806
        %v3875 = vunpack.c.l.b16 %v3807
        %v3876 = vunpack.c.l.b16 %v3808
        %v3877 = vunpack.c.l.b16 %v3809
        %v3878 = vunpack.c.l.b16 %v3810
        %v3879 = vunpack.c.l.b16 %v3811
        %v3880 = vunpack.c.l.b16 %v3812
        %v3881 = vunpack.c.l.b16 %v3813
        %v3882 = vpack.c.b16 %v3851, %v3850
        %v3883 = vpack.c.b16 %v3853, %v3852
        %v3884 = vpack.c.b16 %v3855, %v3854
        %v3885 = vpack.c.b16 %v3857, %v3856
        %v3886 = vpack.c.b16 %v3859, %v3858
        %v3887 = vpack.c.b16 %v3861, %v3860
        %v3888 = vpack.c.b16 %v3863, %v3862
        %v3889 = vpack.c.b16 %v3865, %v3864
        %v3890 = vpack.c.b16 %v3867, %v3866
        %v3891 = vpack.c.b16 %v3869, %v3868
        %v3892 = vpack.c.b16 %v3871, %v3870
        %v3893 = vpack.c.b16 %v3873, %v3872
        %v3894 = vpack.c.b16 %v3875, %v3874
        %v3895 = vpack.c.b16 %v3877, %v3876
        %v3896 = vpack.c.b16 %v3879, %v3878
        %v3897 = vpack.c.b16 %v3881, %v3880
        %3914 = vmatprep.subr.bf16.mxu0 0
        %3915 = vmatpush1.bf16.msra.mxu0 %v3889
        %3916 = vmatprep.subr.bf16.mxu0 0
        %3917 = vmatpush1.bf16.msra.mxu0 %v3888
        %3918 = vmatprep.subr.bf16.mxu0 0
        %3919 = vmatpush1.bf16.msra.mxu0 %v3887
        %3920 = vmatprep.subr.bf16.mxu0 0
        %3921 = vmatpush1.bf16.msra.mxu0 %v3886
        %3922 = vmatprep.subr.bf16.mxu0 0
        %3923 = vmatpush1.bf16.msra.mxu0 %v3885
        %3924 = vmatprep.subr.bf16.mxu0 0
        %3925 = vmatpush1.bf16.msra.mxu0 %v3884
        %3926 = vmatprep.subr.bf16.mxu0 0
        %3927 = vmatpush1.bf16.msra.mxu0 %v3883
        %3928 = vmatprep.subr.bf16.mxu0 0
        %3929 = vmatpush1.bf16.msra.mxu0 %v3882
        %3930 = vmatprep.subr.bf16.mxu0 0
        %3931 = vmatpush2.bf16.msra.mxu0 %v3897
        %3932 = vmatprep.subr.bf16.mxu0 0
        %3933 = vmatpush2.bf16.msra.mxu0 %v3896
        %3934 = vmatprep.subr.bf16.mxu0 0
        %3935 = vmatpush2.bf16.msra.mxu0 %v3895
        %3936 = vmatprep.subr.bf16.mxu0 0
        %3937 = vmatpush2.bf16.msra.mxu0 %v3894
        %3938 = vmatprep.subr.bf16.mxu0 0
        %3939 = vmatpush2.bf16.msra.mxu0 %v3893
        %3940 = vmatprep.subr.bf16.mxu0 0
        %3941 = vmatpush2.bf16.msra.mxu0 %v3892
        %3942 = vmatprep.subr.bf16.mxu0 0
        %3943 = vmatpush2.bf16.msra.mxu0 %v3891
        %3944 = vmatprep.subr.bf16.mxu0 0
        %3945 = vmatpush2.bf16.msra.mxu0 %v3890
        %3946 = vmatprep.mubr.bf16.mxu0 %v2650
        %3947 = vmatmul.mubr.bf16.gmra.mxu0 %v2649
        %v3948 = vpop.f32.mrf.mxu0
        %v3949 = vadd.f32 0.0, %v3948
        %v3950 = vpop.f32.mrf.mxu0
        %v3951 = vpop.f32.mrf.mxu0
        %v3952 = vadd.f32 0.0, %v3951
        %v3953 = vpop.f32.mrf.mxu0
        %3954 = vmatprep.mubr.bf16.mxu0 %v2652
        %3955 = vmatmul.mubr.bf16.gmra.mxu0 %v2651
        %v3956 = vpop.f32.mrf.mxu0
        %v3957 = vadd.f32 0.0, %v3956
        %v3958 = vpop.f32.mrf.mxu0
        %v3959 = vpop.f32.mrf.mxu0
        %v3960 = vadd.f32 0.0, %v3959
        %v3961 = vpop.f32.mrf.mxu0
        %3962 = vmatprep.mubr.bf16.mxu0 %v2654
        %3963 = vmatmul.mubr.bf16.gmra.mxu0 %v2653
        %v3964 = vpop.f32.mrf.mxu0
        %v3965 = vadd.f32 0.0, %v3964
        %v3966 = vpop.f32.mrf.mxu0
        %v3967 = vpop.f32.mrf.mxu0
        %v3968 = vadd.f32 0.0, %v3967
        %v3969 = vpop.f32.mrf.mxu0
        %3970 = vmatprep.mubr.bf16.mxu0 %v3815
        %3971 = vmatmul.mubr.bf16.gmra.mxu0 %v3814
        %v3972 = vpop.f32.mrf.mxu0
        %v3973 = vadd.f32 0.0, %v3972
        %v3974 = vpop.f32.mrf.mxu0
        %v3975 = vpop.f32.mrf.mxu0
        %v3976 = vadd.f32 0.0, %v3975
        %v3977 = vpop.f32.mrf.mxu0
        %3978 = vdwg.mxu0
        %v3979 = vadd.f32 %v3769, %v3949
        %v3980 = vadd.f32 %v3770, %v3952
        %v3981 = vadd.f32 %v3771, %v3957
        %v3982 = vadd.f32 %v3772, %v3960
        %v3983 = vadd.f32 %v3773, %v3965
        %v3984 = vadd.f32 %v3774, %v3968
        %v3985 = vadd.f32 %v3775, %v3973
        %v3986 = vadd.f32 %v3776, %v3976
        %v3987 = vunpack.c.h.b16 %v2208
        %v3988 = vunpack.c.h.b16 %v2209
        %v3989 = vpack.c.b16 %v3780, %v3779
        %v3990 = vpack.c.b16 %v3988, %v3987
        %v3992 = vshrl.u32 %v3989, 16
        %v3994 = vrot.slane %v3992, 4
        %v3995 = vshll.u32 %v3989, 16
        %v3997 = vrot.slane %v3995, 5
        %v3998 = vor.u32 %v3994, %v3997
        %v3999 = vrot.slane %v3998, 4
        %v4001 = vshll.u32 %v3990, 16
        %v4003 = vrot.slane %v4001, 5
        %v4004 = vsel %vm2308, %v3999, %v4003
        %s4005 = scalar_lea.vmem [#allocation6], 896
        %v4006 = vld [vmem:[%s4005] sm:$0xf]
        %v4007 = vld [vmem:[%s4005 + $0x4] sm:$0xf]
        %v4008 = vld [vmem:[%s4005 + $0x8] sm:$0xf]
        %v4009 = vld [vmem:[%s4005 + $0xc] sm:$0xf]
        %v4010 = vld [vmem:[%s4005 + $0x10] sm:$0xf]
        %v4011 = vld [vmem:[%s4005 + $0x14] sm:$0xf]
        %v4012 = vld [vmem:[%s4005 + $0x18] sm:$0xf]
        %v4013 = vld [vmem:[%s4005 + $0x1c] sm:$0xf]
        %v4014 = vld [vmem:[%s4005 + $0x20] sm:$0xf]
        %v4015 = vld [vmem:[%s4005 + $0x24] sm:$0xf]
        %v4016 = vld [vmem:[%s4005 + $0x28] sm:$0xf]
        %v4017 = vld [vmem:[%s4005 + $0x2c] sm:$0xf]
        %v4018 = vld [vmem:[%s4005 + $0x30] sm:$0xf]
        %v4019 = vld [vmem:[%s4005 + $0x34] sm:$0xf]
        %v4020 = vld [vmem:[%s4005 + $0x38] sm:$0xf]
        %v4021 = vld [vmem:[%s4005 + $0x3c] sm:$0xf]
        %v4022 = vld [vmem:[%s4005 + $0x40] sm:$0xf]
        %v4023 = vld [vmem:[%s4005 + $0x44] sm:$0xf]
        %v4024 = vld [vmem:[%s4005 + $0x48] sm:$0xf]
        %v4025 = vld [vmem:[%s4005 + $0x4c] sm:$0xf]
        %v4026 = vld [vmem:[%s4005 + $0x50] sm:$0xf]
        %v4027 = vld [vmem:[%s4005 + $0x54] sm:$0xf]
        %v4028 = vld [vmem:[%s4005 + $0x58] sm:$0xf]
        %v4029 = vld [vmem:[%s4005 + $0x5c] sm:$0xf]
        %v4030 = vld [vmem:[%s4005 + $0x60] sm:$0xf]
        %v4031 = vld [vmem:[%s4005 + $0x64] sm:$0xf]
        %v4032 = vld [vmem:[%s4005 + $0x68] sm:$0xf]
        %v4033 = vld [vmem:[%s4005 + $0x6c] sm:$0xf]
        %v4034 = vld [vmem:[%s4005 + $0x70] sm:$0xf]
        %v4035 = vld [vmem:[%s4005 + $0x74] sm:$0xf]
        %v4036 = vld [vmem:[%s4005 + $0x78] sm:$0xf]
        %v4037 = vld [vmem:[%s4005 + $0x7c] sm:$0xf]
        %v4038 = vunpack.c.l.b16 %v4004
        %v4039 = vunpack.c.h.b16 %v4004
        %v4040 = vpack.c.b16 %v4038, %v3366
        %v4041 = vpack.c.b16 %v4039, %v3367
        %v4076 = vunpack.c.l.b16 %v4006
        %v4077 = vunpack.c.l.b16 %v4007
        %v4078 = vunpack.c.l.b16 %v4008
        %v4079 = vunpack.c.l.b16 %v4009
        %v4080 = vunpack.c.l.b16 %v4010
        %v4081 = vunpack.c.l.b16 %v4011
        %v4082 = vunpack.c.l.b16 %v4012
        %v4083 = vunpack.c.l.b16 %v4013
        %v4084 = vunpack.c.l.b16 %v4014
        %v4085 = vunpack.c.l.b16 %v4015
        %v4086 = vunpack.c.l.b16 %v4016
        %v4087 = vunpack.c.l.b16 %v4017
        %v4088 = vunpack.c.l.b16 %v4018
        %v4089 = vunpack.c.l.b16 %v4019
        %v4090 = vunpack.c.l.b16 %v4020
        %v4091 = vunpack.c.l.b16 %v4021
        %v4092 = vunpack.c.l.b16 %v4022
        %v4093 = vunpack.c.l.b16 %v4023
        %v4094 = vunpack.c.l.b16 %v4024
        %v4095 = vunpack.c.l.b16 %v4025
        %v4096 = vunpack.c.l.b16 %v4026
        %v4097 = vunpack.c.l.b16 %v4027
        %v4098 = vunpack.c.l.b16 %v4028
        %v4099 = vunpack.c.l.b16 %v4029
        %v4100 = vunpack.c.l.b16 %v4030
        %v4101 = vunpack.c.l.b16 %v4031
        %v4102 = vunpack.c.l.b16 %v4032
        %v4103 = vunpack.c.l.b16 %v4033
        %v4104 = vunpack.c.l.b16 %v4034
        %v4105 = vunpack.c.l.b16 %v4035
        %v4106 = vunpack.c.l.b16 %v4036
        %v4107 = vunpack.c.l.b16 %v4037
        %v4108 = vpack.c.b16 %v4077, %v4076
        %v4109 = vpack.c.b16 %v4079, %v4078
        %v4110 = vpack.c.b16 %v4081, %v4080
        %v4111 = vpack.c.b16 %v4083, %v4082
        %v4112 = vpack.c.b16 %v4085, %v4084
        %v4113 = vpack.c.b16 %v4087, %v4086
        %v4114 = vpack.c.b16 %v4089, %v4088
        %v4115 = vpack.c.b16 %v4091, %v4090
        %v4116 = vpack.c.b16 %v4093, %v4092
        %v4117 = vpack.c.b16 %v4095, %v4094
        %v4118 = vpack.c.b16 %v4097, %v4096
        %v4119 = vpack.c.b16 %v4099, %v4098
        %v4120 = vpack.c.b16 %v4101, %v4100
        %v4121 = vpack.c.b16 %v4103, %v4102
        %v4122 = vpack.c.b16 %v4105, %v4104
        %v4123 = vpack.c.b16 %v4107, %v4106
        %4140 = vmatprep.subr.bf16.mxu0 0
        %4141 = vmatpush1.bf16.msra.mxu0 %v4115
        %4142 = vmatprep.subr.bf16.mxu0 0
        %4143 = vmatpush1.bf16.msra.mxu0 %v4114
        %4144 = vmatprep.subr.bf16.mxu0 0
        %4145 = vmatpush1.bf16.msra.mxu0 %v4113
        %4146 = vmatprep.subr.bf16.mxu0 0
        %4147 = vmatpush1.bf16.msra.mxu0 %v4112
        %4148 = vmatprep.subr.bf16.mxu0 0
        %4149 = vmatpush1.bf16.msra.mxu0 %v4111
        %4150 = vmatprep.subr.bf16.mxu0 0
        %4151 = vmatpush1.bf16.msra.mxu0 %v4110
        %4152 = vmatprep.subr.bf16.mxu0 0
        %4153 = vmatpush1.bf16.msra.mxu0 %v4109
        %4154 = vmatprep.subr.bf16.mxu0 0
        %4155 = vmatpush1.bf16.msra.mxu0 %v4108
        %4156 = vmatprep.subr.bf16.mxu0 0
        %4157 = vmatpush2.bf16.msra.mxu0 %v4123
        %4158 = vmatprep.subr.bf16.mxu0 0
        %4159 = vmatpush2.bf16.msra.mxu0 %v4122
        %4160 = vmatprep.subr.bf16.mxu0 0
        %4161 = vmatpush2.bf16.msra.mxu0 %v4121
        %4162 = vmatprep.subr.bf16.mxu0 0
        %4163 = vmatpush2.bf16.msra.mxu0 %v4120
        %4164 = vmatprep.subr.bf16.mxu0 0
        %4165 = vmatpush2.bf16.msra.mxu0 %v4119
        %4166 = vmatprep.subr.bf16.mxu0 0
        %4167 = vmatpush2.bf16.msra.mxu0 %v4118
        %4168 = vmatprep.subr.bf16.mxu0 0
        %4169 = vmatpush2.bf16.msra.mxu0 %v4117
        %4170 = vmatprep.subr.bf16.mxu0 0
        %4171 = vmatpush2.bf16.msra.mxu0 %v4116
        %4172 = vmatprep.mubr.bf16.mxu0 %v2473
        %4173 = vmatmul.mubr.bf16.gmra.mxu0 %v2472
        %v4174 = vpop.f32.mrf.mxu0
        %v4175 = vadd.f32 0.0, %v4174
        %v4176 = vpop.f32.mrf.mxu0
        %v4177 = vpop.f32.mrf.mxu0
        %v4178 = vadd.f32 0.0, %v4177
        %v4179 = vpop.f32.mrf.mxu0
        %4180 = vmatprep.mubr.bf16.mxu0 %v2475
        %4181 = vmatmul.mubr.bf16.gmra.mxu0 %v2474
        %v4182 = vpop.f32.mrf.mxu0
        %v4183 = vadd.f32 0.0, %v4182
        %v4184 = vpop.f32.mrf.mxu0
        %v4185 = vpop.f32.mrf.mxu0
        %v4186 = vadd.f32 0.0, %v4185
        %v4187 = vpop.f32.mrf.mxu0
        %4188 = vmatprep.mubr.bf16.mxu0 %v2477
        %4189 = vmatmul.mubr.bf16.gmra.mxu0 %v2476
        %v4190 = vpop.f32.mrf.mxu0
        %v4191 = vadd.f32 0.0, %v4190
        %v4192 = vpop.f32.mrf.mxu0
        %v4193 = vpop.f32.mrf.mxu0
        %v4194 = vadd.f32 0.0, %v4193
        %v4195 = vpop.f32.mrf.mxu0
        %4196 = vmatprep.mubr.bf16.mxu0 %v4041
        %4197 = vmatmul.mubr.bf16.gmra.mxu0 %v4040
        %v4198 = vpop.f32.mrf.mxu0
        %v4199 = vadd.f32 0.0, %v4198
        %v4200 = vpop.f32.mrf.mxu0
        %v4201 = vpop.f32.mrf.mxu0
        %v4202 = vadd.f32 0.0, %v4201
        %v4203 = vpop.f32.mrf.mxu0
        %4204 = vdwg.mxu0
        %v4205 = vadd.f32 %v3979, %v4175
        %v4206 = vadd.f32 %v3980, %v4178
        %v4207 = vadd.f32 %v3981, %v4183
        %v4208 = vadd.f32 %v3982, %v4186
        %v4209 = vadd.f32 %v3983, %v4191
        %v4210 = vadd.f32 %v3984, %v4194
        %v4211 = vadd.f32 %v3985, %v4199
        %v4212 = vadd.f32 %v3986, %v4202
        %v4213 = vrot.slane %v3989, 5
        %v4214 = vrot.slane %v4213, 4
        %v4215 = vrot.slane %v3990, 5
        %v4216 = vsel %vm2826, %v4214, %v4215
        %s4217 = scalar_lea.vmem [#allocation6], 1024
        %v4218 = vld [vmem:[%s4217] sm:$0xf]
        %v4219 = vld [vmem:[%s4217 + $0x4] sm:$0xf]
        %v4220 = vld [vmem:[%s4217 + $0x8] sm:$0xf]
        %v4221 = vld [vmem:[%s4217 + $0xc] sm:$0xf]
        %v4222 = vld [vmem:[%s4217 + $0x10] sm:$0xf]
        %v4223 = vld [vmem:[%s4217 + $0x14] sm:$0xf]
        %v4224 = vld [vmem:[%s4217 + $0x18] sm:$0xf]
        %v4225 = vld [vmem:[%s4217 + $0x1c] sm:$0xf]
        %v4226 = vld [vmem:[%s4217 + $0x20] sm:$0xf]
        %v4227 = vld [vmem:[%s4217 + $0x24] sm:$0xf]
        %v4228 = vld [vmem:[%s4217 + $0x28] sm:$0xf]
        %v4229 = vld [vmem:[%s4217 + $0x2c] sm:$0xf]
        %v4230 = vld [vmem:[%s4217 + $0x30] sm:$0xf]
        %v4231 = vld [vmem:[%s4217 + $0x34] sm:$0xf]
        %v4232 = vld [vmem:[%s4217 + $0x38] sm:$0xf]
        %v4233 = vld [vmem:[%s4217 + $0x3c] sm:$0xf]
        %v4234 = vld [vmem:[%s4217 + $0x40] sm:$0xf]
        %v4235 = vld [vmem:[%s4217 + $0x44] sm:$0xf]
        %v4236 = vld [vmem:[%s4217 + $0x48] sm:$0xf]
        %v4237 = vld [vmem:[%s4217 + $0x4c] sm:$0xf]
        %v4238 = vld [vmem:[%s4217 + $0x50] sm:$0xf]
        %v4239 = vld [vmem:[%s4217 + $0x54] sm:$0xf]
        %v4240 = vld [vmem:[%s4217 + $0x58] sm:$0xf]
        %v4241 = vld [vmem:[%s4217 + $0x5c] sm:$0xf]
        %v4242 = vld [vmem:[%s4217 + $0x60] sm:$0xf]
        %v4243 = vld [vmem:[%s4217 + $0x64] sm:$0xf]
        %v4244 = vld [vmem:[%s4217 + $0x68] sm:$0xf]
        %v4245 = vld [vmem:[%s4217 + $0x6c] sm:$0xf]
        %v4246 = vld [vmem:[%s4217 + $0x70] sm:$0xf]
        %v4247 = vld [vmem:[%s4217 + $0x74] sm:$0xf]
        %v4248 = vld [vmem:[%s4217 + $0x78] sm:$0xf]
        %v4249 = vld [vmem:[%s4217 + $0x7c] sm:$0xf]
        %v4250 = vunpack.c.l.b16 %v4216
        %v4251 = vunpack.c.h.b16 %v4216
        %v4252 = vpack.c.b16 %v4250, %v3590
        %v4253 = vpack.c.b16 %v4251, %v3591
        %v4288 = vunpack.c.l.b16 %v4218
        %v4289 = vunpack.c.l.b16 %v4219
        %v4290 = vunpack.c.l.b16 %v4220
        %v4291 = vunpack.c.l.b16 %v4221
        %v4292 = vunpack.c.l.b16 %v4222
        %v4293 = vunpack.c.l.b16 %v4223
        %v4294 = vunpack.c.l.b16 %v4224
        %v4295 = vunpack.c.l.b16 %v4225
        %v4296 = vunpack.c.l.b16 %v4226
        %v4297 = vunpack.c.l.b16 %v4227
        %v4298 = vunpack.c.l.b16 %v4228
        %v4299 = vunpack.c.l.b16 %v4229
        %v4300 = vunpack.c.l.b16 %v4230
        %v4301 = vunpack.c.l.b16 %v4231
        %v4302 = vunpack.c.l.b16 %v4232
        %v4303 = vunpack.c.l.b16 %v4233
        %v4304 = vunpack.c.l.b16 %v4234
        %v4305 = vunpack.c.l.b16 %v4235
        %v4306 = vunpack.c.l.b16 %v4236
        %v4307 = vunpack.c.l.b16 %v4237
        %v4308 = vunpack.c.l.b16 %v4238
        %v4309 = vunpack.c.l.b16 %v4239
        %v4310 = vunpack.c.l.b16 %v4240
        %v4311 = vunpack.c.l.b16 %v4241
        %v4312 = vunpack.c.l.b16 %v4242
        %v4313 = vunpack.c.l.b16 %v4243
        %v4314 = vunpack.c.l.b16 %v4244
        %v4315 = vunpack.c.l.b16 %v4245
        %v4316 = vunpack.c.l.b16 %v4246
        %v4317 = vunpack.c.l.b16 %v4247
        %v4318 = vunpack.c.l.b16 %v4248
        %v4319 = vunpack.c.l.b16 %v4249
        %v4320 = vpack.c.b16 %v4289, %v4288
        %v4321 = vpack.c.b16 %v4291, %v4290
        %v4322 = vpack.c.b16 %v4293, %v4292
        %v4323 = vpack.c.b16 %v4295, %v4294
        %v4324 = vpack.c.b16 %v4297, %v4296
        %v4325 = vpack.c.b16 %v4299, %v4298
        %v4326 = vpack.c.b16 %v4301, %v4300
        %v4327 = vpack.c.b16 %v4303, %v4302
        %v4328 = vpack.c.b16 %v4305, %v4304
        %v4329 = vpack.c.b16 %v4307, %v4306
        %v4330 = vpack.c.b16 %v4309, %v4308
        %v4331 = vpack.c.b16 %v4311, %v4310
        %v4332 = vpack.c.b16 %v4313, %v4312
        %v4333 = vpack.c.b16 %v4315, %v4314
        %v4334 = vpack.c.b16 %v4317, %v4316
        %v4335 = vpack.c.b16 %v4319, %v4318
        %4352 = vmatprep.subr.bf16.mxu0 0
        %4353 = vmatpush1.bf16.msra.mxu0 %v4327
        %4354 = vmatprep.subr.bf16.mxu0 0
        %4355 = vmatpush1.bf16.msra.mxu0 %v4326
        %4356 = vmatprep.subr.bf16.mxu0 0
        %4357 = vmatpush1.bf16.msra.mxu0 %v4325
        %4358 = vmatprep.subr.bf16.mxu0 0
        %4359 = vmatpush1.bf16.msra.mxu0 %v4324
        %4360 = vmatprep.subr.bf16.mxu0 0
        %4361 = vmatpush1.bf16.msra.mxu0 %v4323
        %4362 = vmatprep.subr.bf16.mxu0 0
        %4363 = vmatpush1.bf16.msra.mxu0 %v4322
        %4364 = vmatprep.subr.bf16.mxu0 0
        %4365 = vmatpush1.bf16.msra.mxu0 %v4321
        %4366 = vmatprep.subr.bf16.mxu0 0
        %4367 = vmatpush1.bf16.msra.mxu0 %v4320
        %4368 = vmatprep.subr.bf16.mxu0 0
        %4369 = vmatpush2.bf16.msra.mxu0 %v4335
        %4370 = vmatprep.subr.bf16.mxu0 0
        %4371 = vmatpush2.bf16.msra.mxu0 %v4334
        %4372 = vmatprep.subr.bf16.mxu0 0
        %4373 = vmatpush2.bf16.msra.mxu0 %v4333
        %4374 = vmatprep.subr.bf16.mxu0 0
        %4375 = vmatpush2.bf16.msra.mxu0 %v4332
        %4376 = vmatprep.subr.bf16.mxu0 0
        %4377 = vmatpush2.bf16.msra.mxu0 %v4331
        %4378 = vmatprep.subr.bf16.mxu0 0
        %4379 = vmatpush2.bf16.msra.mxu0 %v4330
        %4380 = vmatprep.subr.bf16.mxu0 0
        %4381 = vmatpush2.bf16.msra.mxu0 %v4329
        %4382 = vmatprep.subr.bf16.mxu0 0
        %4383 = vmatpush2.bf16.msra.mxu0 %v4328
        %4384 = vmatprep.mubr.bf16.mxu0 %v2911
        %4385 = vmatmul.mubr.bf16.gmra.mxu0 %v2910
        %v4386 = vpop.f32.mrf.mxu0
        %v4387 = vadd.f32 0.0, %v4386
        %v4388 = vpop.f32.mrf.mxu0
        %v4389 = vpop.f32.mrf.mxu0
        %v4390 = vadd.f32 0.0, %v4389
        %v4391 = vpop.f32.mrf.mxu0
        %4392 = vmatprep.mubr.bf16.mxu0 %v2913
        %4393 = vmatmul.mubr.bf16.gmra.mxu0 %v2912
        %v4394 = vpop.f32.mrf.mxu0
        %v4395 = vadd.f32 0.0, %v4394
        %v4396 = vpop.f32.mrf.mxu0
        %v4397 = vpop.f32.mrf.mxu0
        %v4398 = vadd.f32 0.0, %v4397
        %v4399 = vpop.f32.mrf.mxu0
        %4400 = vmatprep.mubr.bf16.mxu0 %v2915
        %4401 = vmatmul.mubr.bf16.gmra.mxu0 %v2914
        %v4402 = vpop.f32.mrf.mxu0
        %v4403 = vadd.f32 0.0, %v4402
        %v4404 = vpop.f32.mrf.mxu0
        %v4405 = vpop.f32.mrf.mxu0
        %v4406 = vadd.f32 0.0, %v4405
        %v4407 = vpop.f32.mrf.mxu0
        %4408 = vmatprep.mubr.bf16.mxu0 %v4253
        %4409 = vmatmul.mubr.bf16.gmra.mxu0 %v4252
        %v4410 = vpop.f32.mrf.mxu0
        %v4411 = vadd.f32 0.0, %v4410
        %v4412 = vpop.f32.mrf.mxu0
        %v4413 = vpop.f32.mrf.mxu0
        %v4414 = vadd.f32 0.0, %v4413
        %v4415 = vpop.f32.mrf.mxu0
        %4416 = vdwg.mxu0
        %v4417 = vadd.f32 %v4205, %v4387
        %v4418 = vadd.f32 %v4206, %v4390
        %v4419 = vadd.f32 %v4207, %v4395
        %v4420 = vadd.f32 %v4208, %v4398
        %v4421 = vadd.f32 %v4209, %v4403
        %v4422 = vadd.f32 %v4210, %v4406
        %v4423 = vadd.f32 %v4211, %v4411
        %v4424 = vadd.f32 %v4212, %v4414
        %v4425 = vld [vmem:[%s5] sm:$0x1]
        %v4427 = vlaneseq
        %v4428 = vshrl.u32 %v4427, 7
        %v4429 = vsub.s32 0, %v4428
        %v4430 = vrot.slane %v4425, %v4429
        %v4432 = vadd.f32 %v4417, %v4430
        %v4433 = vadd.f32 %v4418, %v4430
        %v4434 = vadd.f32 %v4419, %v4430
        %v4435 = vadd.f32 %v4420, %v4430
        %v4436 = vadd.f32 %v4421, %v4430
        %v4437 = vadd.f32 %v4422, %v4430
        %v4438 = vadd.f32 %v4423, %v4430
        %v4439 = vadd.f32 %v4424, %v4430
        %vm4440 = vcmp.ge.f32.partialorder %v4432, 0.0
        %vm4441 = vcmp.ge.f32.partialorder %v4433, 0.0
        %vm4442 = vcmp.ge.f32.partialorder %v4434, 0.0
        %vm4443 = vcmp.ge.f32.partialorder %v4435, 0.0
        %vm4444 = vcmp.ge.f32.partialorder %v4436, 0.0
        %vm4445 = vcmp.ge.f32.partialorder %v4437, 0.0
        %vm4446 = vcmp.ge.f32.partialorder %v4438, 0.0
        %vm4447 = vcmp.ge.f32.partialorder %v4439, 0.0
        %v4448 = vmul.f32 %v4432, 0.2
        %v4449 = vmul.f32 %v4433, 0.2
        %v4450 = vmul.f32 %v4434, 0.2
        %v4451 = vmul.f32 %v4435, 0.2
        %v4452 = vmul.f32 %v4436, 0.2
        %v4453 = vmul.f32 %v4437, 0.2
        %v4454 = vmul.f32 %v4438, 0.2
        %v4455 = vmul.f32 %v4439, 0.2
        %v4456 = vsel %vm4440, %v4432, %v4448
        %v4457 = vsel %vm4441, %v4433, %v4449
        %v4458 = vsel %vm4442, %v4434, %v4450
        %v4459 = vsel %vm4443, %v4435, %v4451
        %v4460 = vsel %vm4444, %v4436, %v4452
        %v4461 = vsel %vm4445, %v4437, %v4453
        %v4462 = vsel %vm4446, %v4438, %v4454
        %v4463 = vsel %vm4447, %v4439, %v4455
        %v4464 = vmul.f32 %v4456, 1.4142135
        %v4465 = vmul.f32 %v4457, 1.4142135
        %v4466 = vmul.f32 %v4458, 1.4142135
        %v4467 = vmul.f32 %v4459, 1.4142135
        %v4468 = vmul.f32 %v4460, 1.4142135
        %v4469 = vmul.f32 %v4461, 1.4142135
        %v4470 = vmul.f32 %v4462, 1.4142135
        %v4471 = vmul.f32 %v4463, 1.4142135
        %4472 = vst [vmem:[#allocation2] sm:$0xff] 0.0
        %4473 = vst [vmem:[#allocation2 + $0x8] sm:$0x3] 0.0
        %4474 = vst [vmem:[#allocation2 + $0x10] sm:$0xff] 0.0
        %4475 = vst [vmem:[#allocation2 + $0x18] sm:$0x3] 0.0
        %4476 = vst [vmem:[#allocation2 + $0x20] sm:$0xff] 0.0
        %4477 = vst [vmem:[#allocation2 + $0x28] sm:$0x3] 0.0
        %4478 = vst [vmem:[#allocation2 + $0x30] sm:$0xff] 0.0
        %4479 = vst [vmem:[#allocation2 + $0x38] sm:$0x3] 0.0
        %4480 = vst [vmem:[#allocation2 + $0x40] sm:$0xff] 0.0
        %4481 = vst [vmem:[#allocation2 + $0x48] sm:$0x3] 0.0
        %4482 = vst [vmem:[#allocation2 + $0x50] sm:$0xff] 0.0
        %4483 = vst [vmem:[#allocation2 + $0x58] sm:$0x3] 0.0
        %4484 = vst [vmem:[#allocation2 + $0x60] sm:$0xff] 0.0
        %4485 = vst [vmem:[#allocation2 + $0x68] sm:$0x3] 0.0
        %4486 = vst [vmem:[#allocation2 + $0x70] sm:$0xff] 0.0
        %4487 = vst [vmem:[#allocation2 + $0x78] sm:$0x3] 0.0
        %4488 = vst [vmem:[#allocation2 + $0x80] sm:$0xff] 0.0
        %4489 = vst [vmem:[#allocation2 + $0x88] sm:$0x3] 0.0
        %4490 = vst [vmem:[#allocation2 + $0x90] sm:$0xff] 0.0
        %4491 = vst [vmem:[#allocation2 + $0x98] sm:$0x3] 0.0
        %s4492 = scalar_lea.vmem [#allocation2], 16
        %4493 = vst [vmem:[%s4492 + $0x1] sm:$0xff] %v4464
        %4494 = vst [vmem:[%s4492 + $0x11] sm:$0xff] %v4465
        %4495 = vst [vmem:[%s4492 + $0x21] sm:$0xff] %v4466
        %4496 = vst [vmem:[%s4492 + $0x31] sm:$0xff] %v4467
        %4497 = vst [vmem:[%s4492 + $0x41] sm:$0xff] %v4468
        %4498 = vst [vmem:[%s4492 + $0x51] sm:$0xff] %v4469
        %4499 = vst [vmem:[%s4492 + $0x61] sm:$0xff] %v4470
        %4500 = vst [vmem:[%s4492 + $0x71] sm:$0xff] %v4471
        %v4501 = vld [vmem:[#allocation2] sm:$0xff]
        %v4502 = vld [vmem:[#allocation2 + $0x8] sm:$0x3]
        %v4503 = vld [vmem:[#allocation2 + $0x10] sm:$0xff]
        %v4504 = vld [vmem:[#allocation2 + $0x18] sm:$0x3]
        %v4505 = vld [vmem:[#allocation2 + $0x20] sm:$0xff]
        %v4506 = vld [vmem:[#allocation2 + $0x28] sm:$0x3]
        %v4507 = vld [vmem:[#allocation2 + $0x30] sm:$0xff]
        %v4508 = vld [vmem:[#allocation2 + $0x38] sm:$0x3]
        %v4509 = vld [vmem:[#allocation2 + $0x40] sm:$0xff]
        %v4510 = vld [vmem:[#allocation2 + $0x48] sm:$0x3]
        %v4511 = vld [vmem:[#allocation2 + $0x50] sm:$0xff]
        %v4512 = vld [vmem:[#allocation2 + $0x58] sm:$0x3]
        %v4513 = vld [vmem:[#allocation2 + $0x60] sm:$0xff]
        %v4514 = vld [vmem:[#allocation2 + $0x68] sm:$0x3]
        %v4515 = vld [vmem:[#allocation2 + $0x70] sm:$0xff]
        %v4516 = vld [vmem:[#allocation2 + $0x78] sm:$0x3]
        %v4517 = vld [vmem:[#allocation2 + $0x80] sm:$0xff]
        %v4518 = vld [vmem:[#allocation2 + $0x88] sm:$0x3]
        %v4519 = vld [vmem:[#allocation2 + $0x90] sm:$0xff]
        %v4520 = vld [vmem:[#allocation2 + $0x98] sm:$0x3]
        %v4521 = vlaneseq
        %v4522 = vshrl.u32 %v4521, 7
        %v4523 = vsub.s32 0, %v4522
        %v4524 = vrot.slane %v2081, %v4523
        %v4525 = vmul.f32 %v4501, %v4524
        %v4526 = vmul.f32 %v4502, %v4524
        %v4527 = vmul.f32 %v4503, %v4524
        %v4528 = vmul.f32 %v4504, %v4524
        %v4529 = vmul.f32 %v4505, %v4524
        %v4530 = vmul.f32 %v4506, %v4524
        %v4531 = vmul.f32 %v4507, %v4524
        %v4532 = vmul.f32 %v4508, %v4524
        %v4533 = vmul.f32 %v4509, %v4524
        %v4534 = vmul.f32 %v4510, %v4524
        %v4535 = vmul.f32 %v4511, %v4524
        %v4536 = vmul.f32 %v4512, %v4524
        %v4537 = vmul.f32 %v4513, %v4524
        %v4538 = vmul.f32 %v4514, %v4524
        %v4539 = vmul.f32 %v4515, %v4524
        %v4540 = vmul.f32 %v4516, %v4524
        %v4541 = vmul.f32 %v4517, %v4524
        %v4542 = vmul.f32 %v4518, %v4524
        %v4543 = vmul.f32 %v4519, %v4524
        %v4544 = vmul.f32 %v4520, %v4524
        %v4545 = vpack.c.bf16 %v4526, %v4525
        %v4546 = vpack.c.bf16 %v4528, %v4527
        %v4547 = vpack.c.bf16 %v4530, %v4529
        %v4548 = vpack.c.bf16 %v4532, %v4531
        %v4549 = vpack.c.bf16 %v4534, %v4533
        %v4550 = vpack.c.bf16 %v4536, %v4535
        %v4551 = vpack.c.bf16 %v4538, %v4537
        %v4552 = vpack.c.bf16 %v4540, %v4539
        %v4553 = vpack.c.bf16 %v4542, %v4541
        %v4554 = vpack.c.bf16 %v4544, %v4543
        %v4555 = vld [vmem:[%s6] sm:$0xf]
        %v4556 = vld [vmem:[%s6 + $0x4] sm:$0xf]
        %v4557 = vld [vmem:[%s6 + $0x8] sm:$0xf]
        %v4558 = vld [vmem:[%s6 + $0xc] sm:$0xf]
        %v4559 = vld [vmem:[%s6 + $0x10] sm:$0xf]
        %v4560 = vld [vmem:[%s6 + $0x14] sm:$0xf]
        %v4561 = vld [vmem:[%s6 + $0x18] sm:$0xf]
        %v4562 = vld [vmem:[%s6 + $0x1c] sm:$0xf]
        %v4563 = vld [vmem:[%s6 + $0x20] sm:$0xf]
        %v4564 = vld [vmem:[%s6 + $0x24] sm:$0xf]
        %v4565 = vld [vmem:[%s6 + $0x28] sm:$0xf]
        %v4566 = vld [vmem:[%s6 + $0x2c] sm:$0xf]
        %v4567 = vld [vmem:[%s6 + $0x30] sm:$0xf]
        %v4568 = vld [vmem:[%s6 + $0x34] sm:$0xf]
        %v4569 = vld [vmem:[%s6 + $0x38] sm:$0xf]
        %v4570 = vld [vmem:[%s6 + $0x3c] sm:$0xf]
        %v4579 = vunpack.c.l.b16 %v4545
        %v4580 = vunpack.c.h.b16 %v4545
        %v4581 = vunpack.c.l.b16 %v4546
        %v4582 = vunpack.c.h.b16 %v4546
        %v4583 = vunpack.c.l.b16 %v4547
        %v4584 = vunpack.c.h.b16 %v4547
        %v4585 = vunpack.c.l.b16 %v4548
        %v4586 = vunpack.c.h.b16 %v4548
        %v4587 = vunpack.c.l.b16 %v4549
        %v4588 = vunpack.c.h.b16 %v4549
        %v4589 = vunpack.c.l.b16 %v4550
        %v4590 = vunpack.c.h.b16 %v4550
        %v4591 = vunpack.c.l.b16 %v4551
        %v4592 = vunpack.c.h.b16 %v4551
        %v4593 = vunpack.c.l.b16 %v4552
        %v4594 = vunpack.c.h.b16 %v4552
        %v4595 = vpack.c.b16 %v4579, %v4579
        %v4596 = vpack.c.b16 %v4580, %v4580
        %v4597 = vpack.c.b16 %v4581, %v4581
        %v4598 = vpack.c.b16 %v4582, %v4582
        %v4599 = vpack.c.b16 %v4583, %v4583
        %v4600 = vpack.c.b16 %v4584, %v4584
        %v4601 = vpack.c.b16 %v4585, %v4585
        %v4602 = vpack.c.b16 %v4586, %v4586
        %v4603 = vpack.c.b16 %v4587, %v4587
        %v4604 = vpack.c.b16 %v4588, %v4588
        %v4605 = vpack.c.b16 %v4589, %v4589
        %v4606 = vpack.c.b16 %v4590, %v4590
        %v4607 = vpack.c.b16 %v4591, %v4591
        %v4608 = vpack.c.b16 %v4592, %v4592
        %v4609 = vpack.c.b16 %v4593, %v4593
        %v4610 = vpack.c.b16 %v4594, %v4594
        %v4612 = vshrl.u32 %v4595, 16
        %v4614 = vrot.slane %v4612, 4
        %v4615 = vshll.u32 %v4595, 16
        %v4617 = vrot.slane %v4615, 5
        %v4618 = vor.u32 %v4614, %v4617
        %v4619 = vrot.slane %v4618, 4
        %v4621 = vshll.u32 %v4596, 16
        %v4623 = vrot.slane %v4621, 5
        %v4624 = vsel %vm2308, %v4619, %v4623
        %v4626 = vshrl.u32 %v4597, 16
        %v4628 = vrot.slane %v4626, 4
        %v4629 = vshll.u32 %v4597, 16
        %v4631 = vrot.slane %v4629, 5
        %v4632 = vor.u32 %v4628, %v4631
        %v4633 = vrot.slane %v4632, 4
        %v4635 = vshll.u32 %v4598, 16
        %v4637 = vrot.slane %v4635, 5
        %v4638 = vsel %vm2308, %v4633, %v4637
        %v4640 = vshrl.u32 %v4599, 16
        %v4642 = vrot.slane %v4640, 4
        %v4643 = vshll.u32 %v4599, 16
        %v4645 = vrot.slane %v4643, 5
        %v4646 = vor.u32 %v4642, %v4645
        %v4647 = vrot.slane %v4646, 4
        %v4649 = vshll.u32 %v4600, 16
        %v4651 = vrot.slane %v4649, 5
        %v4652 = vsel %vm2308, %v4647, %v4651
        %v4654 = vshrl.u32 %v4601, 16
        %v4656 = vrot.slane %v4654, 4
        %v4657 = vshll.u32 %v4601, 16
        %v4659 = vrot.slane %v4657, 5
        %v4660 = vor.u32 %v4656, %v4659
        %v4661 = vrot.slane %v4660, 4
        %v4663 = vshll.u32 %v4602, 16
        %v4665 = vrot.slane %v4663, 5
        %v4666 = vsel %vm2308, %v4661, %v4665
        %v4668 = vshrl.u32 %v4603, 16
        %v4670 = vrot.slane %v4668, 4
        %v4671 = vshll.u32 %v4603, 16
        %v4673 = vrot.slane %v4671, 5
        %v4674 = vor.u32 %v4670, %v4673
        %v4675 = vrot.slane %v4674, 4
        %v4677 = vshll.u32 %v4604, 16
        %v4679 = vrot.slane %v4677, 5
        %v4680 = vsel %vm2308, %v4675, %v4679
        %v4682 = vshrl.u32 %v4605, 16
        %v4684 = vrot.slane %v4682, 4
        %v4685 = vshll.u32 %v4605, 16
        %v4687 = vrot.slane %v4685, 5
        %v4688 = vor.u32 %v4684, %v4687
        %v4689 = vrot.slane %v4688, 4
        %v4691 = vshll.u32 %v4606, 16
        %v4693 = vrot.slane %v4691, 5
        %v4694 = vsel %vm2308, %v4689, %v4693
        %v4696 = vshrl.u32 %v4607, 16
        %v4698 = vrot.slane %v4696, 4
        %v4699 = vshll.u32 %v4607, 16
        %v4701 = vrot.slane %v4699, 5
        %v4702 = vor.u32 %v4698, %v4701
        %v4703 = vrot.slane %v4702, 4
        %v4705 = vshll.u32 %v4608, 16
        %v4707 = vrot.slane %v4705, 5
        %v4708 = vsel %vm2308, %v4703, %v4707
        %v4710 = vshrl.u32 %v4609, 16
        %v4712 = vrot.slane %v4710, 4
        %v4713 = vshll.u32 %v4609, 16
        %v4715 = vrot.slane %v4713, 5
        %v4716 = vor.u32 %v4712, %v4715
        %v4717 = vrot.slane %v4716, 4
        %v4719 = vshll.u32 %v4610, 16
        %v4721 = vrot.slane %v4719, 5
        %v4722 = vsel %vm2308, %v4717, %v4721
        %s4723 = scalar_lea.vmem %s6, 64
        %v4724 = vld [vmem:[%s4723] sm:$0xf]
        %v4725 = vld [vmem:[%s4723 + $0x4] sm:$0xf]
        %v4726 = vld [vmem:[%s4723 + $0x8] sm:$0xf]
        %v4727 = vld [vmem:[%s4723 + $0xc] sm:$0xf]
        %v4728 = vld [vmem:[%s4723 + $0x10] sm:$0xf]
        %v4729 = vld [vmem:[%s4723 + $0x14] sm:$0xf]
        %v4730 = vld [vmem:[%s4723 + $0x18] sm:$0xf]
        %v4731 = vld [vmem:[%s4723 + $0x1c] sm:$0xf]
        %v4732 = vld [vmem:[%s4723 + $0x20] sm:$0xf]
        %v4733 = vld [vmem:[%s4723 + $0x24] sm:$0xf]
        %v4734 = vld [vmem:[%s4723 + $0x28] sm:$0xf]
        %v4735 = vld [vmem:[%s4723 + $0x2c] sm:$0xf]
        %v4736 = vld [vmem:[%s4723 + $0x30] sm:$0xf]
        %v4737 = vld [vmem:[%s4723 + $0x34] sm:$0xf]
        %v4738 = vld [vmem:[%s4723 + $0x38] sm:$0xf]
        %v4739 = vld [vmem:[%s4723 + $0x3c] sm:$0xf]
        %v4740 = vunpack.c.l.b16 %v4624
        %v4741 = vunpack.c.l.b16 %v4638
        %v4742 = vunpack.c.l.b16 %v4652
        %v4743 = vunpack.c.l.b16 %v4666
        %v4744 = vunpack.c.l.b16 %v4680
        %v4745 = vunpack.c.l.b16 %v4694
        %v4746 = vunpack.c.l.b16 %v4708
        %v4747 = vunpack.c.l.b16 %v4722
        %v4748 = vpack.c.b16 %v4741, %v4740
        %v4749 = vpack.c.b16 %v4743, %v4742
        %v4750 = vpack.c.b16 %v4745, %v4744
        %v4751 = vpack.c.b16 %v4747, %v4746
        %v4772 = vunpack.c.l.b16 %v4724
        %v4773 = vunpack.c.l.b16 %v4725
        %v4774 = vunpack.c.l.b16 %v4726
        %v4775 = vunpack.c.l.b16 %v4727
        %v4776 = vunpack.c.l.b16 %v4728
        %v4777 = vunpack.c.l.b16 %v4729
        %v4778 = vunpack.c.l.b16 %v4730
        %v4779 = vunpack.c.l.b16 %v4731
        %v4780 = vunpack.c.l.b16 %v4732
        %v4781 = vunpack.c.l.b16 %v4733
        %v4782 = vunpack.c.l.b16 %v4734
        %v4783 = vunpack.c.l.b16 %v4735
        %v4784 = vunpack.c.l.b16 %v4736
        %v4785 = vunpack.c.l.b16 %v4737
        %v4786 = vunpack.c.l.b16 %v4738
        %v4787 = vunpack.c.l.b16 %v4739
        %v4788 = vpack.c.b16 %v4773, %v4772
        %v4789 = vpack.c.b16 %v4775, %v4774
        %v4790 = vpack.c.b16 %v4777, %v4776
        %v4791 = vpack.c.b16 %v4779, %v4778
        %v4792 = vpack.c.b16 %v4781, %v4780
        %v4793 = vpack.c.b16 %v4783, %v4782
        %v4794 = vpack.c.b16 %v4785, %v4784
        %v4795 = vpack.c.b16 %v4787, %v4786
        %4804 = vmatprep.subr.bf16.mxu0 0
        %4805 = vmatpush1.bf16.msra.mxu0 %v4795
        %4806 = vmatprep.subr.bf16.mxu0 0
        %4807 = vmatpush1.bf16.msra.mxu0 %v4794
        %4808 = vmatprep.subr.bf16.mxu0 0
        %4809 = vmatpush1.bf16.msra.mxu0 %v4793
        %4810 = vmatprep.subr.bf16.mxu0 0
        %4811 = vmatpush1.bf16.msra.mxu0 %v4792
        %4812 = vmatprep.subr.bf16.mxu0 0
        %4813 = vmatpush1.bf16.msra.mxu0 %v4791
        %4814 = vmatprep.subr.bf16.mxu0 0
        %4815 = vmatpush1.bf16.msra.mxu0 %v4790
        %4816 = vmatprep.subr.bf16.mxu0 0
        %4817 = vmatpush1.bf16.msra.mxu0 %v4789
        %4818 = vmatprep.subr.bf16.mxu0 0
        %4819 = vmatpush1.bf16.msra.mxu0 %v4788
        %4820 = vmatprep.subr.bf16.mxu0 0
        %4821 = vmatpush2.bf16.msra.mxu0 0
        %4822 = vmatprep.subr.bf16.mxu0 0
        %4823 = vmatpush2.bf16.msra.mxu0 0
        %4824 = vmatprep.subr.bf16.mxu0 0
        %4825 = vmatpush2.bf16.msra.mxu0 0
        %4826 = vmatprep.subr.bf16.mxu0 0
        %4827 = vmatpush2.bf16.msra.mxu0 0
        %4828 = vmatprep.subr.bf16.mxu0 0
        %4829 = vmatpush2.bf16.msra.mxu0 0
        %4830 = vmatprep.subr.bf16.mxu0 0
        %4831 = vmatpush2.bf16.msra.mxu0 0
        %4832 = vmatprep.subr.bf16.mxu0 0
        %4833 = vmatpush2.bf16.msra.mxu0 0
        %4834 = vmatprep.subr.bf16.mxu0 0
        %4835 = vmatpush2.bf16.msra.mxu0 0
        %4836 = vmatprep.mubr.bf16.mxu0 0
        %4837 = vmatmul.mubr.bf16.gmra.mxu0 %v4748
        %v4838 = vpop.f32.mrf.mxu0
        %v4839 = vadd.f32 0.0, %v4838
        %v4840 = vpop.f32.mrf.mxu0
        %v4841 = vpop.f32.mrf.mxu0
        %v4842 = vadd.f32 0.0, %v4841
        %v4843 = vpop.f32.mrf.mxu0
        %4844 = vmatprep.mubr.bf16.mxu0 0
        %4845 = vmatmul.mubr.bf16.gmra.mxu0 %v4749
        %v4846 = vpop.f32.mrf.mxu0
        %v4847 = vadd.f32 0.0, %v4846
        %v4848 = vpop.f32.mrf.mxu0
        %v4849 = vpop.f32.mrf.mxu0
        %v4850 = vadd.f32 0.0, %v4849
        %v4851 = vpop.f32.mrf.mxu0
        %4852 = vmatprep.mubr.bf16.mxu0 0
        %4853 = vmatmul.mubr.bf16.gmra.mxu0 %v4750
        %v4854 = vpop.f32.mrf.mxu0
        %v4855 = vadd.f32 0.0, %v4854
        %v4856 = vpop.f32.mrf.mxu0
        %v4857 = vpop.f32.mrf.mxu0
        %v4858 = vadd.f32 0.0, %v4857
        %v4859 = vpop.f32.mrf.mxu0
        %4860 = vmatprep.mubr.bf16.mxu0 0
        %4861 = vmatmul.mubr.bf16.gmra.mxu0 %v4751
        %v4862 = vpop.f32.mrf.mxu0
        %v4863 = vadd.f32 0.0, %v4862
        %v4864 = vpop.f32.mrf.mxu0
        %v4865 = vpop.f32.mrf.mxu0
        %v4866 = vadd.f32 0.0, %v4865
        %v4867 = vpop.f32.mrf.mxu0
        %4868 = vdwg.mxu0
        %v4869 = vpack.c.b16 %v4581, %v4579
        %v4870 = vpack.c.b16 %v4585, %v4583
        %v4871 = vpack.c.b16 %v4589, %v4587
        %v4872 = vpack.c.b16 %v4593, %v4591
        %v4893 = vunpack.c.l.b16 %v4555
        %v4894 = vunpack.c.l.b16 %v4556
        %v4895 = vunpack.c.l.b16 %v4557
        %v4896 = vunpack.c.l.b16 %v4558
        %v4897 = vunpack.c.l.b16 %v4559
        %v4898 = vunpack.c.l.b16 %v4560
        %v4899 = vunpack.c.l.b16 %v4561
        %v4900 = vunpack.c.l.b16 %v4562
        %v4901 = vunpack.c.l.b16 %v4563
        %v4902 = vunpack.c.l.b16 %v4564
        %v4903 = vunpack.c.l.b16 %v4565
        %v4904 = vunpack.c.l.b16 %v4566
        %v4905 = vunpack.c.l.b16 %v4567
        %v4906 = vunpack.c.l.b16 %v4568
        %v4907 = vunpack.c.l.b16 %v4569
        %v4908 = vunpack.c.l.b16 %v4570
        %v4909 = vpack.c.b16 %v4894, %v4893
        %v4910 = vpack.c.b16 %v4896, %v4895
        %v4911 = vpack.c.b16 %v4898, %v4897
        %v4912 = vpack.c.b16 %v4900, %v4899
        %v4913 = vpack.c.b16 %v4902, %v4901
        %v4914 = vpack.c.b16 %v4904, %v4903
        %v4915 = vpack.c.b16 %v4906, %v4905
        %v4916 = vpack.c.b16 %v4908, %v4907
        %4925 = vmatprep.subr.bf16.mxu0 0
        %4926 = vmatpush1.bf16.msra.mxu0 %v4916
        %4927 = vmatprep.subr.bf16.mxu0 0
        %4928 = vmatpush1.bf16.msra.mxu0 %v4915
        %4929 = vmatprep.subr.bf16.mxu0 0
        %4930 = vmatpush1.bf16.msra.mxu0 %v4914
        %4931 = vmatprep.subr.bf16.mxu0 0
        %4932 = vmatpush1.bf16.msra.mxu0 %v4913
        %4933 = vmatprep.subr.bf16.mxu0 0
        %4934 = vmatpush1.bf16.msra.mxu0 %v4912
        %4935 = vmatprep.subr.bf16.mxu0 0
        %4936 = vmatpush1.bf16.msra.mxu0 %v4911
        %4937 = vmatprep.subr.bf16.mxu0 0
        %4938 = vmatpush1.bf16.msra.mxu0 %v4910
        %4939 = vmatprep.subr.bf16.mxu0 0
        %4940 = vmatpush1.bf16.msra.mxu0 %v4909
        %4941 = vmatprep.subr.bf16.mxu0 0
        %4942 = vmatpush2.bf16.msra.mxu0 0
        %4943 = vmatprep.subr.bf16.mxu0 0
        %4944 = vmatpush2.bf16.msra.mxu0 0
        %4945 = vmatprep.subr.bf16.mxu0 0
        %4946 = vmatpush2.bf16.msra.mxu0 0
        %4947 = vmatprep.subr.bf16.mxu0 0
        %4948 = vmatpush2.bf16.msra.mxu0 0
        %4949 = vmatprep.subr.bf16.mxu0 0
        %4950 = vmatpush2.bf16.msra.mxu0 0
        %4951 = vmatprep.subr.bf16.mxu0 0
        %4952 = vmatpush2.bf16.msra.mxu0 0
        %4953 = vmatprep.subr.bf16.mxu0 0
        %4954 = vmatpush2.bf16.msra.mxu0 0
        %4955 = vmatprep.subr.bf16.mxu0 0
        %4956 = vmatpush2.bf16.msra.mxu0 0
        %4957 = vmatprep.mubr.bf16.mxu0 0
        %4958 = vmatmul.mubr.bf16.gmra.mxu0 %v4869
        %v4959 = vpop.f32.mrf.mxu0
        %v4960 = vadd.f32 %v4839, %v4959
        %v4961 = vpop.f32.mrf.mxu0
        %v4962 = vpop.f32.mrf.mxu0
        %v4963 = vadd.f32 %v4842, %v4962
        %v4964 = vpop.f32.mrf.mxu0
        %4965 = vmatprep.mubr.bf16.mxu0 0
        %4966 = vmatmul.mubr.bf16.gmra.mxu0 %v4870
        %v4967 = vpop.f32.mrf.mxu0
        %v4968 = vadd.f32 %v4847, %v4967
        %v4969 = vpop.f32.mrf.mxu0
        %v4970 = vpop.f32.mrf.mxu0
        %v4971 = vadd.f32 %v4850, %v4970
        %v4972 = vpop.f32.mrf.mxu0
        %4973 = vmatprep.mubr.bf16.mxu0 0
        %4974 = vmatmul.mubr.bf16.gmra.mxu0 %v4871
        %v4975 = vpop.f32.mrf.mxu0
        %v4976 = vadd.f32 %v4855, %v4975
        %v4977 = vpop.f32.mrf.mxu0
        %v4978 = vpop.f32.mrf.mxu0
        %v4979 = vadd.f32 %v4858, %v4978
        %v4980 = vpop.f32.mrf.mxu0
        %4981 = vmatprep.mubr.bf16.mxu0 0
        %4982 = vmatmul.mubr.bf16.gmra.mxu0 %v4872
        %v4983 = vpop.f32.mrf.mxu0
        %v4984 = vadd.f32 %v4863, %v4983
        %v4985 = vpop.f32.mrf.mxu0
        %v4986 = vpop.f32.mrf.mxu0
        %v4987 = vadd.f32 %v4866, %v4986
        %v4988 = vpop.f32.mrf.mxu0
        %4989 = vdwg.mxu0
        %v4990 = vrot.slane %v4595, 5
        %v4991 = vrot.slane %v4990, 4
        %v4992 = vrot.slane %v4596, 5
        %v4993 = vsel %vm2826, %v4991, %v4992
        %v4994 = vrot.slane %v4597, 5
        %v4995 = vrot.slane %v4994, 4
        %v4996 = vrot.slane %v4598, 5
        %v4997 = vsel %vm2826, %v4995, %v4996
        %v4998 = vrot.slane %v4599, 5
        %v4999 = vrot.slane %v4998, 4
        %v5000 = vrot.slane %v4600, 5
        %v5001 = vsel %vm2826, %v4999, %v5000
        %v5002 = vrot.slane %v4601, 5
        %v5003 = vrot.slane %v5002, 4
        %v5004 = vrot.slane %v4602, 5
        %v5005 = vsel %vm2826, %v5003, %v5004
        %v5006 = vrot.slane %v4603, 5
        %v5007 = vrot.slane %v5006, 4
        %v5008 = vrot.slane %v4604, 5
        %v5009 = vsel %vm2826, %v5007, %v5008
        %v5010 = vrot.slane %v4605, 5
        %v5011 = vrot.slane %v5010, 4
        %v5012 = vrot.slane %v4606, 5
        %v5013 = vsel %vm2826, %v5011, %v5012
        %v5014 = vrot.slane %v4607, 5
        %v5015 = vrot.slane %v5014, 4
        %v5016 = vrot.slane %v4608, 5
        %v5017 = vsel %vm2826, %v5015, %v5016
        %v5018 = vrot.slane %v4609, 5
        %v5019 = vrot.slane %v5018, 4
        %v5020 = vrot.slane %v4610, 5
        %v5021 = vsel %vm2826, %v5019, %v5020
        %s5022 = scalar_lea.vmem %s6, 128
        %v5023 = vld [vmem:[%s5022] sm:$0xf]
        %v5024 = vld [vmem:[%s5022 + $0x4] sm:$0xf]
        %v5025 = vld [vmem:[%s5022 + $0x8] sm:$0xf]
        %v5026 = vld [vmem:[%s5022 + $0xc] sm:$0xf]
        %v5027 = vld [vmem:[%s5022 + $0x10] sm:$0xf]
        %v5028 = vld [vmem:[%s5022 + $0x14] sm:$0xf]
        %v5029 = vld [vmem:[%s5022 + $0x18] sm:$0xf]
        %v5030 = vld [vmem:[%s5022 + $0x1c] sm:$0xf]
        %v5031 = vld [vmem:[%s5022 + $0x20] sm:$0xf]
        %v5032 = vld [vmem:[%s5022 + $0x24] sm:$0xf]
        %v5033 = vld [vmem:[%s5022 + $0x28] sm:$0xf]
        %v5034 = vld [vmem:[%s5022 + $0x2c] sm:$0xf]
        %v5035 = vld [vmem:[%s5022 + $0x30] sm:$0xf]
        %v5036 = vld [vmem:[%s5022 + $0x34] sm:$0xf]
        %v5037 = vld [vmem:[%s5022 + $0x38] sm:$0xf]
        %v5038 = vld [vmem:[%s5022 + $0x3c] sm:$0xf]
        %v5039 = vunpack.c.l.b16 %v4993
        %v5040 = vunpack.c.l.b16 %v4997
        %v5041 = vunpack.c.l.b16 %v5001
        %v5042 = vunpack.c.l.b16 %v5005
        %v5043 = vunpack.c.l.b16 %v5009
        %v5044 = vunpack.c.l.b16 %v5013
        %v5045 = vunpack.c.l.b16 %v5017
        %v5046 = vunpack.c.l.b16 %v5021
        %v5047 = vpack.c.b16 %v5040, %v5039
        %v5048 = vpack.c.b16 %v5042, %v5041
        %v5049 = vpack.c.b16 %v5044, %v5043
        %v5050 = vpack.c.b16 %v5046, %v5045
        %v5071 = vunpack.c.l.b16 %v5023
        %v5072 = vunpack.c.l.b16 %v5024
        %v5073 = vunpack.c.l.b16 %v5025
        %v5074 = vunpack.c.l.b16 %v5026
        %v5075 = vunpack.c.l.b16 %v5027
        %v5076 = vunpack.c.l.b16 %v5028
        %v5077 = vunpack.c.l.b16 %v5029
        %v5078 = vunpack.c.l.b16 %v5030
        %v5079 = vunpack.c.l.b16 %v5031
        %v5080 = vunpack.c.l.b16 %v5032
        %v5081 = vunpack.c.l.b16 %v5033
        %v5082 = vunpack.c.l.b16 %v5034
        %v5083 = vunpack.c.l.b16 %v5035
        %v5084 = vunpack.c.l.b16 %v5036
        %v5085 = vunpack.c.l.b16 %v5037
        %v5086 = vunpack.c.l.b16 %v5038
        %v5087 = vpack.c.b16 %v5072, %v5071
        %v5088 = vpack.c.b16 %v5074, %v5073
        %v5089 = vpack.c.b16 %v5076, %v5075
        %v5090 = vpack.c.b16 %v5078, %v5077
        %v5091 = vpack.c.b16 %v5080, %v5079
        %v5092 = vpack.c.b16 %v5082, %v5081
        %v5093 = vpack.c.b16 %v5084, %v5083
        %v5094 = vpack.c.b16 %v5086, %v5085
        %5103 = vmatprep.subr.bf16.mxu0 0
        %5104 = vmatpush1.bf16.msra.mxu0 %v5094
        %5105 = vmatprep.subr.bf16.mxu0 0
        %5106 = vmatpush1.bf16.msra.mxu0 %v5093
        %5107 = vmatprep.subr.bf16.mxu0 0
        %5108 = vmatpush1.bf16.msra.mxu0 %v5092
        %5109 = vmatprep.subr.bf16.mxu0 0
        %5110 = vmatpush1.bf16.msra.mxu0 %v5091
        %5111 = vmatprep.subr.bf16.mxu0 0
        %5112 = vmatpush1.bf16.msra.mxu0 %v5090
        %5113 = vmatprep.subr.bf16.mxu0 0
        %5114 = vmatpush1.bf16.msra.mxu0 %v5089
        %5115 = vmatprep.subr.bf16.mxu0 0
        %5116 = vmatpush1.bf16.msra.mxu0 %v5088
        %5117 = vmatprep.subr.bf16.mxu0 0
        %5118 = vmatpush1.bf16.msra.mxu0 %v5087
        %5119 = vmatprep.subr.bf16.mxu0 0
        %5120 = vmatpush2.bf16.msra.mxu0 0
        %5121 = vmatprep.subr.bf16.mxu0 0
        %5122 = vmatpush2.bf16.msra.mxu0 0
        %5123 = vmatprep.subr.bf16.mxu0 0
        %5124 = vmatpush2.bf16.msra.mxu0 0
        %5125 = vmatprep.subr.bf16.mxu0 0
        %5126 = vmatpush2.bf16.msra.mxu0 0
        %5127 = vmatprep.subr.bf16.mxu0 0
        %5128 = vmatpush2.bf16.msra.mxu0 0
        %5129 = vmatprep.subr.bf16.mxu0 0
        %5130 = vmatpush2.bf16.msra.mxu0 0
        %5131 = vmatprep.subr.bf16.mxu0 0
        %5132 = vmatpush2.bf16.msra.mxu0 0
        %5133 = vmatprep.subr.bf16.mxu0 0
        %5134 = vmatpush2.bf16.msra.mxu0 0
        %5135 = vmatprep.mubr.bf16.mxu0 0
        %5136 = vmatmul.mubr.bf16.gmra.mxu0 %v5047
        %v5137 = vpop.f32.mrf.mxu0
        %v5138 = vadd.f32 0.0, %v5137
        %v5139 = vpop.f32.mrf.mxu0
        %v5140 = vpop.f32.mrf.mxu0
        %v5141 = vadd.f32 0.0, %v5140
        %v5142 = vpop.f32.mrf.mxu0
        %5143 = vmatprep.mubr.bf16.mxu0 0
        %5144 = vmatmul.mubr.bf16.gmra.mxu0 %v5048
        %v5145 = vpop.f32.mrf.mxu0
        %v5146 = vadd.f32 0.0, %v5145
        %v5147 = vpop.f32.mrf.mxu0
        %v5148 = vpop.f32.mrf.mxu0
        %v5149 = vadd.f32 0.0, %v5148
        %v5150 = vpop.f32.mrf.mxu0
        %5151 = vmatprep.mubr.bf16.mxu0 0
        %5152 = vmatmul.mubr.bf16.gmra.mxu0 %v5049
        %v5153 = vpop.f32.mrf.mxu0
        %v5154 = vadd.f32 0.0, %v5153
        %v5155 = vpop.f32.mrf.mxu0
        %v5156 = vpop.f32.mrf.mxu0
        %v5157 = vadd.f32 0.0, %v5156
        %v5158 = vpop.f32.mrf.mxu0
        %5159 = vmatprep.mubr.bf16.mxu0 0
        %5160 = vmatmul.mubr.bf16.gmra.mxu0 %v5050
        %v5161 = vpop.f32.mrf.mxu0
        %v5162 = vadd.f32 0.0, %v5161
        %v5163 = vpop.f32.mrf.mxu0
        %v5164 = vpop.f32.mrf.mxu0
        %v5165 = vadd.f32 0.0, %v5164
        %v5166 = vpop.f32.mrf.mxu0
        %5167 = vdwg.mxu0
        %v5168 = vadd.f32 %v4960, %v5138
        %v5169 = vadd.f32 %v4963, %v5141
        %v5170 = vadd.f32 %v4968, %v5146
        %v5171 = vadd.f32 %v4971, %v5149
        %v5172 = vadd.f32 %v4976, %v5154
        %v5173 = vadd.f32 %v4979, %v5157
        %v5174 = vadd.f32 %v4984, %v5162
        %v5175 = vadd.f32 %v4987, %v5165
        %s5176 = scalar_lea.vmem %s6, 192
        %v5177 = vld [vmem:[%s5176] sm:$0xf]
        %v5178 = vld [vmem:[%s5176 + $0x4] sm:$0xf]
        %v5179 = vld [vmem:[%s5176 + $0x8] sm:$0xf]
        %v5180 = vld [vmem:[%s5176 + $0xc] sm:$0xf]
        %v5181 = vld [vmem:[%s5176 + $0x10] sm:$0xf]
        %v5182 = vld [vmem:[%s5176 + $0x14] sm:$0xf]
        %v5183 = vld [vmem:[%s5176 + $0x18] sm:$0xf]
        %v5184 = vld [vmem:[%s5176 + $0x1c] sm:$0xf]
        %v5185 = vld [vmem:[%s5176 + $0x20] sm:$0xf]
        %v5186 = vld [vmem:[%s5176 + $0x24] sm:$0xf]
        %v5187 = vld [vmem:[%s5176 + $0x28] sm:$0xf]
        %v5188 = vld [vmem:[%s5176 + $0x2c] sm:$0xf]
        %v5189 = vld [vmem:[%s5176 + $0x30] sm:$0xf]
        %v5190 = vld [vmem:[%s5176 + $0x34] sm:$0xf]
        %v5191 = vld [vmem:[%s5176 + $0x38] sm:$0xf]
        %v5192 = vld [vmem:[%s5176 + $0x3c] sm:$0xf]
        %v5194 = vunpack.c.l.b16 %v4553
        %v5195 = vpack.c.b16 %v4583, %v4581
        %v5196 = vpack.c.b16 %v4587, %v4585
        %v5197 = vpack.c.b16 %v4591, %v4589
        %v5198 = vpack.c.b16 %v5194, %v4593
        %v5219 = vunpack.c.l.b16 %v5177
        %v5220 = vunpack.c.l.b16 %v5178
        %v5221 = vunpack.c.l.b16 %v5179
        %v5222 = vunpack.c.l.b16 %v5180
        %v5223 = vunpack.c.l.b16 %v5181
        %v5224 = vunpack.c.l.b16 %v5182
        %v5225 = vunpack.c.l.b16 %v5183
        %v5226 = vunpack.c.l.b16 %v5184
        %v5227 = vunpack.c.l.b16 %v5185
        %v5228 = vunpack.c.l.b16 %v5186
        %v5229 = vunpack.c.l.b16 %v5187
        %v5230 = vunpack.c.l.b16 %v5188
        %v5231 = vunpack.c.l.b16 %v5189
        %v5232 = vunpack.c.l.b16 %v5190
        %v5233 = vunpack.c.l.b16 %v5191
        %v5234 = vunpack.c.l.b16 %v5192
        %v5235 = vpack.c.b16 %v5220, %v5219
        %v5236 = vpack.c.b16 %v5222, %v5221
        %v5237 = vpack.c.b16 %v5224, %v5223
        %v5238 = vpack.c.b16 %v5226, %v5225
        %v5239 = vpack.c.b16 %v5228, %v5227
        %v5240 = vpack.c.b16 %v5230, %v5229
        %v5241 = vpack.c.b16 %v5232, %v5231
        %v5242 = vpack.c.b16 %v5234, %v5233
        %5251 = vmatprep.subr.bf16.mxu0 0
        %5252 = vmatpush1.bf16.msra.mxu0 %v5242
        %5253 = vmatprep.subr.bf16.mxu0 0
        %5254 = vmatpush1.bf16.msra.mxu0 %v5241
        %5255 = vmatprep.subr.bf16.mxu0 0
        %5256 = vmatpush1.bf16.msra.mxu0 %v5240
        %5257 = vmatprep.subr.bf16.mxu0 0
        %5258 = vmatpush1.bf16.msra.mxu0 %v5239
        %5259 = vmatprep.subr.bf16.mxu0 0
        %5260 = vmatpush1.bf16.msra.mxu0 %v5238
        %5261 = vmatprep.subr.bf16.mxu0 0
        %5262 = vmatpush1.bf16.msra.mxu0 %v5237
        %5263 = vmatprep.subr.bf16.mxu0 0
        %5264 = vmatpush1.bf16.msra.mxu0 %v5236
        %5265 = vmatprep.subr.bf16.mxu0 0
        %5266 = vmatpush1.bf16.msra.mxu0 %v5235
        %5267 = vmatprep.subr.bf16.mxu0 0
        %5268 = vmatpush2.bf16.msra.mxu0 0
        %5269 = vmatprep.subr.bf16.mxu0 0
        %5270 = vmatpush2.bf16.msra.mxu0 0
        %5271 = vmatprep.subr.bf16.mxu0 0
        %5272 = vmatpush2.bf16.msra.mxu0 0
        %5273 = vmatprep.subr.bf16.mxu0 0
        %5274 = vmatpush2.bf16.msra.mxu0 0
        %5275 = vmatprep.subr.bf16.mxu0 0
        %5276 = vmatpush2.bf16.msra.mxu0 0
        %5277 = vmatprep.subr.bf16.mxu0 0
        %5278 = vmatpush2.bf16.msra.mxu0 0
        %5279 = vmatprep.subr.bf16.mxu0 0
        %5280 = vmatpush2.bf16.msra.mxu0 0
        %5281 = vmatprep.subr.bf16.mxu0 0
        %5282 = vmatpush2.bf16.msra.mxu0 0
        %5283 = vmatprep.mubr.bf16.mxu0 0
        %5284 = vmatmul.mubr.bf16.gmra.mxu0 %v5195
        %v5285 = vpop.f32.mrf.mxu0
        %v5286 = vadd.f32 0.0, %v5285
        %v5287 = vpop.f32.mrf.mxu0
        %v5288 = vpop.f32.mrf.mxu0
        %v5289 = vadd.f32 0.0, %v5288
        %v5290 = vpop.f32.mrf.mxu0
        %5291 = vmatprep.mubr.bf16.mxu0 0
        %5292 = vmatmul.mubr.bf16.gmra.mxu0 %v5196
        %v5293 = vpop.f32.mrf.mxu0
        %v5294 = vadd.f32 0.0, %v5293
        %v5295 = vpop.f32.mrf.mxu0
        %v5296 = vpop.f32.mrf.mxu0
        %v5297 = vadd.f32 0.0, %v5296
        %v5298 = vpop.f32.mrf.mxu0
        %5299 = vmatprep.mubr.bf16.mxu0 0
        %5300 = vmatmul.mubr.bf16.gmra.mxu0 %v5197
        %v5301 = vpop.f32.mrf.mxu0
        %v5302 = vadd.f32 0.0, %v5301
        %v5303 = vpop.f32.mrf.mxu0
        %v5304 = vpop.f32.mrf.mxu0
        %v5305 = vadd.f32 0.0, %v5304
        %v5306 = vpop.f32.mrf.mxu0
        %5307 = vmatprep.mubr.bf16.mxu0 0
        %5308 = vmatmul.mubr.bf16.gmra.mxu0 %v5198
        %v5309 = vpop.f32.mrf.mxu0
        %v5310 = vadd.f32 0.0, %v5309
        %v5311 = vpop.f32.mrf.mxu0
        %v5312 = vpop.f32.mrf.mxu0
        %v5313 = vadd.f32 0.0, %v5312
        %v5314 = vpop.f32.mrf.mxu0
        %5315 = vdwg.mxu0
        %v5316 = vadd.f32 %v5168, %v5286
        %v5317 = vadd.f32 %v5169, %v5289
        %v5318 = vadd.f32 %v5170, %v5294
        %v5319 = vadd.f32 %v5171, %v5297
        %v5320 = vadd.f32 %v5172, %v5302
        %v5321 = vadd.f32 %v5173, %v5305
        %v5322 = vadd.f32 %v5174, %v5310
        %v5323 = vadd.f32 %v5175, %v5313
        %v5324 = vunpack.c.h.b16 %v4553
        %v5325 = vpack.c.b16 %v5194, %v5194
        %v5326 = vpack.c.b16 %v5324, %v5324
        %v5328 = vshrl.u32 %v5325, 16
        %v5330 = vrot.slane %v5328, 4
        %v5331 = vshll.u32 %v5325, 16
        %v5333 = vrot.slane %v5331, 5
        %v5334 = vor.u32 %v5330, %v5333
        %v5335 = vrot.slane %v5334, 4
        %v5337 = vshll.u32 %v5326, 16
        %v5339 = vrot.slane %v5337, 5
        %v5340 = vsel %vm2308, %v5335, %v5339
        %s5341 = scalar_lea.vmem %s6, 256
        %v5342 = vld [vmem:[%s5341] sm:$0xf]
        %v5343 = vld [vmem:[%s5341 + $0x4] sm:$0xf]
        %v5344 = vld [vmem:[%s5341 + $0x8] sm:$0xf]
        %v5345 = vld [vmem:[%s5341 + $0xc] sm:$0xf]
        %v5346 = vld [vmem:[%s5341 + $0x10] sm:$0xf]
        %v5347 = vld [vmem:[%s5341 + $0x14] sm:$0xf]
        %v5348 = vld [vmem:[%s5341 + $0x18] sm:$0xf]
        %v5349 = vld [vmem:[%s5341 + $0x1c] sm:$0xf]
        %v5350 = vld [vmem:[%s5341 + $0x20] sm:$0xf]
        %v5351 = vld [vmem:[%s5341 + $0x24] sm:$0xf]
        %v5352 = vld [vmem:[%s5341 + $0x28] sm:$0xf]
        %v5353 = vld [vmem:[%s5341 + $0x2c] sm:$0xf]
        %v5354 = vld [vmem:[%s5341 + $0x30] sm:$0xf]
        %v5355 = vld [vmem:[%s5341 + $0x34] sm:$0xf]
        %v5356 = vld [vmem:[%s5341 + $0x38] sm:$0xf]
        %v5357 = vld [vmem:[%s5341 + $0x3c] sm:$0xf]
        %v5358 = vunpack.c.l.b16 %v5340
        %v5359 = vpack.c.b16 %v4742, %v4741
        %v5360 = vpack.c.b16 %v4744, %v4743
        %v5361 = vpack.c.b16 %v4746, %v4745
        %v5362 = vpack.c.b16 %v5358, %v4747
        %v5383 = vunpack.c.l.b16 %v5342
        %v5384 = vunpack.c.l.b16 %v5343
        %v5385 = vunpack.c.l.b16 %v5344
        %v5386 = vunpack.c.l.b16 %v5345
        %v5387 = vunpack.c.l.b16 %v5346
        %v5388 = vunpack.c.l.b16 %v5347
        %v5389 = vunpack.c.l.b16 %v5348
        %v5390 = vunpack.c.l.b16 %v5349
        %v5391 = vunpack.c.l.b16 %v5350
        %v5392 = vunpack.c.l.b16 %v5351
        %v5393 = vunpack.c.l.b16 %v5352
        %v5394 = vunpack.c.l.b16 %v5353
        %v5395 = vunpack.c.l.b16 %v5354
        %v5396 = vunpack.c.l.b16 %v5355
        %v5397 = vunpack.c.l.b16 %v5356
        %v5398 = vunpack.c.l.b16 %v5357
        %v5399 = vpack.c.b16 %v5384, %v5383
        %v5400 = vpack.c.b16 %v5386, %v5385
        %v5401 = vpack.c.b16 %v5388, %v5387
        %v5402 = vpack.c.b16 %v5390, %v5389
        %v5403 = vpack.c.b16 %v5392, %v5391
        %v5404 = vpack.c.b16 %v5394, %v5393
        %v5405 = vpack.c.b16 %v5396, %v5395
        %v5406 = vpack.c.b16 %v5398, %v5397
        %5415 = vmatprep.subr.bf16.mxu0 0
        %5416 = vmatpush1.bf16.msra.mxu0 %v5406
        %5417 = vmatprep.subr.bf16.mxu0 0
        %5418 = vmatpush1.bf16.msra.mxu0 %v5405
        %5419 = vmatprep.subr.bf16.mxu0 0
        %5420 = vmatpush1.bf16.msra.mxu0 %v5404
        %5421 = vmatprep.subr.bf16.mxu0 0
        %5422 = vmatpush1.bf16.msra.mxu0 %v5403
        %5423 = vmatprep.subr.bf16.mxu0 0
        %5424 = vmatpush1.bf16.msra.mxu0 %v5402
        %5425 = vmatprep.subr.bf16.mxu0 0
        %5426 = vmatpush1.bf16.msra.mxu0 %v5401
        %5427 = vmatprep.subr.bf16.mxu0 0
        %5428 = vmatpush1.bf16.msra.mxu0 %v5400
        %5429 = vmatprep.subr.bf16.mxu0 0
        %5430 = vmatpush1.bf16.msra.mxu0 %v5399
        %5431 = vmatprep.subr.bf16.mxu0 0
        %5432 = vmatpush2.bf16.msra.mxu0 0
        %5433 = vmatprep.subr.bf16.mxu0 0
        %5434 = vmatpush2.bf16.msra.mxu0 0
        %5435 = vmatprep.subr.bf16.mxu0 0
        %5436 = vmatpush2.bf16.msra.mxu0 0
        %5437 = vmatprep.subr.bf16.mxu0 0
        %5438 = vmatpush2.bf16.msra.mxu0 0
        %5439 = vmatprep.subr.bf16.mxu0 0
        %5440 = vmatpush2.bf16.msra.mxu0 0
        %5441 = vmatprep.subr.bf16.mxu0 0
        %5442 = vmatpush2.bf16.msra.mxu0 0
        %5443 = vmatprep.subr.bf16.mxu0 0
        %5444 = vmatpush2.bf16.msra.mxu0 0
        %5445 = vmatprep.subr.bf16.mxu0 0
        %5446 = vmatpush2.bf16.msra.mxu0 0
        %5447 = vmatprep.mubr.bf16.mxu0 0
        %5448 = vmatmul.mubr.bf16.gmra.mxu0 %v5359
        %v5449 = vpop.f32.mrf.mxu0
        %v5450 = vadd.f32 0.0, %v5449
        %v5451 = vpop.f32.mrf.mxu0
        %v5452 = vpop.f32.mrf.mxu0
        %v5453 = vadd.f32 0.0, %v5452
        %v5454 = vpop.f32.mrf.mxu0
        %5455 = vmatprep.mubr.bf16.mxu0 0
        %5456 = vmatmul.mubr.bf16.gmra.mxu0 %v5360
        %v5457 = vpop.f32.mrf.mxu0
        %v5458 = vadd.f32 0.0, %v5457
        %v5459 = vpop.f32.mrf.mxu0
        %v5460 = vpop.f32.mrf.mxu0
        %v5461 = vadd.f32 0.0, %v5460
        %v5462 = vpop.f32.mrf.mxu0
        %5463 = vmatprep.mubr.bf16.mxu0 0
        %5464 = vmatmul.mubr.bf16.gmra.mxu0 %v5361
        %v5465 = vpop.f32.mrf.mxu0
        %v5466 = vadd.f32 0.0, %v5465
        %v5467 = vpop.f32.mrf.mxu0
        %v5468 = vpop.f32.mrf.mxu0
        %v5469 = vadd.f32 0.0, %v5468
        %v5470 = vpop.f32.mrf.mxu0
        %5471 = vmatprep.mubr.bf16.mxu0 0
        %5472 = vmatmul.mubr.bf16.gmra.mxu0 %v5362
        %v5473 = vpop.f32.mrf.mxu0
        %v5474 = vadd.f32 0.0, %v5473
        %v5475 = vpop.f32.mrf.mxu0
        %v5476 = vpop.f32.mrf.mxu0
        %v5477 = vadd.f32 0.0, %v5476
        %v5478 = vpop.f32.mrf.mxu0
        %5479 = vdwg.mxu0
        %v5480 = vadd.f32 %v5316, %v5450
        %v5481 = vadd.f32 %v5317, %v5453
        %v5482 = vadd.f32 %v5318, %v5458
        %v5483 = vadd.f32 %v5319, %v5461
        %v5484 = vadd.f32 %v5320, %v5466
        %v5485 = vadd.f32 %v5321, %v5469
        %v5486 = vadd.f32 %v5322, %v5474
        %v5487 = vadd.f32 %v5323, %v5477
        %v5488 = vrot.slane %v5325, 5
        %v5489 = vrot.slane %v5488, 4
        %v5490 = vrot.slane %v5326, 5
        %v5491 = vsel %vm2826, %v5489, %v5490
        %s5492 = scalar_lea.vmem %s6, 320
        %v5493 = vld [vmem:[%s5492] sm:$0xf]
        %v5494 = vld [vmem:[%s5492 + $0x4] sm:$0xf]
        %v5495 = vld [vmem:[%s5492 + $0x8] sm:$0xf]
        %v5496 = vld [vmem:[%s5492 + $0xc] sm:$0xf]
        %v5497 = vld [vmem:[%s5492 + $0x10] sm:$0xf]
        %v5498 = vld [vmem:[%s5492 + $0x14] sm:$0xf]
        %v5499 = vld [vmem:[%s5492 + $0x18] sm:$0xf]
        %v5500 = vld [vmem:[%s5492 + $0x1c] sm:$0xf]
        %v5501 = vld [vmem:[%s5492 + $0x20] sm:$0xf]
        %v5502 = vld [vmem:[%s5492 + $0x24] sm:$0xf]
        %v5503 = vld [vmem:[%s5492 + $0x28] sm:$0xf]
        %v5504 = vld [vmem:[%s5492 + $0x2c] sm:$0xf]
        %v5505 = vld [vmem:[%s5492 + $0x30] sm:$0xf]
        %v5506 = vld [vmem:[%s5492 + $0x34] sm:$0xf]
        %v5507 = vld [vmem:[%s5492 + $0x38] sm:$0xf]
        %v5508 = vld [vmem:[%s5492 + $0x3c] sm:$0xf]
        %v5509 = vunpack.c.l.b16 %v5491
        %v5510 = vpack.c.b16 %v5041, %v5040
        %v5511 = vpack.c.b16 %v5043, %v5042
        %v5512 = vpack.c.b16 %v5045, %v5044
        %v5513 = vpack.c.b16 %v5509, %v5046
        %v5534 = vunpack.c.l.b16 %v5493
        %v5535 = vunpack.c.l.b16 %v5494
        %v5536 = vunpack.c.l.b16 %v5495
        %v5537 = vunpack.c.l.b16 %v5496
        %v5538 = vunpack.c.l.b16 %v5497
        %v5539 = vunpack.c.l.b16 %v5498
        %v5540 = vunpack.c.l.b16 %v5499
        %v5541 = vunpack.c.l.b16 %v5500
        %v5542 = vunpack.c.l.b16 %v5501
        %v5543 = vunpack.c.l.b16 %v5502
        %v5544 = vunpack.c.l.b16 %v5503
        %v5545 = vunpack.c.l.b16 %v5504
        %v5546 = vunpack.c.l.b16 %v5505
        %v5547 = vunpack.c.l.b16 %v5506
        %v5548 = vunpack.c.l.b16 %v5507
        %v5549 = vunpack.c.l.b16 %v5508
        %v5550 = vpack.c.b16 %v5535, %v5534
        %v5551 = vpack.c.b16 %v5537, %v5536
        %v5552 = vpack.c.b16 %v5539, %v5538
        %v5553 = vpack.c.b16 %v5541, %v5540
        %v5554 = vpack.c.b16 %v5543, %v5542
        %v5555 = vpack.c.b16 %v5545, %v5544
        %v5556 = vpack.c.b16 %v5547, %v5546
        %v5557 = vpack.c.b16 %v5549, %v5548
        %5566 = vmatprep.subr.bf16.mxu0 0
        %5567 = vmatpush1.bf16.msra.mxu0 %v5557
        %5568 = vmatprep.subr.bf16.mxu0 0
        %5569 = vmatpush1.bf16.msra.mxu0 %v5556
        %5570 = vmatprep.subr.bf16.mxu0 0
        %5571 = vmatpush1.bf16.msra.mxu0 %v5555
        %5572 = vmatprep.subr.bf16.mxu0 0
        %5573 = vmatpush1.bf16.msra.mxu0 %v5554
        %5574 = vmatprep.subr.bf16.mxu0 0
        %5575 = vmatpush1.bf16.msra.mxu0 %v5553
        %5576 = vmatprep.subr.bf16.mxu0 0
        %5577 = vmatpush1.bf16.msra.mxu0 %v5552
        %5578 = vmatprep.subr.bf16.mxu0 0
        %5579 = vmatpush1.bf16.msra.mxu0 %v5551
        %5580 = vmatprep.subr.bf16.mxu0 0
        %5581 = vmatpush1.bf16.msra.mxu0 %v5550
        %5582 = vmatprep.subr.bf16.mxu0 0
        %5583 = vmatpush2.bf16.msra.mxu0 0
        %5584 = vmatprep.subr.bf16.mxu0 0
        %5585 = vmatpush2.bf16.msra.mxu0 0
        %5586 = vmatprep.subr.bf16.mxu0 0
        %5587 = vmatpush2.bf16.msra.mxu0 0
        %5588 = vmatprep.subr.bf16.mxu0 0
        %5589 = vmatpush2.bf16.msra.mxu0 0
        %5590 = vmatprep.subr.bf16.mxu0 0
        %5591 = vmatpush2.bf16.msra.mxu0 0
        %5592 = vmatprep.subr.bf16.mxu0 0
        %5593 = vmatpush2.bf16.msra.mxu0 0
        %5594 = vmatprep.subr.bf16.mxu0 0
        %5595 = vmatpush2.bf16.msra.mxu0 0
        %5596 = vmatprep.subr.bf16.mxu0 0
        %5597 = vmatpush2.bf16.msra.mxu0 0
        %5598 = vmatprep.mubr.bf16.mxu0 0
        %5599 = vmatmul.mubr.bf16.gmra.mxu0 %v5510
        %v5600 = vpop.f32.mrf.mxu0
        %v5601 = vadd.f32 0.0, %v5600
        %v5602 = vpop.f32.mrf.mxu0
        %v5603 = vpop.f32.mrf.mxu0
        %v5604 = vadd.f32 0.0, %v5603
        %v5605 = vpop.f32.mrf.mxu0
        %5606 = vmatprep.mubr.bf16.mxu0 0
        %5607 = vmatmul.mubr.bf16.gmra.mxu0 %v5511
        %v5608 = vpop.f32.mrf.mxu0
        %v5609 = vadd.f32 0.0, %v5608
        %v5610 = vpop.f32.mrf.mxu0
        %v5611 = vpop.f32.mrf.mxu0
        %v5612 = vadd.f32 0.0, %v5611
        %v5613 = vpop.f32.mrf.mxu0
        %5614 = vmatprep.mubr.bf16.mxu0 0
        %5615 = vmatmul.mubr.bf16.gmra.mxu0 %v5512
        %v5616 = vpop.f32.mrf.mxu0
        %v5617 = vadd.f32 0.0, %v5616
        %v5618 = vpop.f32.mrf.mxu0
        %v5619 = vpop.f32.mrf.mxu0
        %v5620 = vadd.f32 0.0, %v5619
        %v5621 = vpop.f32.mrf.mxu0
        %5622 = vmatprep.mubr.bf16.mxu0 0
        %5623 = vmatmul.mubr.bf16.gmra.mxu0 %v5513
        %v5624 = vpop.f32.mrf.mxu0
        %v5625 = vadd.f32 0.0, %v5624
        %v5626 = vpop.f32.mrf.mxu0
        %v5627 = vpop.f32.mrf.mxu0
        %v5628 = vadd.f32 0.0, %v5627
        %v5629 = vpop.f32.mrf.mxu0
        %5630 = vdwg.mxu0
        %v5631 = vadd.f32 %v5480, %v5601
        %v5632 = vadd.f32 %v5481, %v5604
        %v5633 = vadd.f32 %v5482, %v5609
        %v5634 = vadd.f32 %v5483, %v5612
        %v5635 = vadd.f32 %v5484, %v5617
        %v5636 = vadd.f32 %v5485, %v5620
        %v5637 = vadd.f32 %v5486, %v5625
        %v5638 = vadd.f32 %v5487, %v5628
        %s5639 = scalar_lea.vmem %s6, 384
        %v5640 = vld [vmem:[%s5639] sm:$0xf]
        %v5641 = vld [vmem:[%s5639 + $0x4] sm:$0xf]
        %v5642 = vld [vmem:[%s5639 + $0x8] sm:$0xf]
        %v5643 = vld [vmem:[%s5639 + $0xc] sm:$0xf]
        %v5644 = vld [vmem:[%s5639 + $0x10] sm:$0xf]
        %v5645 = vld [vmem:[%s5639 + $0x14] sm:$0xf]
        %v5646 = vld [vmem:[%s5639 + $0x18] sm:$0xf]
        %v5647 = vld [vmem:[%s5639 + $0x1c] sm:$0xf]
        %v5648 = vld [vmem:[%s5639 + $0x20] sm:$0xf]
        %v5649 = vld [vmem:[%s5639 + $0x24] sm:$0xf]
        %v5650 = vld [vmem:[%s5639 + $0x28] sm:$0xf]
        %v5651 = vld [vmem:[%s5639 + $0x2c] sm:$0xf]
        %v5652 = vld [vmem:[%s5639 + $0x30] sm:$0xf]
        %v5653 = vld [vmem:[%s5639 + $0x34] sm:$0xf]
        %v5654 = vld [vmem:[%s5639 + $0x38] sm:$0xf]
        %v5655 = vld [vmem:[%s5639 + $0x3c] sm:$0xf]
        %v5657 = vunpack.c.l.b16 %v4554
        %v5658 = vpack.c.b16 %v5657, %v5194
        %v5676 = vunpack.c.l.b16 %v5640
        %v5677 = vunpack.c.l.b16 %v5641
        %v5678 = vunpack.c.l.b16 %v5642
        %v5679 = vunpack.c.l.b16 %v5643
        %v5680 = vunpack.c.l.b16 %v5644
        %v5681 = vunpack.c.l.b16 %v5645
        %v5682 = vunpack.c.l.b16 %v5646
        %v5683 = vunpack.c.l.b16 %v5647
        %v5684 = vunpack.c.l.b16 %v5648
        %v5685 = vunpack.c.l.b16 %v5649
        %v5686 = vunpack.c.l.b16 %v5650
        %v5687 = vunpack.c.l.b16 %v5651
        %v5688 = vunpack.c.l.b16 %v5652
        %v5689 = vunpack.c.l.b16 %v5653
        %v5690 = vunpack.c.l.b16 %v5654
        %v5691 = vunpack.c.l.b16 %v5655
        %v5692 = vpack.c.b16 %v5677, %v5676
        %v5693 = vpack.c.b16 %v5679, %v5678
        %v5694 = vpack.c.b16 %v5681, %v5680
        %v5695 = vpack.c.b16 %v5683, %v5682
        %v5696 = vpack.c.b16 %v5685, %v5684
        %v5697 = vpack.c.b16 %v5687, %v5686
        %v5698 = vpack.c.b16 %v5689, %v5688
        %v5699 = vpack.c.b16 %v5691, %v5690
        %5708 = vmatprep.subr.bf16.mxu0 0
        %5709 = vmatpush1.bf16.msra.mxu0 %v5699
        %5710 = vmatprep.subr.bf16.mxu0 0
        %5711 = vmatpush1.bf16.msra.mxu0 %v5698
        %5712 = vmatprep.subr.bf16.mxu0 0
        %5713 = vmatpush1.bf16.msra.mxu0 %v5697
        %5714 = vmatprep.subr.bf16.mxu0 0
        %5715 = vmatpush1.bf16.msra.mxu0 %v5696
        %5716 = vmatprep.subr.bf16.mxu0 0
        %5717 = vmatpush1.bf16.msra.mxu0 %v5695
        %5718 = vmatprep.subr.bf16.mxu0 0
        %5719 = vmatpush1.bf16.msra.mxu0 %v5694
        %5720 = vmatprep.subr.bf16.mxu0 0
        %5721 = vmatpush1.bf16.msra.mxu0 %v5693
        %5722 = vmatprep.subr.bf16.mxu0 0
        %5723 = vmatpush1.bf16.msra.mxu0 %v5692
        %5724 = vmatprep.subr.bf16.mxu0 0
        %5725 = vmatpush2.bf16.msra.mxu0 0
        %5726 = vmatprep.subr.bf16.mxu0 0
        %5727 = vmatpush2.bf16.msra.mxu0 0
        %5728 = vmatprep.subr.bf16.mxu0 0
        %5729 = vmatpush2.bf16.msra.mxu0 0
        %5730 = vmatprep.subr.bf16.mxu0 0
        %5731 = vmatpush2.bf16.msra.mxu0 0
        %5732 = vmatprep.subr.bf16.mxu0 0
        %5733 = vmatpush2.bf16.msra.mxu0 0
        %5734 = vmatprep.subr.bf16.mxu0 0
        %5735 = vmatpush2.bf16.msra.mxu0 0
        %5736 = vmatprep.subr.bf16.mxu0 0
        %5737 = vmatpush2.bf16.msra.mxu0 0
        %5738 = vmatprep.subr.bf16.mxu0 0
        %5739 = vmatpush2.bf16.msra.mxu0 0
        %5740 = vmatprep.mubr.bf16.mxu0 0
        %5741 = vmatmul.mubr.bf16.gmra.mxu0 %v4870
        %v5742 = vpop.f32.mrf.mxu0
        %v5743 = vadd.f32 0.0, %v5742
        %v5744 = vpop.f32.mrf.mxu0
        %v5745 = vpop.f32.mrf.mxu0
        %v5746 = vadd.f32 0.0, %v5745
        %v5747 = vpop.f32.mrf.mxu0
        %5748 = vmatprep.mubr.bf16.mxu0 0
        %5749 = vmatmul.mubr.bf16.gmra.mxu0 %v4871
        %v5750 = vpop.f32.mrf.mxu0
        %v5751 = vadd.f32 0.0, %v5750
        %v5752 = vpop.f32.mrf.mxu0
        %v5753 = vpop.f32.mrf.mxu0
        %v5754 = vadd.f32 0.0, %v5753
        %v5755 = vpop.f32.mrf.mxu0
        %5756 = vmatprep.mubr.bf16.mxu0 0
        %5757 = vmatmul.mubr.bf16.gmra.mxu0 %v4872
        %v5758 = vpop.f32.mrf.mxu0
        %v5759 = vadd.f32 0.0, %v5758
        %v5760 = vpop.f32.mrf.mxu0
        %v5761 = vpop.f32.mrf.mxu0
        %v5762 = vadd.f32 0.0, %v5761
        %v5763 = vpop.f32.mrf.mxu0
        %5764 = vmatprep.mubr.bf16.mxu0 0
        %5765 = vmatmul.mubr.bf16.gmra.mxu0 %v5658
        %v5766 = vpop.f32.mrf.mxu0
        %v5767 = vadd.f32 0.0, %v5766
        %v5768 = vpop.f32.mrf.mxu0
        %v5769 = vpop.f32.mrf.mxu0
        %v5770 = vadd.f32 0.0, %v5769
        %v5771 = vpop.f32.mrf.mxu0
        %5772 = vdwg.mxu0
        %v5773 = vadd.f32 %v5631, %v5743
        %v5774 = vadd.f32 %v5632, %v5746
        %v5775 = vadd.f32 %v5633, %v5751
        %v5776 = vadd.f32 %v5634, %v5754
        %v5777 = vadd.f32 %v5635, %v5759
        %v5778 = vadd.f32 %v5636, %v5762
        %v5779 = vadd.f32 %v5637, %v5767
        %v5780 = vadd.f32 %v5638, %v5770
        %v5781 = vunpack.c.h.b16 %v4554
        %v5782 = vpack.c.b16 %v5657, %v5657
        %v5783 = vpack.c.b16 %v5781, %v5781
        %v5785 = vshrl.u32 %v5782, 16
        %v5787 = vrot.slane %v5785, 4
        %v5788 = vshll.u32 %v5782, 16
        %v5790 = vrot.slane %v5788, 5
        %v5791 = vor.u32 %v5787, %v5790
        %v5792 = vrot.slane %v5791, 4
        %v5794 = vshll.u32 %v5783, 16
        %v5796 = vrot.slane %v5794, 5
        %v5797 = vsel %vm2308, %v5792, %v5796
        %s5798 = scalar_lea.vmem %s6, 448
        %v5799 = vld [vmem:[%s5798] sm:$0xf]
        %v5800 = vld [vmem:[%s5798 + $0x4] sm:$0xf]
        %v5801 = vld [vmem:[%s5798 + $0x8] sm:$0xf]
        %v5802 = vld [vmem:[%s5798 + $0xc] sm:$0xf]
        %v5803 = vld [vmem:[%s5798 + $0x10] sm:$0xf]
        %v5804 = vld [vmem:[%s5798 + $0x14] sm:$0xf]
        %v5805 = vld [vmem:[%s5798 + $0x18] sm:$0xf]
        %v5806 = vld [vmem:[%s5798 + $0x1c] sm:$0xf]
        %v5807 = vld [vmem:[%s5798 + $0x20] sm:$0xf]
        %v5808 = vld [vmem:[%s5798 + $0x24] sm:$0xf]
        %v5809 = vld [vmem:[%s5798 + $0x28] sm:$0xf]
        %v5810 = vld [vmem:[%s5798 + $0x2c] sm:$0xf]
        %v5811 = vld [vmem:[%s5798 + $0x30] sm:$0xf]
        %v5812 = vld [vmem:[%s5798 + $0x34] sm:$0xf]
        %v5813 = vld [vmem:[%s5798 + $0x38] sm:$0xf]
        %v5814 = vld [vmem:[%s5798 + $0x3c] sm:$0xf]
        %v5815 = vunpack.c.l.b16 %v5797
        %v5816 = vpack.c.b16 %v5815, %v5358
        %v5834 = vunpack.c.l.b16 %v5799
        %v5835 = vunpack.c.l.b16 %v5800
        %v5836 = vunpack.c.l.b16 %v5801
        %v5837 = vunpack.c.l.b16 %v5802
        %v5838 = vunpack.c.l.b16 %v5803
        %v5839 = vunpack.c.l.b16 %v5804
        %v5840 = vunpack.c.l.b16 %v5805
        %v5841 = vunpack.c.l.b16 %v5806
        %v5842 = vunpack.c.l.b16 %v5807
        %v5843 = vunpack.c.l.b16 %v5808
        %v5844 = vunpack.c.l.b16 %v5809
        %v5845 = vunpack.c.l.b16 %v5810
        %v5846 = vunpack.c.l.b16 %v5811
        %v5847 = vunpack.c.l.b16 %v5812
        %v5848 = vunpack.c.l.b16 %v5813
        %v5849 = vunpack.c.l.b16 %v5814
        %v5850 = vpack.c.b16 %v5835, %v5834
        %v5851 = vpack.c.b16 %v5837, %v5836
        %v5852 = vpack.c.b16 %v5839, %v5838
        %v5853 = vpack.c.b16 %v5841, %v5840
        %v5854 = vpack.c.b16 %v5843, %v5842
        %v5855 = vpack.c.b16 %v5845, %v5844
        %v5856 = vpack.c.b16 %v5847, %v5846
        %v5857 = vpack.c.b16 %v5849, %v5848
        %5866 = vmatprep.subr.bf16.mxu0 0
        %5867 = vmatpush1.bf16.msra.mxu0 %v5857
        %5868 = vmatprep.subr.bf16.mxu0 0
        %5869 = vmatpush1.bf16.msra.mxu0 %v5856
        %5870 = vmatprep.subr.bf16.mxu0 0
        %5871 = vmatpush1.bf16.msra.mxu0 %v5855
        %5872 = vmatprep.subr.bf16.mxu0 0
        %5873 = vmatpush1.bf16.msra.mxu0 %v5854
        %5874 = vmatprep.subr.bf16.mxu0 0
        %5875 = vmatpush1.bf16.msra.mxu0 %v5853
        %5876 = vmatprep.subr.bf16.mxu0 0
        %5877 = vmatpush1.bf16.msra.mxu0 %v5852
        %5878 = vmatprep.subr.bf16.mxu0 0
        %5879 = vmatpush1.bf16.msra.mxu0 %v5851
        %5880 = vmatprep.subr.bf16.mxu0 0
        %5881 = vmatpush1.bf16.msra.mxu0 %v5850
        %5882 = vmatprep.subr.bf16.mxu0 0
        %5883 = vmatpush2.bf16.msra.mxu0 0
        %5884 = vmatprep.subr.bf16.mxu0 0
        %5885 = vmatpush2.bf16.msra.mxu0 0
        %5886 = vmatprep.subr.bf16.mxu0 0
        %5887 = vmatpush2.bf16.msra.mxu0 0
        %5888 = vmatprep.subr.bf16.mxu0 0
        %5889 = vmatpush2.bf16.msra.mxu0 0
        %5890 = vmatprep.subr.bf16.mxu0 0
        %5891 = vmatpush2.bf16.msra.mxu0 0
        %5892 = vmatprep.subr.bf16.mxu0 0
        %5893 = vmatpush2.bf16.msra.mxu0 0
        %5894 = vmatprep.subr.bf16.mxu0 0
        %5895 = vmatpush2.bf16.msra.mxu0 0
        %5896 = vmatprep.subr.bf16.mxu0 0
        %5897 = vmatpush2.bf16.msra.mxu0 0
        %5898 = vmatprep.mubr.bf16.mxu0 0
        %5899 = vmatmul.mubr.bf16.gmra.mxu0 %v4749
        %v5900 = vpop.f32.mrf.mxu0
        %v5901 = vadd.f32 0.0, %v5900
        %v5902 = vpop.f32.mrf.mxu0
        %v5903 = vpop.f32.mrf.mxu0
        %v5904 = vadd.f32 0.0, %v5903
        %v5905 = vpop.f32.mrf.mxu0
        %5906 = vmatprep.mubr.bf16.mxu0 0
        %5907 = vmatmul.mubr.bf16.gmra.mxu0 %v4750
        %v5908 = vpop.f32.mrf.mxu0
        %v5909 = vadd.f32 0.0, %v5908
        %v5910 = vpop.f32.mrf.mxu0
        %v5911 = vpop.f32.mrf.mxu0
        %v5912 = vadd.f32 0.0, %v5911
        %v5913 = vpop.f32.mrf.mxu0
        %5914 = vmatprep.mubr.bf16.mxu0 0
        %5915 = vmatmul.mubr.bf16.gmra.mxu0 %v4751
        %v5916 = vpop.f32.mrf.mxu0
        %v5917 = vadd.f32 0.0, %v5916
        %v5918 = vpop.f32.mrf.mxu0
        %v5919 = vpop.f32.mrf.mxu0
        %v5920 = vadd.f32 0.0, %v5919
        %v5921 = vpop.f32.mrf.mxu0
        %5922 = vmatprep.mubr.bf16.mxu0 0
        %5923 = vmatmul.mubr.bf16.gmra.mxu0 %v5816
        %v5924 = vpop.f32.mrf.mxu0
        %v5925 = vadd.f32 0.0, %v5924
        %v5926 = vpop.f32.mrf.mxu0
        %v5927 = vpop.f32.mrf.mxu0
        %v5928 = vadd.f32 0.0, %v5927
        %v5929 = vpop.f32.mrf.mxu0
        %5930 = vdwg.mxu0
        %v5931 = vadd.f32 %v5773, %v5901
        %v5932 = vadd.f32 %v5774, %v5904
        %v5933 = vadd.f32 %v5775, %v5909
        %v5934 = vadd.f32 %v5776, %v5912
        %v5935 = vadd.f32 %v5777, %v5917
        %v5936 = vadd.f32 %v5778, %v5920
        %v5937 = vadd.f32 %v5779, %v5925
        %v5938 = vadd.f32 %v5780, %v5928
        %v5939 = vrot.slane %v5782, 5
        %v5940 = vrot.slane %v5939, 4
        %v5941 = vrot.slane %v5783, 5
        %v5942 = vsel %vm2826, %v5940, %v5941
        %s5943 = scalar_lea.vmem %s6, 512
        %v5944 = vld [vmem:[%s5943] sm:$0xf]
        %v5945 = vld [vmem:[%s5943 + $0x4] sm:$0xf]
        %v5946 = vld [vmem:[%s5943 + $0x8] sm:$0xf]
        %v5947 = vld [vmem:[%s5943 + $0xc] sm:$0xf]
        %v5948 = vld [vmem:[%s5943 + $0x10] sm:$0xf]
        %v5949 = vld [vmem:[%s5943 + $0x14] sm:$0xf]
        %v5950 = vld [vmem:[%s5943 + $0x18] sm:$0xf]
        %v5951 = vld [vmem:[%s5943 + $0x1c] sm:$0xf]
        %v5952 = vld [vmem:[%s5943 + $0x20] sm:$0xf]
        %v5953 = vld [vmem:[%s5943 + $0x24] sm:$0xf]
        %v5954 = vld [vmem:[%s5943 + $0x28] sm:$0xf]
        %v5955 = vld [vmem:[%s5943 + $0x2c] sm:$0xf]
        %v5956 = vld [vmem:[%s5943 + $0x30] sm:$0xf]
        %v5957 = vld [vmem:[%s5943 + $0x34] sm:$0xf]
        %v5958 = vld [vmem:[%s5943 + $0x38] sm:$0xf]
        %v5959 = vld [vmem:[%s5943 + $0x3c] sm:$0xf]
        %v5960 = vunpack.c.l.b16 %v5942
        %v5961 = vpack.c.b16 %v5960, %v5509
        %v5979 = vunpack.c.l.b16 %v5944
        %v5980 = vunpack.c.l.b16 %v5945
        %v5981 = vunpack.c.l.b16 %v5946
        %v5982 = vunpack.c.l.b16 %v5947
        %v5983 = vunpack.c.l.b16 %v5948
        %v5984 = vunpack.c.l.b16 %v5949
        %v5985 = vunpack.c.l.b16 %v5950
        %v5986 = vunpack.c.l.b16 %v5951
        %v5987 = vunpack.c.l.b16 %v5952
        %v5988 = vunpack.c.l.b16 %v5953
        %v5989 = vunpack.c.l.b16 %v5954
        %v5990 = vunpack.c.l.b16 %v5955
        %v5991 = vunpack.c.l.b16 %v5956
        %v5992 = vunpack.c.l.b16 %v5957
        %v5993 = vunpack.c.l.b16 %v5958
        %v5994 = vunpack.c.l.b16 %v5959
        %v5995 = vpack.c.b16 %v5980, %v5979
        %v5996 = vpack.c.b16 %v5982, %v5981
        %v5997 = vpack.c.b16 %v5984, %v5983
        %v5998 = vpack.c.b16 %v5986, %v5985
        %v5999 = vpack.c.b16 %v5988, %v5987
        %v6000 = vpack.c.b16 %v5990, %v5989
        %v6001 = vpack.c.b16 %v5992, %v5991
        %v6002 = vpack.c.b16 %v5994, %v5993
        %6011 = vmatprep.subr.bf16.mxu0 0
        %6012 = vmatpush1.bf16.msra.mxu0 %v6002
        %6013 = vmatprep.subr.bf16.mxu0 0
        %6014 = vmatpush1.bf16.msra.mxu0 %v6001
        %6015 = vmatprep.subr.bf16.mxu0 0
        %6016 = vmatpush1.bf16.msra.mxu0 %v6000
        %6017 = vmatprep.subr.bf16.mxu0 0
        %6018 = vmatpush1.bf16.msra.mxu0 %v5999
        %6019 = vmatprep.subr.bf16.mxu0 0
        %6020 = vmatpush1.bf16.msra.mxu0 %v5998
        %6021 = vmatprep.subr.bf16.mxu0 0
        %6022 = vmatpush1.bf16.msra.mxu0 %v5997
        %6023 = vmatprep.subr.bf16.mxu0 0
        %6024 = vmatpush1.bf16.msra.mxu0 %v5996
        %6025 = vmatprep.subr.bf16.mxu0 0
        %6026 = vmatpush1.bf16.msra.mxu0 %v5995
        %6027 = vmatprep.subr.bf16.mxu0 0
        %6028 = vmatpush2.bf16.msra.mxu0 0
        %6029 = vmatprep.subr.bf16.mxu0 0
        %6030 = vmatpush2.bf16.msra.mxu0 0
        %6031 = vmatprep.subr.bf16.mxu0 0
        %6032 = vmatpush2.bf16.msra.mxu0 0
        %6033 = vmatprep.subr.bf16.mxu0 0
        %6034 = vmatpush2.bf16.msra.mxu0 0
        %6035 = vmatprep.subr.bf16.mxu0 0
        %6036 = vmatpush2.bf16.msra.mxu0 0
        %6037 = vmatprep.subr.bf16.mxu0 0
        %6038 = vmatpush2.bf16.msra.mxu0 0
        %6039 = vmatprep.subr.bf16.mxu0 0
        %6040 = vmatpush2.bf16.msra.mxu0 0
        %6041 = vmatprep.subr.bf16.mxu0 0
        %6042 = vmatpush2.bf16.msra.mxu0 0
        %6043 = vmatprep.mubr.bf16.mxu0 0
        %6044 = vmatmul.mubr.bf16.gmra.mxu0 %v5048
        %v6045 = vpop.f32.mrf.mxu0
        %v6046 = vadd.f32 0.0, %v6045
        %v6047 = vpop.f32.mrf.mxu0
        %v6048 = vpop.f32.mrf.mxu0
        %v6049 = vadd.f32 0.0, %v6048
        %v6050 = vpop.f32.mrf.mxu0
        %6051 = vmatprep.mubr.bf16.mxu0 0
        %6052 = vmatmul.mubr.bf16.gmra.mxu0 %v5049
        %v6053 = vpop.f32.mrf.mxu0
        %v6054 = vadd.f32 0.0, %v6053
        %v6055 = vpop.f32.mrf.mxu0
        %v6056 = vpop.f32.mrf.mxu0
        %v6057 = vadd.f32 0.0, %v6056
        %v6058 = vpop.f32.mrf.mxu0
        %6059 = vmatprep.mubr.bf16.mxu0 0
        %6060 = vmatmul.mubr.bf16.gmra.mxu0 %v5050
        %v6061 = vpop.f32.mrf.mxu0
        %v6062 = vadd.f32 0.0, %v6061
        %v6063 = vpop.f32.mrf.mxu0
        %v6064 = vpop.f32.mrf.mxu0
        %v6065 = vadd.f32 0.0, %v6064
        %v6066 = vpop.f32.mrf.mxu0
        %6067 = vmatprep.mubr.bf16.mxu0 0
        %6068 = vmatmul.mubr.bf16.gmra.mxu0 %v5961
        %v6069 = vpop.f32.mrf.mxu0
        %v6070 = vadd.f32 0.0, %v6069
        %v6071 = vpop.f32.mrf.mxu0
        %v6072 = vpop.f32.mrf.mxu0
        %v6073 = vadd.f32 0.0, %v6072
        %v6074 = vpop.f32.mrf.mxu0
        %6075 = vdwg.mxu0
        %v6076 = vadd.f32 %v5931, %v6046
        %v6077 = vadd.f32 %v5932, %v6049
        %v6078 = vadd.f32 %v5933, %v6054
        %v6079 = vadd.f32 %v5934, %v6057
        %v6080 = vadd.f32 %v5935, %v6062
        %v6081 = vadd.f32 %v5936, %v6065
        %v6082 = vadd.f32 %v5937, %v6070
        %v6083 = vadd.f32 %v5938, %v6073
        %v6084 = vld [vmem:[%s7] sm:$0x1]
        %v6086 = vlaneseq
        %v6087 = vshrl.u32 %v6086, 7
        %v6088 = vsub.s32 0, %v6087
        %v6089 = vrot.slane %v6084, %v6088
        %v6091 = vadd.f32 %v6076, %v6089
        %v6092 = vadd.f32 %v6077, %v6089
        %v6093 = vadd.f32 %v6078, %v6089
        %v6094 = vadd.f32 %v6079, %v6089
        %v6095 = vadd.f32 %v6080, %v6089
        %v6096 = vadd.f32 %v6081, %v6089
        %v6097 = vadd.f32 %v6082, %v6089
        %v6098 = vadd.f32 %v6083, %v6089
        %vm6099 = vcmp.ge.f32.partialorder %v6091, 0.0
        %vm6100 = vcmp.ge.f32.partialorder %v6092, 0.0
        %vm6101 = vcmp.ge.f32.partialorder %v6093, 0.0
        %vm6102 = vcmp.ge.f32.partialorder %v6094, 0.0
        %vm6103 = vcmp.ge.f32.partialorder %v6095, 0.0
        %vm6104 = vcmp.ge.f32.partialorder %v6096, 0.0
        %vm6105 = vcmp.ge.f32.partialorder %v6097, 0.0
        %vm6106 = vcmp.ge.f32.partialorder %v6098, 0.0
        %v6107 = vmul.f32 %v6091, 0.2
        %v6108 = vmul.f32 %v6092, 0.2
        %v6109 = vmul.f32 %v6093, 0.2
        %v6110 = vmul.f32 %v6094, 0.2
        %v6111 = vmul.f32 %v6095, 0.2
        %v6112 = vmul.f32 %v6096, 0.2
        %v6113 = vmul.f32 %v6097, 0.2
        %v6114 = vmul.f32 %v6098, 0.2
        %v6115 = vsel %vm6099, %v6091, %v6107
        %v6116 = vsel %vm6100, %v6092, %v6108
        %v6117 = vsel %vm6101, %v6093, %v6109
        %v6118 = vsel %vm6102, %v6094, %v6110
        %v6119 = vsel %vm6103, %v6095, %v6111
        %v6120 = vsel %vm6104, %v6096, %v6112
        %v6121 = vsel %vm6105, %v6097, %v6113
        %v6122 = vsel %vm6106, %v6098, %v6114
        %v6123 = vmul.f32 %v6115, 1.4142135
        %v6124 = vmul.f32 %v6116, 1.4142135
        %v6125 = vmul.f32 %v6117, 1.4142135
        %v6126 = vmul.f32 %v6118, 1.4142135
        %v6127 = vmul.f32 %v6119, 1.4142135
        %v6128 = vmul.f32 %v6120, 1.4142135
        %v6129 = vmul.f32 %v6121, 1.4142135
        %v6130 = vmul.f32 %v6122, 1.4142135
        %v6132 = vshrl.u32 %v2084, 16
        %v6134 = vrot.slane %v6132, 4
        %v6135 = vshll.u32 %v2084, 16
        %v6137 = vrot.slane %v6135, 5
        %v6138 = vor.u32 %v6134, %v6137
        %v6139 = vrot.slane %v6138, 4
        %v6141 = vshll.u32 %v2085, 16
        %v6143 = vrot.slane %v6141, 5
        %v6144 = vsel %vm2308, %v6139, %v6143
        %v6146 = vshrl.u32 %v2086, 16
        %v6148 = vrot.slane %v6146, 4
        %v6149 = vshll.u32 %v2086, 16
        %v6151 = vrot.slane %v6149, 5
        %v6152 = vor.u32 %v6148, %v6151
        %v6153 = vrot.slane %v6152, 4
        %v6155 = vshll.u32 %v2087, 16
        %v6157 = vrot.slane %v6155, 5
        %v6158 = vsel %vm2308, %v6153, %v6157
        %v6160 = vshrl.u32 %v2088, 16
        %v6162 = vrot.slane %v6160, 4
        %v6163 = vshll.u32 %v2088, 16
        %v6165 = vrot.slane %v6163, 5
        %v6166 = vor.u32 %v6162, %v6165
        %v6167 = vrot.slane %v6166, 4
        %v6169 = vshll.u32 %v2089, 16
        %v6171 = vrot.slane %v6169, 5
        %v6172 = vsel %vm2308, %v6167, %v6171
        %v6174 = vshrl.u32 %v2090, 16
        %v6176 = vrot.slane %v6174, 4
        %v6177 = vshll.u32 %v2090, 16
        %v6179 = vrot.slane %v6177, 5
        %v6180 = vor.u32 %v6176, %v6179
        %v6181 = vrot.slane %v6180, 4
        %v6183 = vshll.u32 %v2091, 16
        %v6185 = vrot.slane %v6183, 5
        %v6186 = vsel %vm2308, %v6181, %v6185
        %v6188 = vshrl.u32 %v2092, 16
        %v6190 = vrot.slane %v6188, 4
        %v6191 = vshll.u32 %v2092, 16
        %v6193 = vrot.slane %v6191, 5
        %v6194 = vor.u32 %v6190, %v6193
        %v6195 = vrot.slane %v6194, 4
        %v6197 = vshll.u32 %v2093, 16
        %v6199 = vrot.slane %v6197, 5
        %v6200 = vsel %vm2308, %v6195, %v6199
        %v6202 = vshrl.u32 %v2094, 16
        %v6204 = vrot.slane %v6202, 4
        %v6205 = vshll.u32 %v2094, 16
        %v6207 = vrot.slane %v6205, 5
        %v6208 = vor.u32 %v6204, %v6207
        %v6209 = vrot.slane %v6208, 4
        %v6211 = vshll.u32 %v2095, 16
        %v6213 = vrot.slane %v6211, 5
        %v6214 = vsel %vm2308, %v6209, %v6213
        %v6216 = vshrl.u32 %v2096, 16
        %v6218 = vrot.slane %v6216, 4
        %v6219 = vshll.u32 %v2096, 16
        %v6221 = vrot.slane %v6219, 5
        %v6222 = vor.u32 %v6218, %v6221
        %v6223 = vrot.slane %v6222, 4
        %v6225 = vshll.u32 %v2097, 16
        %v6227 = vrot.slane %v6225, 5
        %v6228 = vsel %vm2308, %v6223, %v6227
        %v6230 = vshrl.u32 %v2098, 16
        %v6232 = vrot.slane %v6230, 4
        %v6233 = vshll.u32 %v2098, 16
        %v6235 = vrot.slane %v6233, 5
        %v6236 = vor.u32 %v6232, %v6235
        %v6237 = vrot.slane %v6236, 4
        %v6239 = vshll.u32 %v2099, 16
        %v6241 = vrot.slane %v6239, 5
        %v6242 = vsel %vm2308, %v6237, %v6241
        %v6243 = vld [vmem:[%s8] sm:$0xf]
        %v6244 = vld [vmem:[%s8 + $0x4] sm:$0xf]
        %v6245 = vld [vmem:[%s8 + $0x8] sm:$0xf]
        %v6246 = vld [vmem:[%s8 + $0xc] sm:$0xf]
        %v6247 = vld [vmem:[%s8 + $0x10] sm:$0xf]
        %v6248 = vld [vmem:[%s8 + $0x14] sm:$0xf]
        %v6249 = vld [vmem:[%s8 + $0x18] sm:$0xf]
        %v6250 = vld [vmem:[%s8 + $0x1c] sm:$0xf]
        %v6251 = vld [vmem:[%s8 + $0x20] sm:$0xf]
        %v6252 = vld [vmem:[%s8 + $0x24] sm:$0xf]
        %v6253 = vld [vmem:[%s8 + $0x28] sm:$0xf]
        %v6254 = vld [vmem:[%s8 + $0x2c] sm:$0xf]
        %v6255 = vld [vmem:[%s8 + $0x30] sm:$0xf]
        %v6256 = vld [vmem:[%s8 + $0x34] sm:$0xf]
        %v6257 = vld [vmem:[%s8 + $0x38] sm:$0xf]
        %v6258 = vld [vmem:[%s8 + $0x3c] sm:$0xf]
        %v6259 = vld [vmem:[%s8 + $0x40] sm:$0xf]
        %v6260 = vld [vmem:[%s8 + $0x44] sm:$0xf]
        %v6261 = vld [vmem:[%s8 + $0x48] sm:$0xf]
        %v6262 = vld [vmem:[%s8 + $0x4c] sm:$0xf]
        %v6263 = vld [vmem:[%s8 + $0x50] sm:$0xf]
        %v6264 = vld [vmem:[%s8 + $0x54] sm:$0xf]
        %v6265 = vld [vmem:[%s8 + $0x58] sm:$0xf]
        %v6266 = vld [vmem:[%s8 + $0x5c] sm:$0xf]
        %v6267 = vld [vmem:[%s8 + $0x60] sm:$0xf]
        %v6268 = vld [vmem:[%s8 + $0x64] sm:$0xf]
        %v6269 = vld [vmem:[%s8 + $0x68] sm:$0xf]
        %v6270 = vld [vmem:[%s8 + $0x6c] sm:$0xf]
        %v6271 = vld [vmem:[%s8 + $0x70] sm:$0xf]
        %v6272 = vld [vmem:[%s8 + $0x74] sm:$0xf]
        %v6273 = vld [vmem:[%s8 + $0x78] sm:$0xf]
        %v6274 = vld [vmem:[%s8 + $0x7c] sm:$0xf]
        %v6275 = vunpack.c.l.b16 %v6144
        %v6276 = vunpack.c.h.b16 %v6144
        %v6277 = vunpack.c.l.b16 %v6158
        %v6278 = vunpack.c.h.b16 %v6158
        %v6279 = vunpack.c.l.b16 %v6172
        %v6280 = vunpack.c.h.b16 %v6172
        %v6281 = vunpack.c.l.b16 %v6186
        %v6282 = vunpack.c.h.b16 %v6186
        %v6283 = vunpack.c.l.b16 %v6200
        %v6284 = vunpack.c.h.b16 %v6200
        %v6285 = vunpack.c.l.b16 %v6214
        %v6286 = vunpack.c.h.b16 %v6214
        %v6287 = vunpack.c.l.b16 %v6228
        %v6288 = vunpack.c.h.b16 %v6228
        %v6289 = vunpack.c.l.b16 %v6242
        %v6290 = vunpack.c.h.b16 %v6242
        %v6291 = vpack.c.b16 %v6277, %v6275
        %v6292 = vpack.c.b16 %v6278, %v6276
        %v6293 = vpack.c.b16 %v6281, %v6279
        %v6294 = vpack.c.b16 %v6282, %v6280
        %v6295 = vpack.c.b16 %v6285, %v6283
        %v6296 = vpack.c.b16 %v6286, %v6284
        %v6297 = vpack.c.b16 %v6289, %v6287
        %v6298 = vpack.c.b16 %v6290, %v6288
        %v6339 = vunpack.c.l.b16 %v6243
        %v6340 = vunpack.c.l.b16 %v6244
        %v6341 = vunpack.c.l.b16 %v6245
        %v6342 = vunpack.c.l.b16 %v6246
        %v6343 = vunpack.c.l.b16 %v6247
        %v6344 = vunpack.c.l.b16 %v6248
        %v6345 = vunpack.c.l.b16 %v6249
        %v6346 = vunpack.c.l.b16 %v6250
        %v6347 = vunpack.c.l.b16 %v6251
        %v6348 = vunpack.c.l.b16 %v6252
        %v6349 = vunpack.c.l.b16 %v6253
        %v6350 = vunpack.c.l.b16 %v6254
        %v6351 = vunpack.c.l.b16 %v6255
        %v6352 = vunpack.c.l.b16 %v6256
        %v6353 = vunpack.c.l.b16 %v6257
        %v6354 = vunpack.c.l.b16 %v6258
        %v6355 = vunpack.c.l.b16 %v6259
        %v6356 = vunpack.c.l.b16 %v6260
        %v6357 = vunpack.c.l.b16 %v6261
        %v6358 = vunpack.c.l.b16 %v6262
        %v6359 = vunpack.c.l.b16 %v6263
        %v6360 = vunpack.c.l.b16 %v6264
        %v6361 = vunpack.c.l.b16 %v6265
        %v6362 = vunpack.c.l.b16 %v6266
        %v6363 = vunpack.c.l.b16 %v6267
        %v6364 = vunpack.c.l.b16 %v6268
        %v6365 = vunpack.c.l.b16 %v6269
        %v6366 = vunpack.c.l.b16 %v6270
        %v6367 = vunpack.c.l.b16 %v6271
        %v6368 = vunpack.c.l.b16 %v6272
        %v6369 = vunpack.c.l.b16 %v6273
        %v6370 = vunpack.c.l.b16 %v6274
        %v6371 = vpack.c.b16 %v6340, %v6339
        %v6372 = vpack.c.b16 %v6342, %v6341
        %v6373 = vpack.c.b16 %v6344, %v6343
        %v6374 = vpack.c.b16 %v6346, %v6345
        %v6375 = vpack.c.b16 %v6348, %v6347
        %v6376 = vpack.c.b16 %v6350, %v6349
        %v6377 = vpack.c.b16 %v6352, %v6351
        %v6378 = vpack.c.b16 %v6354, %v6353
        %v6379 = vpack.c.b16 %v6356, %v6355
        %v6380 = vpack.c.b16 %v6358, %v6357
        %v6381 = vpack.c.b16 %v6360, %v6359
        %v6382 = vpack.c.b16 %v6362, %v6361
        %v6383 = vpack.c.b16 %v6364, %v6363
        %v6384 = vpack.c.b16 %v6366, %v6365
        %v6385 = vpack.c.b16 %v6368, %v6367
        %v6386 = vpack.c.b16 %v6370, %v6369
        %6403 = vmatprep.subr.bf16.mxu0 0
        %6404 = vmatpush1.bf16.msra.mxu0 %v6378
        %6405 = vmatprep.subr.bf16.mxu0 0
        %6406 = vmatpush1.bf16.msra.mxu0 %v6377
        %6407 = vmatprep.subr.bf16.mxu0 0
        %6408 = vmatpush1.bf16.msra.mxu0 %v6376
        %6409 = vmatprep.subr.bf16.mxu0 0
        %6410 = vmatpush1.bf16.msra.mxu0 %v6375
        %6411 = vmatprep.subr.bf16.mxu0 0
        %6412 = vmatpush1.bf16.msra.mxu0 %v6374
        %6413 = vmatprep.subr.bf16.mxu0 0
        %6414 = vmatpush1.bf16.msra.mxu0 %v6373
        %6415 = vmatprep.subr.bf16.mxu0 0
        %6416 = vmatpush1.bf16.msra.mxu0 %v6372
        %6417 = vmatprep.subr.bf16.mxu0 0
        %6418 = vmatpush1.bf16.msra.mxu0 %v6371
        %6419 = vmatprep.subr.bf16.mxu0 0
        %6420 = vmatpush2.bf16.msra.mxu0 %v6386
        %6421 = vmatprep.subr.bf16.mxu0 0
        %6422 = vmatpush2.bf16.msra.mxu0 %v6385
        %6423 = vmatprep.subr.bf16.mxu0 0
        %6424 = vmatpush2.bf16.msra.mxu0 %v6384
        %6425 = vmatprep.subr.bf16.mxu0 0
        %6426 = vmatpush2.bf16.msra.mxu0 %v6383
        %6427 = vmatprep.subr.bf16.mxu0 0
        %6428 = vmatpush2.bf16.msra.mxu0 %v6382
        %6429 = vmatprep.subr.bf16.mxu0 0
        %6430 = vmatpush2.bf16.msra.mxu0 %v6381
        %6431 = vmatprep.subr.bf16.mxu0 0
        %6432 = vmatpush2.bf16.msra.mxu0 %v6380
        %6433 = vmatprep.subr.bf16.mxu0 0
        %6434 = vmatpush2.bf16.msra.mxu0 %v6379
        %6435 = vmatprep.mubr.bf16.mxu0 %v6292
        %6436 = vmatmul.mubr.bf16.gmra.mxu0 %v6291
        %v6437 = vpop.f32.mrf.mxu0
        %v6438 = vadd.f32 %v6123, %v6437
        %v6439 = vpop.f32.mrf.mxu0
        %v6440 = vpop.f32.mrf.mxu0
        %v6441 = vadd.f32 %v6124, %v6440
        %v6442 = vpop.f32.mrf.mxu0
        %6443 = vmatprep.mubr.bf16.mxu0 %v6294
        %6444 = vmatmul.mubr.bf16.gmra.mxu0 %v6293
        %v6445 = vpop.f32.mrf.mxu0
        %v6446 = vadd.f32 %v6125, %v6445
        %v6447 = vpop.f32.mrf.mxu0
        %v6448 = vpop.f32.mrf.mxu0
        %v6449 = vadd.f32 %v6126, %v6448
        %v6450 = vpop.f32.mrf.mxu0
        %6451 = vmatprep.mubr.bf16.mxu0 %v6296
        %6452 = vmatmul.mubr.bf16.gmra.mxu0 %v6295
        %v6453 = vpop.f32.mrf.mxu0
        %v6454 = vadd.f32 %v6127, %v6453
        %v6455 = vpop.f32.mrf.mxu0
        %v6456 = vpop.f32.mrf.mxu0
        %v6457 = vadd.f32 %v6128, %v6456
        %v6458 = vpop.f32.mrf.mxu0
        %6459 = vmatprep.mubr.bf16.mxu0 %v6298
        %6460 = vmatmul.mubr.bf16.gmra.mxu0 %v6297
        %v6461 = vpop.f32.mrf.mxu0
        %v6462 = vadd.f32 %v6129, %v6461
        %v6463 = vpop.f32.mrf.mxu0
        %v6464 = vpop.f32.mrf.mxu0
        %v6465 = vadd.f32 %v6130, %v6464
        %v6466 = vpop.f32.mrf.mxu0
        %6467 = vdwg.mxu0
        %v6468 = vmul.f32 %v6438, 0.70710677
        %v6469 = vmul.f32 %v6441, 0.70710677
        %v6470 = vmul.f32 %v6446, 0.70710677
        %v6471 = vmul.f32 %v6449, 0.70710677
        %v6472 = vmul.f32 %v6454, 0.70710677
        %v6473 = vmul.f32 %v6457, 0.70710677
        %v6474 = vmul.f32 %v6462, 0.70710677
        %v6475 = vmul.f32 %v6465, 0.70710677
        %6476 = vst [vmem:[%s368] sm:$0xff] %v6468
        %6477 = vst [vmem:[%s368 + $0x8] sm:$0xff] %v6469
        %6478 = vst [vmem:[%s368 + $0x10] sm:$0xff] %v6470
        %6479 = vst [vmem:[%s368 + $0x18] sm:$0xff] %v6471
        %6480 = vst [vmem:[%s368 + $0x20] sm:$0xff] %v6472
        %6481 = vst [vmem:[%s368 + $0x28] sm:$0xff] %v6473
        %6482 = vst [vmem:[%s368 + $0x30] sm:$0xff] %v6474
        %6483 = vst [vmem:[%s368 + $0x38] sm:$0xff] %v6475
        %s6484 = sand.u32 %s232, 1
        %s6485 = scalar_lea.sflag [#allocation5], %s6484
        %s6486 = sand.u32 %s232, 1
        %s6487 = smul.addr %s6486, 64
        %s6488 = scalar_lea.vmem [#allocation8], %s6487
        // Predicated region
        $region65: #{resnet_block_forward.1} parent=55 // pred_check
          %p6489 = pneg %p242
        $region66: #{resnet_block_forward.1} parent=55 // pred_check_branch
          %6491 = sbr.rel (%p6489) target = $region68
        $region67: #{resnet_block_forward.1} parent=55 // pred_region
          %s6493 = ssub.s32 1024, 1024
          %6494 = vsyncadd %s6485, %s6493
          %s6495 = smul.addr %s25, 8
          %s6496 = smul.addr %s6495, 128
          %s6497 = scalar_lea.hbm %s9, %s6496
          %s6498 = sshll.u32 %s6488, 4
          %s6499 = int_to_ptr.vmem [resolvable:$true] %s6498
          %6504 = dma.vmem_to_hbm [thread:$0]  %s6499, 1024, %s6497, %s6485, 128, 128, 8
        $region68: #{resnet_block_forward.1} parent=55 // pred_fallthru
          _
      $region56: #{resnet_block_forward.1} parent=5 // pred_fallthru
        _
      %p6505 = scmp.le.s32.totalorder 2, %s20
      // Predicated region
      $region69: #{resnet_block_forward.1} parent=5 // pred_check
        %p6506 = pneg %p6505
      $region70: #{resnet_block_forward.1} parent=5 // pred_check_branch
        %6508 = sbr.rel (%p6506) target = $region72
      $region71: #{resnet_block_forward.1} parent=5 // pred_region
        %s6509 = ssub.s32 %s20, 2
        // Predicated region
        $region73: #{resnet_block_forward.1} parent=71 // pred_check
          %p6510 = pneg %p248
        $region74: #{resnet_block_forward.1} parent=71 // pred_check_branch
          %6512 = sbr.rel (%p6510) target = $region76
        $region75: #{resnet_block_forward.1} parent=71 // pred_region
          %s6513 = sand.u32 %s233, 1
          %s6514 = scalar_lea.sflag [#allocation5], %s6513
          %s6515 = sand.u32 %s233, 1
          %s6516 = smul.addr %s6515, 64
          %s6517 = scalar_lea.vmem [#allocation8], %s6516
          %6518 = dma.done %s6514, 1024
        $region76: #{resnet_block_forward.1} parent=71 // pred_fallthru
          _
      $region72: #{resnet_block_forward.1} parent=5 // pred_fallthru
        _
    $region6: #{resnet_block_forward.1} parent=1 // loop_footer
      %s24 = sadd.s32 1, %s20
    $region7: #{resnet_block_forward.1} parent=1 // loop_footer_branch
      %19 = sbr.rel target = $region3
    $region8: #{resnet_block_forward.1} parent=1 // loop_exit
      _
    %6519 = vsyncpa [#allocation4], 1
    %s6520 = scalar_lea.sflag [#allocation4], 1
    %6521 = vsyncpa %s6520, 1
    %6522 = vsyncpa [#allocation7], 1
    %6523 = vsyncpa [#allocation5], 1
    %s6524 = scalar_lea.sflag [#allocation5], 1
    %6525 = vsyncpa %s6524, 1

</llo_original>
